<compile_context>
chip_gen: v7x
topology: tpu7x:2x2x1
jax: 0.10.0
libtpu: 0.0.40
codegen_flags: <defaults>
</compile_context>

<pallas_src>
import functools
import math

import jax
import jax.numpy as jnp
from jax.experimental import pallas as pl
from jax.experimental.pallas import tpu as pltpu

# ----------------------------- hyper-parameters ------------------------------
D_MODEL = 128                       # d_model / units / latent_dim
NUM_HEADS = 2                       # numofhead
NUM_BLOCKS = 2                      # numofblock
FC_HIDDEN = 256                     # FC units[0]
VOCAB = 256                         # vocab_size
DISC_DIMS = (256, 512, 256, D_MODEL, 1)   # LabelDiscriminator fc1..fc5 widths
LN_EPS = 1e-5
_NEG_CAUSAL = float(-(2 ** 32) + 1)       # (1 - tril) * (-2**32 + 1)
ROW_TILE = 8                        # rows per program for row-parallel kernels


# ------------------------------ kernel helpers --------------------------------
def _ln(y, g, b):
    """LayerNorm over the last dim, f32 statistics (PyTorch semantics)."""
    mean = jnp.mean(y, axis=-1, keepdims=True)
    cen = y - mean
    var = jnp.mean(cen * cen, axis=-1, keepdims=True)
    return cen * jax.lax.rsqrt(var + LN_EPS) * g + b


def _dot_bias(x, w_ref, b_ref):
    """x @ w + b; activations cast to the stored weight dtype (bf16 -> MXU fast
    path), f32 accumulation, f32 bias add."""
    w = w_ref[...]
    return jnp.dot(x.astype(w.dtype), w,
                   preferred_element_type=jnp.float32) + b_ref[...]


def _rep(arr):
    """Whole-array block, replicated across every grid step."""
    nd = arr.ndim
    return pl.BlockSpec(arr.shape, lambda *_: (0,) * nd)


# ------------------------ fused encoder block kernel --------------------------
def _encoder_block_kernel(x_ref, mask_ref,
                          wqkv_ref, bqkv_ref, ln1_g_ref, ln1_b_ref,
                          w1_ref, b1_ref, w2_ref, b2_ref, ln2_g_ref, ln2_b_ref,
                          o_ref, *, num_heads, scale):
    x = x_ref[...]                                     # (S, D) f32
    S, D = x.shape
    Dh = D // num_heads

    # Fused Q/K/V projection (one (S,D) @ (D,3D) matmul) + ReLU.
    qkv = jnp.maximum(_dot_bias(x, wqkv_ref, bqkv_ref), 0.0)        # (S, 3D) f32
    q = qkv[:, 0:D] * scale          # fold 1/sqrt(Dh) into q (cheap (S,D) mul)
    k = qkv[:, D:2 * D]
    v = qkv[:, 2 * D:3 * D]

    # Masks: additive causal, then padding masked_fill (padding overrides).
    row = jax.lax.broadcasted_iota(jnp.int32, (S, S), 0)
    col = jax.lax.broadcasted_iota(jnp.int32, (S, S), 1)
    causal = jnp.where(col > row, _NEG_CAUSAL, 0.0)                 # (S, S) f32
    key_pad = mask_ref[...] != 0                                    # (1, S) bool

    dn = (((1,), (1,)), ((), ()))    # contract Dh with Dh (no k transpose)
    ctx_heads = []
    for h in range(num_heads):
        qh = q[:, h * Dh:(h + 1) * Dh]
        kh = k[:, h * Dh:(h + 1) * Dh]
        vh = v[:, h * Dh:(h + 1) * Dh]
        a = jax.lax.dot_general(qh, kh, dn,
                                preferred_element_type=jnp.float32)  # (S, S)
        a = a + causal
        a = jnp.where(key_pad, -1e9, a)
        m = jnp.max(a, axis=-1, keepdims=True)
        e = jnp.exp(a - m)
        p = e * pl.reciprocal(jnp.sum(e, axis=-1, keepdims=True), approx=True)
        ctx_heads.append(jnp.dot(p, vh, preferred_element_type=jnp.float32))
    ctx = jnp.concatenate(ctx_heads, axis=-1)          # (S, D) lane-dense

    # residual (+= queries) and LayerNorm.
    y1 = _ln(ctx + x, ln1_g_ref[...], ln1_b_ref[...])

    # FC block: l1 -> ReLU -> l2 -> +residual -> LayerNorm.
    h1 = jnp.maximum(_dot_bias(y1, w1_ref, b1_ref), 0.0)            # (S, H)
    h2 = _dot_bias(h1, w2_ref, b2_ref)                              # (S, D)
    o_ref[...] = _ln(h2 + y1, ln2_g_ref[...], ln2_b_ref[...])


def encoder_block_forward(x, key_mask, p):
    """x: (B, S, D) f32; key_mask: (B, 1, S) int32 (1 = padding key)."""
    B, S, D = x.shape
    scale = 1.0 / math.sqrt(D // NUM_HEADS)
    args = (x, key_mask, p["wqkv"], p["bqkv"], p["ln1_g"], p["ln1_b"],
            p["w1"], p["b1"], p["w2"], p["b2"], p["ln2_g"], p["ln2_b"])
    in_specs = [pl.BlockSpec((None, S, D), lambda b: (b, 0, 0)),
                pl.BlockSpec((None, 1, S), lambda b: (b, 0, 0))]
    in_specs += [_rep(a) for a in args[2:]]
    return pl.pallas_call(
        functools.partial(_encoder_block_kernel,
                          num_heads=NUM_HEADS, scale=scale),
        out_shape=jax.ShapeDtypeStruct((B, S, D), jnp.float32),
        grid=(B,),
        in_specs=in_specs,
        out_specs=pl.BlockSpec((None, S, D), lambda b: (b, 0, 0)),
        compiler_params=pltpu.CompilerParams(dimension_semantics=("parallel",)),
    )(*args)


# --------------------- fused latent head (mean/logvar/z) ----------------------
def _latent_kernel(x_ref, wm_ref, bm_ref, wv_ref, bv_ref, eps_ref,
                   mean_ref, logvar_ref, z_ref):
    x = x_ref[...]
    mu = _dot_bias(x, wm_ref, bm_ref)
    lv = _dot_bias(x, wv_ref, bv_ref)
    mean_ref[...] = mu
    logvar_ref[...] = lv
    z_ref[...] = eps_ref[...] * jnp.exp(0.5 * lv) + mu      # reparameterize


def latent_forward(enc2d, eps, p_mean, p_logvar):
    M, D = enc2d.shape
    tm = ROW_TILE
    row = pl.BlockSpec((tm, D), lambda i: (i, 0))
    args = (enc2d, p_mean["w"], p_mean["b"], p_logvar["w"], p_logvar["b"], eps)
    in_specs = [row, _rep(p_mean["w"]), _rep(p_mean["b"]),
                _rep(p_logvar["w"]), _rep(p_logvar["b"]), row]
    shp = jax.ShapeDtypeStruct((M, D), jnp.float32)
    return pl.pallas_call(
        _latent_kernel,
        out_shape=(shp, shp, shp),
        grid=(M // tm,),
        in_specs=in_specs,
        out_specs=(row, row, row),
        compiler_params=pltpu.CompilerParams(dimension_semantics=("parallel",)),
    )(*args)


# -------------- fused decoder (dec-in + FC blocks + vocab head) ----------------
def _decoder_kernel(*refs, num_layers):
    zc_ref, win_ref, bin_ref = refs[0:3]
    layer_refs = refs[3:3 + 6 * num_layers]
    wout_ref, bout_ref = refs[3 + 6 * num_layers:5 + 6 * num_layers]
    dec_ref, logits_ref = refs[5 + 6 * num_layers:]

    x = _dot_bias(zc_ref[...], win_ref, bin_ref)          # (tm, D), no activation
    for l in range(num_layers):                           # DecoderLayer == FC only
        w1, b1, w2, b2, g, bb = layer_refs[6 * l:6 * l + 6]
        h = jnp.maximum(_dot_bias(x, w1, b1), 0.0)
        h = _dot_bias(h, w2, b2)
        x = _ln(h + x, g[...], bb[...])
    dec_ref[...] = x
    logits_ref[...] = _dot_bias(x, wout_ref, bout_ref)    # vocab projection


def decoder_forward(zc, p_in, dec_layers, p_out):
    M, Din = zc.shape
    D = D_MODEL
    tm = ROW_TILE
    args = [zc, p_in["w"], p_in["b"]]
    for lp in dec_layers:
        args += [lp["l1"]["w"], lp["l1"]["b"], lp["l2"]["w"], lp["l2"]["b"],
                 lp["ln_g"], lp["ln_b"]]
    args += [p_out["w"], p_out["b"]]
    in_specs = ([pl.BlockSpec((tm, Din), lambda i: (i, 0))]
                + [_rep(a) for a in args[1:]])
    out_shapes = (jax.ShapeDtypeStruct((M, D), jnp.float32),
                  jax.ShapeDtypeStruct((M, VOCAB), jnp.float32))
    out_specs = (pl.BlockSpec((tm, D), lambda i: (i, 0)),
                 pl.BlockSpec((tm, VOCAB), lambda i: (i, 0)))
    return pl.pallas_call(
        functools.partial(_decoder_kernel, num_layers=len(dec_layers)),
        out_shape=out_shapes,
        grid=(M // tm,),
        in_specs=in_specs,
        out_specs=out_specs,
        compiler_params=pltpu.CompilerParams(dimension_semantics=("parallel",)),
    )(*args)


# ------------------------ fused 5-layer discriminator -------------------------
def _disc_kernel(*refs, num_layers):
    x_ref = refs[0]
    w_refs = refs[1:1 + 2 * num_layers]
    out_ref = refs[-1]
    h = x_ref[...]
    for i in range(num_layers):
        h = _dot_bias(h, w_refs[2 * i], w_refs[2 * i + 1])
        if i < num_layers - 1:
            h = jnp.maximum(h, 0.0)
    out_ref[...] = h


def discriminator_forward(x2d, disc):
    M, Din = x2d.shape
    tm = ROW_TILE
    args = [x2d]
    for lp in disc:
        args += [lp["w"], lp["b"]]
    in_specs = ([pl.BlockSpec((tm, Din), lambda i: (i, 0))]
                + [_rep(a) for a in args[1:]])
    n_out = disc[-1]["w"].shape[1]
    return pl.pallas_call(
        functools.partial(_disc_kernel, num_layers=len(disc)),
        out_shape=jax.ShapeDtypeStruct((M, n_out), jnp.float32),
        grid=(M // tm,),
        in_specs=in_specs,
        out_specs=pl.BlockSpec((tm, n_out), lambda i: (i, 0)),
        compiler_params=pltpu.CompilerParams(dimension_semantics=("parallel",)),
    )(*args)


# --------------------------- parameter construction --------------------------
def make_positional_encoding(max_len, units):
    position = jnp.arange(max_len, dtype=jnp.float32)[:, None]
    div_term = jnp.exp(jnp.arange(0, units, 2, dtype=jnp.float32)
                       * (-math.log(10000.0) / units))
    ang = position * div_term
    pe = jnp.zeros((max_len, units), jnp.float32)
    pe = pe.at[:, 0::2].set(jnp.sin(ang))
    pe = pe.at[:, 1::2].set(jnp.cos(ang))
    return pe


def init_linear(key, fan_in, fan_out, w_dtype=jnp.bfloat16):
    kw, kb = jax.random.split(key)
    bound = 1.0 / math.sqrt(fan_in)
    w = jax.random.uniform(kw, (fan_in, fan_out), jnp.float32, -bound, bound)
    b = jax.random.uniform(kb, (fan_out,), jnp.float32, -bound, bound)
    return {"w": w.astype(w_dtype), "b": b.reshape(1, fan_out)}


def init_enc_block(key, d, hidden):
    kq, kk, kv, k1, k2 = jax.random.split(key, 5)
    q = init_linear(kq, d, d)
    k = init_linear(kk, d, d)
    v = init_linear(kv, d, d)
    l1 = init_linear(k1, d, hidden)
    l2 = init_linear(k2, hidden, d)
    return {
        "wqkv": jnp.concatenate([q["w"], k["w"], v["w"]], axis=1),   # (D, 3D) bf16
        "bqkv": jnp.concatenate([q["b"], k["b"], v["b"]], axis=1),   # (1, 3D) f32
        "ln1_g": jnp.ones((1, d), jnp.float32),
        "ln1_b": jnp.zeros((1, d), jnp.float32),
        "w1": l1["w"], "b1": l1["b"], "w2": l2["w"], "b2": l2["b"],
        "ln2_g": jnp.ones((1, d), jnp.float32),
        "ln2_b": jnp.zeros((1, d), jnp.float32),
    }


def init_fc(key, d, hidden):
    k1, k2 = jax.random.split(key)
    return {"l1": init_linear(k1, d, hidden), "l2": init_linear(k2, hidden, d),
            "ln_g": jnp.ones((1, d), jnp.float32),
            "ln_b": jnp.zeros((1, d), jnp.float32)}


def init_params(key):
    keys = jax.random.split(key, 16)
    params = {
        "emb": 0.02 * jax.random.normal(keys[0], (VOCAB, D_MODEL), jnp.float32),
        "pe": make_positional_encoding(64, D_MODEL),
        "mean": init_linear(keys[5], D_MODEL, D_MODEL),
        "log_var": init_linear(keys[6], D_MODEL, D_MODEL),
        # K = D_MODEL + 2 (=130) is not 16-aligned: keep these weights f32 so no
        # odd-shaped bf16 relayout is ever needed; the matmuls are tiny anyway.
        "dec_in": init_linear(keys[7], D_MODEL + 2, D_MODEL, w_dtype=jnp.float32),
        "out": init_linear(keys[11], D_MODEL, VOCAB),
    }
    params["enc_layers"] = [init_enc_block(keys[1 + i], D_MODEL, FC_HIDDEN)
                            for i in range(NUM_BLOCKS)]
    params["dec_layers"] = [init_fc(keys[8 + i], D_MODEL, FC_HIDDEN)
                            for i in range(NUM_BLOCKS)]
    dkeys = jax.random.split(keys[12], 5)
    dims_in = (D_MODEL + 2,) + DISC_DIMS[:-1]
    params["disc"] = [
        init_linear(dkeys[i], dims_in[i], DISC_DIMS[i],
                    w_dtype=jnp.float32 if i == 0 else jnp.bfloat16)
        for i in range(5)]
    return params


# -------------------------------- model forward -------------------------------
def ctg_forward(params, inputs, labels, eps_key):
    B, S = inputs.shape
    D = D_MODEL
    # Embedding gather / PE / one-hot / concat are plain-JAX glue around kernels.
    tok = params["emb"][inputs]                              # (B, S, D)
    pe = params["pe"]

    # CTG path: pe applied on (S, B, D) via transpose -> indexed by seq position.
    outputs = tok + pe[:S][None, :, :]
    # Encoder path: pe applied on (B, S, D) directly -> indexed by batch position
    # (faithfully reproduces the original PyTorch code's indexing quirk).
    enc = tok + pe[:B][:, None, :]

    # Padding key mask (token id 1 == padding); broadcast over queries in-kernel.
    key_mask = (inputs == 1).astype(jnp.int32)[:, None, :]   # (B, 1, S)

    x = enc
    for lp in params["enc_layers"]:
        x = encoder_block_forward(x, key_mask, lp)
    enc2d = x.reshape(B * S, D)

    eps = jax.random.normal(eps_key, (B * S, D), jnp.float32)
    z_mean, z_log_var, z = latent_forward(enc2d, eps,
                                          params["mean"], params["log_var"])

    lab = jax.nn.one_hot(labels, 2, dtype=jnp.float32)                  # (B, 2)
    lab_rep = jnp.broadcast_to(lab[:, None, :], (B, S, 2)).reshape(B * S, 2)
    zc = jnp.concatenate([z, lab_rep], axis=-1)                         # (B*S, D+2)

    dec_out, logits = decoder_forward(zc, params["dec_in"],
                                      params["dec_layers"], params["out"])

    # Discriminator on stacked (real, fake) inputs -> a single fused call.
    disc_in = jnp.concatenate(
        [jnp.concatenate([outputs.reshape(B * S, D), lab_rep], axis=-1),
         jnp.concatenate([dec_out, lab_rep], axis=-1)], axis=0)         # (2BS, D+2)
    disc_out = discriminator_forward(disc_in, params["disc"])           # (2BS, 1)
    real_D = disc_out[:B * S].reshape(B, S, 1)
    fake_D = disc_out[B * S:].reshape(B, S, 1)

    return (logits,
            z_mean.reshape(B, S, D),
            z_log_var.reshape(B, S, D),
            real_D, fake_D)


# ------------------------------------ main ------------------------------------
if __name__ == "__main__":
    key = jax.random.PRNGKey(0)
    kp, ki, ke = jax.random.split(key, 3)
    params = init_params(kp)

    B, S = 2, 8
    inputs = jax.random.randint(ki, (B, S), 2, VOCAB)
    inputs = inputs.at[0, -2:].set(1)            # token id 1 == padding (exercises mask)
    labels = jnp.array([0, 1], dtype=jnp.int32)

    fwd = jax.jit(functools.partial(ctg_forward, params))
    outs = jax.block_until_ready(fwd(inputs, labels, ke))
    logits, z_mean, z_log_var, real_D, fake_D = outs

    assert logits.shape == (B * S, VOCAB)
    assert z_mean.shape == (B, S, D_MODEL) and z_log_var.shape == (B, S, D_MODEL)
    assert real_D.shape == (B, S, 1) and fake_D.shape == (B, S, 1)
    assert all(bool(jnp.all(jnp.isfinite(o))) for o in outs)
    print("KERNEL_OK")
</pallas_src>

<mosaic_0001>
module attributes {stable_mosaic.version = 11 : i64} {
  func.func @_latent_kernel(%arg0: i32, %arg1: memref<8x128xf32, #tpu.memory_space<vmem>>, %arg2: memref<128x128xbf16, #tpu.memory_space<vmem>>, %arg3: memref<1x128xf32, #tpu.memory_space<vmem>>, %arg4: memref<128x128xbf16, #tpu.memory_space<vmem>>, %arg5: memref<1x128xf32, #tpu.memory_space<vmem>>, %arg6: memref<8x128xf32, #tpu.memory_space<vmem>>, %arg7: memref<8x128xf32, #tpu.memory_space<vmem>>, %arg8: memref<8x128xf32, #tpu.memory_space<vmem>>, %arg9: memref<8x128xf32, #tpu.memory_space<vmem>>) attributes {dimension_semantics = [#tpu.dimension_semantics<parallel>], iteration_bounds = array<i64: 2>, scalar_prefetch = 0 : i64, scratch_operands = 0 : i64, tpu.core_type = #tpu.core_type<tc>, window_params = [{transform_indices = @transform_0, window_bounds = array<i64: 8, 128>}, {pipeline_mode = #tpu.pipeline_mode<synchronous>, transform_indices = @transform_1, window_bounds = array<i64: 128, 128>}, {pipeline_mode = #tpu.pipeline_mode<synchronous>, transform_indices = @transform_2, window_bounds = array<i64: 1, 128>}, {pipeline_mode = #tpu.pipeline_mode<synchronous>, transform_indices = @transform_3, window_bounds = array<i64: 128, 128>}, {pipeline_mode = #tpu.pipeline_mode<synchronous>, transform_indices = @transform_4, window_bounds = array<i64: 1, 128>}, {transform_indices = @transform_5, window_bounds = array<i64: 8, 128>}, {transform_indices = @transform_6, window_bounds = array<i64: 8, 128>}, {transform_indices = @transform_7, window_bounds = array<i64: 8, 128>}, {transform_indices = @transform_8, window_bounds = array<i64: 8, 128>}]} {
    %c0 = arith.constant 0 : index
    %c0_0 = arith.constant 0 : index
    %0 = vector.load %arg1[%c0, %c0_0] : memref<8x128xf32, #tpu.memory_space<vmem>>, vector<8x128xf32>
    %c0_1 = arith.constant 0 : index
    %c0_2 = arith.constant 0 : index
    %1 = vector.load %arg2[%c0_1, %c0_2] : memref<128x128xbf16, #tpu.memory_space<vmem>>, vector<128x128xbf16>
    %2 = arith.truncf %0 : vector<8x128xf32> to vector<8x128xbf16>
    %cst = arith.constant dense<0.000000e+00> : vector<8x128xf32>
    %3 = tpu.matmul %2, %1, %cst {dimension_numbers = #tpu.dot_dimension_numbers<[1], [0], [0], [1], [0, 0, 1, 1], [], []>} : vector<8x128xbf16>, vector<128x128xbf16>, vector<8x128xf32> -> vector<8x128xf32>
    %c0_3 = arith.constant 0 : index
    %c0_4 = arith.constant 0 : index
    %4 = vector.load %arg3[%c0_3, %c0_4] : memref<1x128xf32, #tpu.memory_space<vmem>>, vector<1x128xf32>
    %5 = vector.broadcast %4 : vector<1x128xf32> to vector<8x128xf32>
    %6 = arith.addf %3, %5 : vector<8x128xf32>
    %c0_5 = arith.constant 0 : index
    %c0_6 = arith.constant 0 : index
    %7 = vector.load %arg4[%c0_5, %c0_6] : memref<128x128xbf16, #tpu.memory_space<vmem>>, vector<128x128xbf16>
    %8 = arith.truncf %0 : vector<8x128xf32> to vector<8x128xbf16>
    %cst_7 = arith.constant dense<0.000000e+00> : vector<8x128xf32>
    %9 = tpu.matmul %8, %7, %cst_7 {dimension_numbers = #tpu.dot_dimension_numbers<[1], [0], [0], [1], [0, 0, 1, 1], [], []>} : vector<8x128xbf16>, vector<128x128xbf16>, vector<8x128xf32> -> vector<8x128xf32>
    %c0_8 = arith.constant 0 : index
    %c0_9 = arith.constant 0 : index
    %10 = vector.load %arg5[%c0_8, %c0_9] : memref<1x128xf32, #tpu.memory_space<vmem>>, vector<1x128xf32>
    %11 = vector.broadcast %10 : vector<1x128xf32> to vector<8x128xf32>
    %12 = arith.addf %9, %11 : vector<8x128xf32>
    %c0_10 = arith.constant 0 : index
    %c0_11 = arith.constant 0 : index
    %13 = vector.load %arg7[%c0_10, %c0_11] : memref<8x128xf32, #tpu.memory_space<vmem>>, vector<8x128xf32>
    tpu.vector_store %arg7[%c0_10, %c0_11], %6 {strides = array<i32>} : memref<8x128xf32, #tpu.memory_space<vmem>>, vector<8x128xf32>,
    %c0_12 = arith.constant 0 : index
    %c0_13 = arith.constant 0 : index
    %14 = vector.load %arg8[%c0_12, %c0_13] : memref<8x128xf32, #tpu.memory_space<vmem>>, vector<8x128xf32>
    tpu.vector_store %arg8[%c0_12, %c0_13], %12 {strides = array<i32>} : memref<8x128xf32, #tpu.memory_space<vmem>>, vector<8x128xf32>,
    %c0_14 = arith.constant 0 : index
    %c0_15 = arith.constant 0 : index
    %15 = vector.load %arg6[%c0_14, %c0_15] : memref<8x128xf32, #tpu.memory_space<vmem>>, vector<8x128xf32>
    %cst_16 = arith.constant 5.000000e-01 : f32
    %16 = vector.broadcast %cst_16 : f32 to vector<8x128xf32>
    %17 = arith.mulf %16, %12 : vector<8x128xf32>
    %18 = math.exp %17 : vector<8x128xf32>
    %19 = arith.mulf %15, %18 : vector<8x128xf32>
    %20 = arith.addf %19, %6 : vector<8x128xf32>
    %c0_17 = arith.constant 0 : index
    %c0_18 = arith.constant 0 : index
    %21 = vector.load %arg9[%c0_17, %c0_18] : memref<8x128xf32, #tpu.memory_space<vmem>>, vector<8x128xf32>
    tpu.vector_store %arg9[%c0_17, %c0_18], %20 {strides = array<i32>} : memref<8x128xf32, #tpu.memory_space<vmem>>, vector<8x128xf32>,
    return
  }
  func.func @transform_0(%arg0: i32) -> (i32, i32) {
    %c0_i32 = arith.constant 0 : i32
    %c0_i32_0 = arith.constant 0 : i32
    return %arg0, %c0_i32 : i32, i32
  }
  func.func @transform_1(%arg0: i32) -> (i32, i32) {
    %c0_i32 = arith.constant 0 : i32
    %c0_i32_0 = arith.constant 0 : i32
    %c0_i32_1 = arith.constant 0 : i32
    return %c0_i32, %c0_i32_0 : i32, i32
  }
  func.func @transform_2(%arg0: i32) -> (i32, i32) {
    %c0_i32 = arith.constant 0 : i32
    %c0_i32_0 = arith.constant 0 : i32
    %c0_i32_1 = arith.constant 0 : i32
    return %c0_i32, %c0_i32_0 : i32, i32
  }
  func.func @transform_3(%arg0: i32) -> (i32, i32) {
    %c0_i32 = arith.constant 0 : i32
    %c0_i32_0 = arith.constant 0 : i32
    %c0_i32_1 = arith.constant 0 : i32
    return %c0_i32, %c0_i32_0 : i32, i32
  }
  func.func @transform_4(%arg0: i32) -> (i32, i32) {
    %c0_i32 = arith.constant 0 : i32
    %c0_i32_0 = arith.constant 0 : i32
    %c0_i32_1 = arith.constant 0 : i32
    return %c0_i32, %c0_i32_0 : i32, i32
  }
  func.func @transform_5(%arg0: i32) -> (i32, i32) {
    %c0_i32 = arith.constant 0 : i32
    %c0_i32_0 = arith.constant 0 : i32
    return %arg0, %c0_i32 : i32, i32
  }
  func.func @transform_6(%arg0: i32) -> (i32, i32) {
    %c0_i32 = arith.constant 0 : i32
    %c0_i32_0 = arith.constant 0 : i32
    return %arg0, %c0_i32 : i32, i32
  }
  func.func @transform_7(%arg0: i32) -> (i32, i32) {
    %c0_i32 = arith.constant 0 : i32
    %c0_i32_0 = arith.constant 0 : i32
    return %arg0, %c0_i32 : i32, i32
  }
  func.func @transform_8(%arg0: i32) -> (i32, i32) {
    %c0_i32 = arith.constant 0 : i32
    %c0_i32_0 = arith.constant 0 : i32
    return %arg0, %c0_i32 : i32, i32
  }
}

module attributes {stable_mosaic.version = 11 : i64} {
  func.func @_encoder_block_kernel(%arg0: i32, %arg1: memref<1x8x128xf32, #tpu.memory_space<vmem>>, %arg2: memref<1x1x8xi32, #tpu.memory_space<vmem>>, %arg3: memref<128x384xbf16, #tpu.memory_space<vmem>>, %arg4: memref<1x384xf32, #tpu.memory_space<vmem>>, %arg5: memref<1x128xf32, #tpu.memory_space<vmem>>, %arg6: memref<1x128xf32, #tpu.memory_space<vmem>>, %arg7: memref<128x256xbf16, #tpu.memory_space<vmem>>, %arg8: memref<1x256xf32, #tpu.memory_space<vmem>>, %arg9: memref<256x128xbf16, #tpu.memory_space<vmem>>, %arg10: memref<1x128xf32, #tpu.memory_space<vmem>>, %arg11: memref<1x128xf32, #tpu.memory_space<vmem>>, %arg12: memref<1x128xf32, #tpu.memory_space<vmem>>, %arg13: memref<1x8x128xf32, #tpu.memory_space<vmem>>) attributes {dimension_semantics = [#tpu.dimension_semantics<parallel>], iteration_bounds = array<i64: 2>, scalar_prefetch = 0 : i64, scratch_operands = 0 : i64, tpu.core_type = #tpu.core_type<tc>, window_params = [{transform_indices = @transform_0, window_bounds = array<i64: 1, 8, 128>}, {transform_indices = @transform_1, window_bounds = array<i64: 1, 1, 8>}, {pipeline_mode = #tpu.pipeline_mode<synchronous>, transform_indices = @transform_2, window_bounds = array<i64: 128, 384>}, {pipeline_mode = #tpu.pipeline_mode<synchronous>, transform_indices = @transform_3, window_bounds = array<i64: 1, 384>}, {pipeline_mode = #tpu.pipeline_mode<synchronous>, transform_indices = @transform_4, window_bounds = array<i64: 1, 128>}, {pipeline_mode = #tpu.pipeline_mode<synchronous>, transform_indices = @transform_5, window_bounds = array<i64: 1, 128>}, {pipeline_mode = #tpu.pipeline_mode<synchronous>, transform_indices = @transform_6, window_bounds = array<i64: 128, 256>}, {pipeline_mode = #tpu.pipeline_mode<synchronous>, transform_indices = @transform_7, window_bounds = array<i64: 1, 256>}, {pipeline_mode = #tpu.pipeline_mode<synchronous>, transform_indices = @transform_8, window_bounds = array<i64: 256, 128>}, {pipeline_mode = #tpu.pipeline_mode<synchronous>, transform_indices = @transform_9, window_bounds = array<i64: 1, 128>}, {pipeline_mode = #tpu.pipeline_mode<synchronous>, transform_indices = @transform_10, window_bounds = array<i64: 1, 128>}, {pipeline_mode = #tpu.pipeline_mode<synchronous>, transform_indices = @transform_11, window_bounds = array<i64: 1, 128>}, {transform_indices = @transform_12, window_bounds = array<i64: 1, 8, 128>}]} {
    %c0 = arith.constant 0 : index
    %c0_0 = arith.constant 0 : index
    %c0_1 = arith.constant 0 : index
    %0 = vector.load %arg1[%c0, %c0_0, %c0_1] : memref<1x8x128xf32, #tpu.memory_space<vmem>>, vector<1x8x128xf32>
    %1 = vector.shape_cast %0 : vector<1x8x128xf32> to vector<8x128xf32>
    %c0_2 = arith.constant 0 : index
    %c0_3 = arith.constant 0 : index
    %2 = vector.load %arg3[%c0_2, %c0_3] : memref<128x384xbf16, #tpu.memory_space<vmem>>, vector<128x384xbf16>
    %3 = arith.truncf %1 : vector<8x128xf32> to vector<8x128xbf16>
    %cst = arith.constant dense<0.000000e+00> : vector<8x384xf32>
    %4 = tpu.matmul %3, %2, %cst {dimension_numbers = #tpu.dot_dimension_numbers<[1], [0], [0], [1], [0, 0, 1, 1], [], []>} : vector<8x128xbf16>, vector<128x384xbf16>, vector<8x384xf32> -> vector<8x384xf32>
    %c0_4 = arith.constant 0 : index
    %c0_5 = arith.constant 0 : index
    %5 = vector.load %arg4[%c0_4, %c0_5] : memref<1x384xf32, #tpu.memory_space<vmem>>, vector<1x384xf32>
    %6 = vector.broadcast %5 : vector<1x384xf32> to vector<8x384xf32>
    %7 = arith.addf %4, %6 : vector<8x384xf32>
    %cst_6 = arith.constant 0.000000e+00 : f32
    %8 = vector.broadcast %cst_6 : f32 to vector<8x384xf32>
    %9 = arith.maximumf %7, %8 : vector<8x384xf32>
    %10 = vector.extract_strided_slice %9 {offsets = [0, 0], sizes = [8, 128], strides = [1, 1]} : vector<8x384xf32> to vector<8x128xf32>
    %cst_7 = arith.constant 1.250000e-01 : f32
    %11 = vector.broadcast %cst_7 : f32 to vector<8x128xf32>
    %12 = arith.mulf %10, %11 : vector<8x128xf32>
    %13 = vector.extract_strided_slice %9 {offsets = [0, 128], sizes = [8, 128], strides = [1, 1]} : vector<8x384xf32> to vector<8x128xf32>
    %14 = vector.extract_strided_slice %9 {offsets = [0, 256], sizes = [8, 128], strides = [1, 1]} : vector<8x384xf32> to vector<8x128xf32>
    %15 = tpu.iota {dimensions = array<i32: 0>} : vector<8x8xi32>
    %16 = tpu.iota {dimensions = array<i32: 1>} : vector<8x8xi32>
    %17 = arith.cmpi sgt, %16, %15 : vector<8x8xi32>
    %cst_8 = arith.constant -4.2949673E+9 : f32
    %cst_9 = arith.constant 0.000000e+00 : f32
    %18 = vector.broadcast %cst_8 : f32 to vector<8x8xf32>
    %19 = vector.broadcast %cst_9 : f32 to vector<8x8xf32>
    %20 = arith.select %17, %18, %19 : vector<8x8xi1>, vector<8x8xf32>
    %c0_10 = arith.constant 0 : index
    %c0_11 = arith.constant 0 : index
    %c0_12 = arith.constant 0 : index
    %21 = vector.load %arg2[%c0_10, %c0_11, %c0_12] : memref<1x1x8xi32, #tpu.memory_space<vmem>>, vector<1x1x8xi32>
    %22 = vector.shape_cast %21 : vector<1x1x8xi32> to vector<1x8xi32>
    %c0_i32 = arith.constant 0 : i32
    %23 = vector.broadcast %c0_i32 : i32 to vector<1x8xi32>
    %24 = arith.cmpi ne, %22, %23 : vector<1x8xi32>
    %25 = vector.extract_strided_slice %12 {offsets = [0, 0], sizes = [8, 64], strides = [1, 1]} : vector<8x128xf32> to vector<8x64xf32>
    %26 = vector.extract_strided_slice %13 {offsets = [0, 0], sizes = [8, 64], strides = [1, 1]} : vector<8x128xf32> to vector<8x64xf32>
    %27 = vector.extract_strided_slice %14 {offsets = [0, 0], sizes = [8, 64], strides = [1, 1]} : vector<8x128xf32> to vector<8x64xf32>
    %cst_13 = arith.constant dense<0.000000e+00> : vector<8x8xf32>
    %28 = tpu.matmul %25, %26, %cst_13 {dimension_numbers = #tpu.dot_dimension_numbers<[1], [1], [0], [0], [0, 0, 1, 0], [], []>} : vector<8x64xf32>, vector<8x64xf32>, vector<8x8xf32> -> vector<8x8xf32>
    %29 = arith.addf %28, %20 : vector<8x8xf32>
    %cst_14 = arith.constant -1.000000e+09 : f32
    %30 = vector.shape_cast %24 : vector<1x8xi1> to vector<1x8xi1>
    %31 = vector.broadcast %30 : vector<1x8xi1> to vector<8x8xi1>
    %32 = vector.broadcast %cst_14 : f32 to vector<8x8xf32>
    %33 = arith.select %31, %32, %29 : vector<8x8xi1>, vector<8x8xf32>
    %cst_15 = arith.constant dense<0xFF800000> : vector<8xf32>
    %34 = vector.multi_reduction <maximumf>, %33, %cst_15 [1] : vector<8x8xf32> to vector<8xf32>
    %35 = vector.shape_cast %34 : vector<8xf32> to vector<8x1xf32>
    %36 = vector.broadcast %35 : vector<8x1xf32> to vector<8x8xf32>
    %37 = arith.subf %33, %36 : vector<8x8xf32>
    %38 = math.exp %37 : vector<8x8xf32>
    %cst_16 = arith.constant dense<0.000000e+00> : vector<8xf32>
    %39 = vector.multi_reduction <add>, %38, %cst_16 [1] : vector<8x8xf32> to vector<8xf32>
    %40 = vector.shape_cast %39 : vector<8xf32> to vector<8x1xf32>
    %41 = tpu.reciprocal %40 {approx = true} : vector<8x1xf32> -> vector<8x1xf32>
    %42 = vector.broadcast %41 : vector<8x1xf32> to vector<8x8xf32>
    %43 = arith.mulf %38, %42 : vector<8x8xf32>
    %cst_17 = arith.constant dense<0.000000e+00> : vector<8x64xf32>
    %44 = tpu.matmul %43, %27, %cst_17 {dimension_numbers = #tpu.dot_dimension_numbers<[1], [0], [0], [1], [0, 0, 1, 1], [], []>} : vector<8x8xf32>, vector<8x64xf32>, vector<8x64xf32> -> vector<8x64xf32>
    %45 = vector.extract_strided_slice %12 {offsets = [0, 64], sizes = [8, 64], strides = [1, 1]} : vector<8x128xf32> to vector<8x64xf32>
    %46 = vector.extract_strided_slice %13 {offsets = [0, 64], sizes = [8, 64], strides = [1, 1]} : vector<8x128xf32> to vector<8x64xf32>
    %47 = vector.extract_strided_slice %14 {offsets = [0, 64], sizes = [8, 64], strides = [1, 1]} : vector<8x128xf32> to vector<8x64xf32>
    %cst_18 = arith.constant dense<0.000000e+00> : vector<8x8xf32>
    %48 = tpu.matmul %45, %46, %cst_18 {dimension_numbers = #tpu.dot_dimension_numbers<[1], [1], [0], [0], [0, 0, 1, 0], [], []>} : vector<8x64xf32>, vector<8x64xf32>, vector<8x8xf32> -> vector<8x8xf32>
    %49 = arith.addf %48, %20 : vector<8x8xf32>
    %cst_19 = arith.constant -1.000000e+09 : f32
    %50 = vector.shape_cast %24 : vector<1x8xi1> to vector<1x8xi1>
    %51 = vector.broadcast %50 : vector<1x8xi1> to vector<8x8xi1>
    %52 = vector.broadcast %cst_19 : f32 to vector<8x8xf32>
    %53 = arith.select %51, %52, %49 : vector<8x8xi1>, vector<8x8xf32>
    %cst_20 = arith.constant dense<0xFF800000> : vector<8xf32>
    %54 = vector.multi_reduction <maximumf>, %53, %cst_20 [1] : vector<8x8xf32> to vector<8xf32>
    %55 = vector.shape_cast %54 : vector<8xf32> to vector<8x1xf32>
    %56 = vector.broadcast %55 : vector<8x1xf32> to vector<8x8xf32>
    %57 = arith.subf %53, %56 : vector<8x8xf32>
    %58 = math.exp %57 : vector<8x8xf32>
    %cst_21 = arith.constant dense<0.000000e+00> : vector<8xf32>
    %59 = vector.multi_reduction <add>, %58, %cst_21 [1] : vector<8x8xf32> to vector<8xf32>
    %60 = vector.shape_cast %59 : vector<8xf32> to vector<8x1xf32>
    %61 = tpu.reciprocal %60 {approx = true} : vector<8x1xf32> -> vector<8x1xf32>
    %62 = vector.broadcast %61 : vector<8x1xf32> to vector<8x8xf32>
    %63 = arith.mulf %58, %62 : vector<8x8xf32>
    %cst_22 = arith.constant dense<0.000000e+00> : vector<8x64xf32>
    %64 = tpu.matmul %63, %47, %cst_22 {dimension_numbers = #tpu.dot_dimension_numbers<[1], [0], [0], [1], [0, 0, 1, 1], [], []>} : vector<8x8xf32>, vector<8x64xf32>, vector<8x64xf32> -> vector<8x64xf32>
    %65 = tpu.concatenate %44, %64 in 1 : vector<8x64xf32>, vector<8x64xf32> -> vector<8x128xf32>
    %66 = arith.addf %65, %1 : vector<8x128xf32>
    %c0_23 = arith.constant 0 : index
    %c0_24 = arith.constant 0 : index
    %67 = vector.load %arg5[%c0_23, %c0_24] : memref<1x128xf32, #tpu.memory_space<vmem>>, vector<1x128xf32>
    %c0_25 = arith.constant 0 : index
    %c0_26 = arith.constant 0 : index
    %68 = vector.load %arg6[%c0_25, %c0_26] : memref<1x128xf32, #tpu.memory_space<vmem>>, vector<1x128xf32>
    %cst_27 = arith.constant dense<0.000000e+00> : vector<8xf32>
    %69 = vector.multi_reduction <add>, %66, %cst_27 [1] : vector<8x128xf32> to vector<8xf32>
    %70 = vector.shape_cast %69 : vector<8xf32> to vector<8x1xf32>
    %cst_28 = arith.constant 1.280000e+02 : f32
    %71 = vector.broadcast %cst_28 : f32 to vector<8x1xf32>
    %72 = arith.divf %70, %71 : vector<8x1xf32>
    %73 = vector.broadcast %72 : vector<8x1xf32> to vector<8x128xf32>
    %74 = arith.subf %66, %73 : vector<8x128xf32>
    %75 = arith.mulf %74, %74 : vector<8x128xf32>
    %cst_29 = arith.constant dense<0.000000e+00> : vector<8xf32>
    %76 = vector.multi_reduction <add>, %75, %cst_29 [1] : vector<8x128xf32> to vector<8xf32>
    %77 = vector.shape_cast %76 : vector<8xf32> to vector<8x1xf32>
    %cst_30 = arith.constant 1.280000e+02 : f32
    %78 = vector.broadcast %cst_30 : f32 to vector<8x1xf32>
    %79 = arith.divf %77, %78 : vector<8x1xf32>
    %cst_31 = arith.constant 9.99999974E-6 : f32
    %80 = vector.broadcast %cst_31 : f32 to vector<8x1xf32>
    %81 = arith.addf %79, %80 : vector<8x1xf32>
    %82 = math.rsqrt %81 : vector<8x1xf32>
    %83 = vector.broadcast %82 : vector<8x1xf32> to vector<8x128xf32>
    %84 = arith.mulf %74, %83 : vector<8x128xf32>
    %85 = vector.broadcast %67 : vector<1x128xf32> to vector<8x128xf32>
    %86 = arith.mulf %84, %85 : vector<8x128xf32>
    %87 = vector.broadcast %68 : vector<1x128xf32> to vector<8x128xf32>
    %88 = arith.addf %86, %87 : vector<8x128xf32>
    %c0_32 = arith.constant 0 : index
    %c0_33 = arith.constant 0 : index
    %89 = vector.load %arg7[%c0_32, %c0_33] : memref<128x256xbf16, #tpu.memory_space<vmem>>, vector<128x256xbf16>
    %90 = arith.truncf %88 : vector<8x128xf32> to vector<8x128xbf16>
    %cst_34 = arith.constant dense<0.000000e+00> : vector<8x256xf32>
    %91 = tpu.matmul %90, %89, %cst_34 {dimension_numbers = #tpu.dot_dimension_numbers<[1], [0], [0], [1], [0, 0, 1, 1], [], []>} : vector<8x128xbf16>, vector<128x256xbf16>, vector<8x256xf32> -> vector<8x256xf32>
    %c0_35 = arith.constant 0 : index
    %c0_36 = arith.constant 0 : index
    %92 = vector.load %arg8[%c0_35, %c0_36] : memref<1x256xf32, #tpu.memory_space<vmem>>, vector<1x256xf32>
    %93 = vector.broadcast %92 : vector<1x256xf32> to vector<8x256xf32>
    %94 = arith.addf %91, %93 : vector<8x256xf32>
    %cst_37 = arith.constant 0.000000e+00 : f32
    %95 = vector.broadcast %cst_37 : f32 to vector<8x256xf32>
    %96 = arith.maximumf %94, %95 : vector<8x256xf32>
    %c0_38 = arith.constant 0 : index
    %c0_39 = arith.constant 0 : index
    %97 = vector.load %arg9[%c0_38, %c0_39] : memref<256x128xbf16, #tpu.memory_space<vmem>>, vector<256x128xbf16>
    %98 = arith.truncf %96 : vector<8x256xf32> to vector<8x256xbf16>
    %cst_40 = arith.constant dense<0.000000e+00> : vector<8x128xf32>
    %99 = tpu.matmul %98, %97, %cst_40 {dimension_numbers = #tpu.dot_dimension_numbers<[1], [0], [0], [1], [0, 0, 1, 1], [], []>} : vector<8x256xbf16>, vector<256x128xbf16>, vector<8x128xf32> -> vector<8x128xf32>
    %c0_41 = arith.constant 0 : index
    %c0_42 = arith.constant 0 : index
    %100 = vector.load %arg10[%c0_41, %c0_42] : memref<1x128xf32, #tpu.memory_space<vmem>>, vector<1x128xf32>
    %101 = vector.broadcast %100 : vector<1x128xf32> to vector<8x128xf32>
    %102 = arith.addf %99, %101 : vector<8x128xf32>
    %103 = arith.addf %102, %88 : vector<8x128xf32>
    %c0_43 = arith.constant 0 : index
    %c0_44 = arith.constant 0 : index
    %104 = vector.load %arg11[%c0_43, %c0_44] : memref<1x128xf32, #tpu.memory_space<vmem>>, vector<1x128xf32>
    %c0_45 = arith.constant 0 : index
    %c0_46 = arith.constant 0 : index
    %105 = vector.load %arg12[%c0_45, %c0_46] : memref<1x128xf32, #tpu.memory_space<vmem>>, vector<1x128xf32>
    %cst_47 = arith.constant dense<0.000000e+00> : vector<8xf32>
    %106 = vector.multi_reduction <add>, %103, %cst_47 [1] : vector<8x128xf32> to vector<8xf32>
    %107 = vector.shape_cast %106 : vector<8xf32> to vector<8x1xf32>
    %cst_48 = arith.constant 1.280000e+02 : f32
    %108 = vector.broadcast %cst_48 : f32 to vector<8x1xf32>
    %109 = arith.divf %107, %108 : vector<8x1xf32>
    %110 = vector.broadcast %109 : vector<8x1xf32> to vector<8x128xf32>
    %111 = arith.subf %103, %110 : vector<8x128xf32>
    %112 = arith.mulf %111, %111 : vector<8x128xf32>
    %cst_49 = arith.constant dense<0.000000e+00> : vector<8xf32>
    %113 = vector.multi_reduction <add>, %112, %cst_49 [1] : vector<8x128xf32> to vector<8xf32>
    %114 = vector.shape_cast %113 : vector<8xf32> to vector<8x1xf32>
    %cst_50 = arith.constant 1.280000e+02 : f32
    %115 = vector.broadcast %cst_50 : f32 to vector<8x1xf32>
    %116 = arith.divf %114, %115 : vector<8x1xf32>
    %cst_51 = arith.constant 9.99999974E-6 : f32
    %117 = vector.broadcast %cst_51 : f32 to vector<8x1xf32>
    %118 = arith.addf %116, %117 : vector<8x1xf32>
    %119 = math.rsqrt %118 : vector<8x1xf32>
    %120 = vector.broadcast %119 : vector<8x1xf32> to vector<8x128xf32>
    %121 = arith.mulf %111, %120 : vector<8x128xf32>
    %122 = vector.broadcast %104 : vector<1x128xf32> to vector<8x128xf32>
    %123 = arith.mulf %121, %122 : vector<8x128xf32>
    %124 = vector.broadcast %105 : vector<1x128xf32> to vector<8x128xf32>
    %125 = arith.addf %123, %124 : vector<8x128xf32>
    %c0_52 = arith.constant 0 : index
    %c0_53 = arith.constant 0 : index
    %c0_54 = arith.constant 0 : index
    %126 = vector.load %arg13[%c0_52, %c0_53, %c0_54] : memref<1x8x128xf32, #tpu.memory_space<vmem>>, vector<1x8x128xf32>
    %127 = vector.shape_cast %126 : vector<1x8x128xf32> to vector<8x128xf32>
    %128 = vector.shape_cast %125 : vector<8x128xf32> to vector<1x8x128xf32>
    tpu.vector_store %arg13[%c0_52, %c0_53, %c0_54], %128 {strides = array<i32>} : memref<1x8x128xf32, #tpu.memory_space<vmem>>, vector<1x8x128xf32>,
    return
  }
  func.func @transform_0(%arg0: i32) -> (i32, i32, i32) {
    %c0_i32 = arith.constant 0 : i32
    %c0_i32_0 = arith.constant 0 : i32
    %c0_i32_1 = arith.constant 0 : i32
    return %arg0, %c0_i32, %c0_i32_0 : i32, i32, i32
  }
  func.func @transform_1(%arg0: i32) -> (i32, i32, i32) {
    %c0_i32 = arith.constant 0 : i32
    %c0_i32_0 = arith.constant 0 : i32
    %c0_i32_1 = arith.constant 0 : i32
    return %arg0, %c0_i32, %c0_i32_0 : i32, i32, i32
  }
  func.func @transform_2(%arg0: i32) -> (i32, i32) {
    %c0_i32 = arith.constant 0 : i32
    %c0_i32_0 = arith.constant 0 : i32
    %c0_i32_1 = arith.constant 0 : i32
    return %c0_i32, %c0_i32_0 : i32, i32
  }
  func.func @transform_3(%arg0: i32) -> (i32, i32) {
    %c0_i32 = arith.constant 0 : i32
    %c0_i32_0 = arith.constant 0 : i32
    %c0_i32_1 = arith.constant 0 : i32
    return %c0_i32, %c0_i32_0 : i32, i32
  }
  func.func @transform_4(%arg0: i32) -> (i32, i32) {
    %c0_i32 = arith.constant 0 : i32
    %c0_i32_0 = arith.constant 0 : i32
    %c0_i32_1 = arith.constant 0 : i32
    return %c0_i32, %c0_i32_0 : i32, i32
  }
  func.func @transform_5(%arg0: i32) -> (i32, i32) {
    %c0_i32 = arith.constant 0 : i32
    %c0_i32_0 = arith.constant 0 : i32
    %c0_i32_1 = arith.constant 0 : i32
    return %c0_i32, %c0_i32_0 : i32, i32
  }
  func.func @transform_6(%arg0: i32) -> (i32, i32) {
    %c0_i32 = arith.constant 0 : i32
    %c0_i32_0 = arith.constant 0 : i32
    %c0_i32_1 = arith.constant 0 : i32
    return %c0_i32, %c0_i32_0 : i32, i32
  }
  func.func @transform_7(%arg0: i32) -> (i32, i32) {
    %c0_i32 = arith.constant 0 : i32
    %c0_i32_0 = arith.constant 0 : i32
    %c0_i32_1 = arith.constant 0 : i32
    return %c0_i32, %c0_i32_0 : i32, i32
  }
  func.func @transform_8(%arg0: i32) -> (i32, i32) {
    %c0_i32 = arith.constant 0 : i32
    %c0_i32_0 = arith.constant 0 : i32
    %c0_i32_1 = arith.constant 0 : i32
    return %c0_i32, %c0_i32_0 : i32, i32
  }
  func.func @transform_9(%arg0: i32) -> (i32, i32) {
    %c0_i32 = arith.constant 0 : i32
    %c0_i32_0 = arith.constant 0 : i32
    %c0_i32_1 = arith.constant 0 : i32
    return %c0_i32, %c0_i32_0 : i32, i32
  }
  func.func @transform_10(%arg0: i32) -> (i32, i32) {
    %c0_i32 = arith.constant 0 : i32
    %c0_i32_0 = arith.constant 0 : i32
    %c0_i32_1 = arith.constant 0 : i32
    return %c0_i32, %c0_i32_0 : i32, i32
  }
  func.func @transform_11(%arg0: i32) -> (i32, i32) {
    %c0_i32 = arith.constant 0 : i32
    %c0_i32_0 = arith.constant 0 : i32
    %c0_i32_1 = arith.constant 0 : i32
    return %c0_i32, %c0_i32_0 : i32, i32
  }
  func.func @transform_12(%arg0: i32) -> (i32, i32, i32) {
    %c0_i32 = arith.constant 0 : i32
    %c0_i32_0 = arith.constant 0 : i32
    %c0_i32_1 = arith.constant 0 : i32
    return %arg0, %c0_i32, %c0_i32_0 : i32, i32, i32
  }
}

module attributes {stable_mosaic.version = 11 : i64} {
  func.func @_decoder_kernel(%arg0: i32, %arg1: memref<8x130xf32, #tpu.memory_space<vmem>>, %arg2: memref<130x128xf32, #tpu.memory_space<vmem>>, %arg3: memref<1x128xf32, #tpu.memory_space<vmem>>, %arg4: memref<128x256xbf16, #tpu.memory_space<vmem>>, %arg5: memref<1x256xf32, #tpu.memory_space<vmem>>, %arg6: memref<256x128xbf16, #tpu.memory_space<vmem>>, %arg7: memref<1x128xf32, #tpu.memory_space<vmem>>, %arg8: memref<1x128xf32, #tpu.memory_space<vmem>>, %arg9: memref<1x128xf32, #tpu.memory_space<vmem>>, %arg10: memref<128x256xbf16, #tpu.memory_space<vmem>>, %arg11: memref<1x256xf32, #tpu.memory_space<vmem>>, %arg12: memref<256x128xbf16, #tpu.memory_space<vmem>>, %arg13: memref<1x128xf32, #tpu.memory_space<vmem>>, %arg14: memref<1x128xf32, #tpu.memory_space<vmem>>, %arg15: memref<1x128xf32, #tpu.memory_space<vmem>>, %arg16: memref<128x256xbf16, #tpu.memory_space<vmem>>, %arg17: memref<1x256xf32, #tpu.memory_space<vmem>>, %arg18: memref<8x128xf32, #tpu.memory_space<vmem>>, %arg19: memref<8x256xf32, #tpu.memory_space<vmem>>) attributes {dimension_semantics = [#tpu.dimension_semantics<parallel>], iteration_bounds = array<i64: 2>, scalar_prefetch = 0 : i64, scratch_operands = 0 : i64, tpu.core_type = #tpu.core_type<tc>, window_params = [{transform_indices = @transform_0, window_bounds = array<i64: 8, 130>}, {pipeline_mode = #tpu.pipeline_mode<synchronous>, transform_indices = @transform_1, window_bounds = array<i64: 130, 128>}, {pipeline_mode = #tpu.pipeline_mode<synchronous>, transform_indices = @transform_2, window_bounds = array<i64: 1, 128>}, {pipeline_mode = #tpu.pipeline_mode<synchronous>, transform_indices = @transform_3, window_bounds = array<i64: 128, 256>}, {pipeline_mode = #tpu.pipeline_mode<synchronous>, transform_indices = @transform_4, window_bounds = array<i64: 1, 256>}, {pipeline_mode = #tpu.pipeline_mode<synchronous>, transform_indices = @transform_5, window_bounds = array<i64: 256, 128>}, {pipeline_mode = #tpu.pipeline_mode<synchronous>, transform_indices = @transform_6, window_bounds = array<i64: 1, 128>}, {pipeline_mode = #tpu.pipeline_mode<synchronous>, transform_indices = @transform_7, window_bounds = array<i64: 1, 128>}, {pipeline_mode = #tpu.pipeline_mode<synchronous>, transform_indices = @transform_8, window_bounds = array<i64: 1, 128>}, {pipeline_mode = #tpu.pipeline_mode<synchronous>, transform_indices = @transform_9, window_bounds = array<i64: 128, 256>}, {pipeline_mode = #tpu.pipeline_mode<synchronous>, transform_indices = @transform_10, window_bounds = array<i64: 1, 256>}, {pipeline_mode = #tpu.pipeline_mode<synchronous>, transform_indices = @transform_11, window_bounds = array<i64: 256, 128>}, {pipeline_mode = #tpu.pipeline_mode<synchronous>, transform_indices = @transform_12, window_bounds = array<i64: 1, 128>}, {pipeline_mode = #tpu.pipeline_mode<synchronous>, transform_indices = @transform_13, window_bounds = array<i64: 1, 128>}, {pipeline_mode = #tpu.pipeline_mode<synchronous>, transform_indices = @transform_14, window_bounds = array<i64: 1, 128>}, {pipeline_mode = #tpu.pipeline_mode<synchronous>, transform_indices = @transform_15, window_bounds = array<i64: 128, 256>}, {pipeline_mode = #tpu.pipeline_mode<synchronous>, transform_indices = @transform_16, window_bounds = array<i64: 1, 256>}, {transform_indices = @transform_17, window_bounds = array<i64: 8, 128>}, {transform_indices = @transform_18, window_bounds = array<i64: 8, 256>}]} {
    %c0 = arith.constant 0 : index
    %c0_0 = arith.constant 0 : index
    %0 = vector.load %arg1[%c0, %c0_0] : memref<8x130xf32, #tpu.memory_space<vmem>>, vector<8x130xf32>
    %c0_1 = arith.constant 0 : index
    %c0_2 = arith.constant 0 : index
    %1 = vector.load %arg2[%c0_1, %c0_2] : memref<130x128xf32, #tpu.memory_space<vmem>>, vector<130x128xf32>
    %cst = arith.constant dense<0.000000e+00> : vector<8x128xf32>
    %2 = tpu.matmul %0, %1, %cst {dimension_numbers = #tpu.dot_dimension_numbers<[1], [0], [0], [1], [0, 0, 1, 1], [], []>} : vector<8x130xf32>, vector<130x128xf32>, vector<8x128xf32> -> vector<8x128xf32>
    %c0_3 = arith.constant 0 : index
    %c0_4 = arith.constant 0 : index
    %3 = vector.load %arg3[%c0_3, %c0_4] : memref<1x128xf32, #tpu.memory_space<vmem>>, vector<1x128xf32>
    %4 = vector.broadcast %3 : vector<1x128xf32> to vector<8x128xf32>
    %5 = arith.addf %2, %4 : vector<8x128xf32>
    %c0_5 = arith.constant 0 : index
    %c0_6 = arith.constant 0 : index
    %6 = vector.load %arg4[%c0_5, %c0_6] : memref<128x256xbf16, #tpu.memory_space<vmem>>, vector<128x256xbf16>
    %7 = arith.truncf %5 : vector<8x128xf32> to vector<8x128xbf16>
    %cst_7 = arith.constant dense<0.000000e+00> : vector<8x256xf32>
    %8 = tpu.matmul %7, %6, %cst_7 {dimension_numbers = #tpu.dot_dimension_numbers<[1], [0], [0], [1], [0, 0, 1, 1], [], []>} : vector<8x128xbf16>, vector<128x256xbf16>, vector<8x256xf32> -> vector<8x256xf32>
    %c0_8 = arith.constant 0 : index
    %c0_9 = arith.constant 0 : index
    %9 = vector.load %arg5[%c0_8, %c0_9] : memref<1x256xf32, #tpu.memory_space<vmem>>, vector<1x256xf32>
    %10 = vector.broadcast %9 : vector<1x256xf32> to vector<8x256xf32>
    %11 = arith.addf %8, %10 : vector<8x256xf32>
    %cst_10 = arith.constant 0.000000e+00 : f32
    %12 = vector.broadcast %cst_10 : f32 to vector<8x256xf32>
    %13 = arith.maximumf %11, %12 : vector<8x256xf32>
    %c0_11 = arith.constant 0 : index
    %c0_12 = arith.constant 0 : index
    %14 = vector.load %arg6[%c0_11, %c0_12] : memref<256x128xbf16, #tpu.memory_space<vmem>>, vector<256x128xbf16>
    %15 = arith.truncf %13 : vector<8x256xf32> to vector<8x256xbf16>
    %cst_13 = arith.constant dense<0.000000e+00> : vector<8x128xf32>
    %16 = tpu.matmul %15, %14, %cst_13 {dimension_numbers = #tpu.dot_dimension_numbers<[1], [0], [0], [1], [0, 0, 1, 1], [], []>} : vector<8x256xbf16>, vector<256x128xbf16>, vector<8x128xf32> -> vector<8x128xf32>
    %c0_14 = arith.constant 0 : index
    %c0_15 = arith.constant 0 : index
    %17 = vector.load %arg7[%c0_14, %c0_15] : memref<1x128xf32, #tpu.memory_space<vmem>>, vector<1x128xf32>
    %18 = vector.broadcast %17 : vector<1x128xf32> to vector<8x128xf32>
    %19 = arith.addf %16, %18 : vector<8x128xf32>
    %20 = arith.addf %19, %5 : vector<8x128xf32>
    %c0_16 = arith.constant 0 : index
    %c0_17 = arith.constant 0 : index
    %21 = vector.load %arg8[%c0_16, %c0_17] : memref<1x128xf32, #tpu.memory_space<vmem>>, vector<1x128xf32>
    %c0_18 = arith.constant 0 : index
    %c0_19 = arith.constant 0 : index
    %22 = vector.load %arg9[%c0_18, %c0_19] : memref<1x128xf32, #tpu.memory_space<vmem>>, vector<1x128xf32>
    %cst_20 = arith.constant dense<0.000000e+00> : vector<8xf32>
    %23 = vector.multi_reduction <add>, %20, %cst_20 [1] : vector<8x128xf32> to vector<8xf32>
    %24 = vector.shape_cast %23 : vector<8xf32> to vector<8x1xf32>
    %cst_21 = arith.constant 1.280000e+02 : f32
    %25 = vector.broadcast %cst_21 : f32 to vector<8x1xf32>
    %26 = arith.divf %24, %25 : vector<8x1xf32>
    %27 = vector.broadcast %26 : vector<8x1xf32> to vector<8x128xf32>
    %28 = arith.subf %20, %27 : vector<8x128xf32>
    %29 = arith.mulf %28, %28 : vector<8x128xf32>
    %cst_22 = arith.constant dense<0.000000e+00> : vector<8xf32>
    %30 = vector.multi_reduction <add>, %29, %cst_22 [1] : vector<8x128xf32> to vector<8xf32>
    %31 = vector.shape_cast %30 : vector<8xf32> to vector<8x1xf32>
    %cst_23 = arith.constant 1.280000e+02 : f32
    %32 = vector.broadcast %cst_23 : f32 to vector<8x1xf32>
    %33 = arith.divf %31, %32 : vector<8x1xf32>
    %cst_24 = arith.constant 9.99999974E-6 : f32
    %34 = vector.broadcast %cst_24 : f32 to vector<8x1xf32>
    %35 = arith.addf %33, %34 : vector<8x1xf32>
    %36 = math.rsqrt %35 : vector<8x1xf32>
    %37 = vector.broadcast %36 : vector<8x1xf32> to vector<8x128xf32>
    %38 = arith.mulf %28, %37 : vector<8x128xf32>
    %39 = vector.broadcast %21 : vector<1x128xf32> to vector<8x128xf32>
    %40 = arith.mulf %38, %39 : vector<8x128xf32>
    %41 = vector.broadcast %22 : vector<1x128xf32> to vector<8x128xf32>
    %42 = arith.addf %40, %41 : vector<8x128xf32>
    %c0_25 = arith.constant 0 : index
    %c0_26 = arith.constant 0 : index
    %43 = vector.load %arg10[%c0_25, %c0_26] : memref<128x256xbf16, #tpu.memory_space<vmem>>, vector<128x256xbf16>
    %44 = arith.truncf %42 : vector<8x128xf32> to vector<8x128xbf16>
    %cst_27 = arith.constant dense<0.000000e+00> : vector<8x256xf32>
    %45 = tpu.matmul %44, %43, %cst_27 {dimension_numbers = #tpu.dot_dimension_numbers<[1], [0], [0], [1], [0, 0, 1, 1], [], []>} : vector<8x128xbf16>, vector<128x256xbf16>, vector<8x256xf32> -> vector<8x256xf32>
    %c0_28 = arith.constant 0 : index
    %c0_29 = arith.constant 0 : index
    %46 = vector.load %arg11[%c0_28, %c0_29] : memref<1x256xf32, #tpu.memory_space<vmem>>, vector<1x256xf32>
    %47 = vector.broadcast %46 : vector<1x256xf32> to vector<8x256xf32>
    %48 = arith.addf %45, %47 : vector<8x256xf32>
    %cst_30 = arith.constant 0.000000e+00 : f32
    %49 = vector.broadcast %cst_30 : f32 to vector<8x256xf32>
    %50 = arith.maximumf %48, %49 : vector<8x256xf32>
    %c0_31 = arith.constant 0 : index
    %c0_32 = arith.constant 0 : index
    %51 = vector.load %arg12[%c0_31, %c0_32] : memref<256x128xbf16, #tpu.memory_space<vmem>>, vector<256x128xbf16>
    %52 = arith.truncf %50 : vector<8x256xf32> to vector<8x256xbf16>
    %cst_33 = arith.constant dense<0.000000e+00> : vector<8x128xf32>
    %53 = tpu.matmul %52, %51, %cst_33 {dimension_numbers = #tpu.dot_dimension_numbers<[1], [0], [0], [1], [0, 0, 1, 1], [], []>} : vector<8x256xbf16>, vector<256x128xbf16>, vector<8x128xf32> -> vector<8x128xf32>
    %c0_34 = arith.constant 0 : index
    %c0_35 = arith.constant 0 : index
    %54 = vector.load %arg13[%c0_34, %c0_35] : memref<1x128xf32, #tpu.memory_space<vmem>>, vector<1x128xf32>
    %55 = vector.broadcast %54 : vector<1x128xf32> to vector<8x128xf32>
    %56 = arith.addf %53, %55 : vector<8x128xf32>
    %57 = arith.addf %56, %42 : vector<8x128xf32>
    %c0_36 = arith.constant 0 : index
    %c0_37 = arith.constant 0 : index
    %58 = vector.load %arg14[%c0_36, %c0_37] : memref<1x128xf32, #tpu.memory_space<vmem>>, vector<1x128xf32>
    %c0_38 = arith.constant 0 : index
    %c0_39 = arith.constant 0 : index
    %59 = vector.load %arg15[%c0_38, %c0_39] : memref<1x128xf32, #tpu.memory_space<vmem>>, vector<1x128xf32>
    %cst_40 = arith.constant dense<0.000000e+00> : vector<8xf32>
    %60 = vector.multi_reduction <add>, %57, %cst_40 [1] : vector<8x128xf32> to vector<8xf32>
    %61 = vector.shape_cast %60 : vector<8xf32> to vector<8x1xf32>
    %cst_41 = arith.constant 1.280000e+02 : f32
    %62 = vector.broadcast %cst_41 : f32 to vector<8x1xf32>
    %63 = arith.divf %61, %62 : vector<8x1xf32>
    %64 = vector.broadcast %63 : vector<8x1xf32> to vector<8x128xf32>
    %65 = arith.subf %57, %64 : vector<8x128xf32>
    %66 = arith.mulf %65, %65 : vector<8x128xf32>
    %cst_42 = arith.constant dense<0.000000e+00> : vector<8xf32>
    %67 = vector.multi_reduction <add>, %66, %cst_42 [1] : vector<8x128xf32> to vector<8xf32>
    %68 = vector.shape_cast %67 : vector<8xf32> to vector<8x1xf32>
    %cst_43 = arith.constant 1.280000e+02 : f32
    %69 = vector.broadcast %cst_43 : f32 to vector<8x1xf32>
    %70 = arith.divf %68, %69 : vector<8x1xf32>
    %cst_44 = arith.constant 9.99999974E-6 : f32
    %71 = vector.broadcast %cst_44 : f32 to vector<8x1xf32>
    %72 = arith.addf %70, %71 : vector<8x1xf32>
    %73 = math.rsqrt %72 : vector<8x1xf32>
    %74 = vector.broadcast %73 : vector<8x1xf32> to vector<8x128xf32>
    %75 = arith.mulf %65, %74 : vector<8x128xf32>
    %76 = vector.broadcast %58 : vector<1x128xf32> to vector<8x128xf32>
    %77 = arith.mulf %75, %76 : vector<8x128xf32>
    %78 = vector.broadcast %59 : vector<1x128xf32> to vector<8x128xf32>
    %79 = arith.addf %77, %78 : vector<8x128xf32>
    %c0_45 = arith.constant 0 : index
    %c0_46 = arith.constant 0 : index
    %80 = vector.load %arg18[%c0_45, %c0_46] : memref<8x128xf32, #tpu.memory_space<vmem>>, vector<8x128xf32>
    tpu.vector_store %arg18[%c0_45, %c0_46], %79 {strides = array<i32>} : memref<8x128xf32, #tpu.memory_space<vmem>>, vector<8x128xf32>,
    %c0_47 = arith.constant 0 : index
    %c0_48 = arith.constant 0 : index
    %81 = vector.load %arg16[%c0_47, %c0_48] : memref<128x256xbf16, #tpu.memory_space<vmem>>, vector<128x256xbf16>
    %82 = arith.truncf %79 : vector<8x128xf32> to vector<8x128xbf16>
    %cst_49 = arith.constant dense<0.000000e+00> : vector<8x256xf32>
    %83 = tpu.matmul %82, %81, %cst_49 {dimension_numbers = #tpu.dot_dimension_numbers<[1], [0], [0], [1], [0, 0, 1, 1], [], []>} : vector<8x128xbf16>, vector<128x256xbf16>, vector<8x256xf32> -> vector<8x256xf32>
    %c0_50 = arith.constant 0 : index
    %c0_51 = arith.constant 0 : index
    %84 = vector.load %arg17[%c0_50, %c0_51] : memref<1x256xf32, #tpu.memory_space<vmem>>, vector<1x256xf32>
    %85 = vector.broadcast %84 : vector<1x256xf32> to vector<8x256xf32>
    %86 = arith.addf %83, %85 : vector<8x256xf32>
    %c0_52 = arith.constant 0 : index
    %c0_53 = arith.constant 0 : index
    %87 = vector.load %arg19[%c0_52, %c0_53] : memref<8x256xf32, #tpu.memory_space<vmem>>, vector<8x256xf32>
    tpu.vector_store %arg19[%c0_52, %c0_53], %86 {strides = array<i32>} : memref<8x256xf32, #tpu.memory_space<vmem>>, vector<8x256xf32>,
    return
  }
  func.func @transform_0(%arg0: i32) -> (i32, i32) {
    %c0_i32 = arith.constant 0 : i32
    %c0_i32_0 = arith.constant 0 : i32
    return %arg0, %c0_i32 : i32, i32
  }
  func.func @transform_1(%arg0: i32) -> (i32, i32) {
    %c0_i32 = arith.constant 0 : i32
    %c0_i32_0 = arith.constant 0 : i32
    %c0_i32_1 = arith.constant 0 : i32
    return %c0_i32, %c0_i32_0 : i32, i32
  }
  func.func @transform_2(%arg0: i32) -> (i32, i32) {
    %c0_i32 = arith.constant 0 : i32
    %c0_i32_0 = arith.constant 0 : i32
    %c0_i32_1 = arith.constant 0 : i32
    return %c0_i32, %c0_i32_0 : i32, i32
  }
  func.func @transform_3(%arg0: i32) -> (i32, i32) {
    %c0_i32 = arith.constant 0 : i32
    %c0_i32_0 = arith.constant 0 : i32
    %c0_i32_1 = arith.constant 0 : i32
    return %c0_i32, %c0_i32_0 : i32, i32
  }
  func.func @transform_4(%arg0: i32) -> (i32, i32) {
    %c0_i32 = arith.constant 0 : i32
    %c0_i32_0 = arith.constant 0 : i32
    %c0_i32_1 = arith.constant 0 : i32
    return %c0_i32, %c0_i32_0 : i32, i32
  }
  func.func @transform_5(%arg0: i32) -> (i32, i32) {
    %c0_i32 = arith.constant 0 : i32
    %c0_i32_0 = arith.constant 0 : i32
    %c0_i32_1 = arith.constant 0 : i32
    return %c0_i32, %c0_i32_0 : i32, i32
  }
  func.func @transform_6(%arg0: i32) -> (i32, i32) {
    %c0_i32 = arith.constant 0 : i32
    %c0_i32_0 = arith.constant 0 : i32
    %c0_i32_1 = arith.constant 0 : i32
    return %c0_i32, %c0_i32_0 : i32, i32
  }
  func.func @transform_7(%arg0: i32) -> (i32, i32) {
    %c0_i32 = arith.constant 0 : i32
    %c0_i32_0 = arith.constant 0 : i32
    %c0_i32_1 = arith.constant 0 : i32
    return %c0_i32, %c0_i32_0 : i32, i32
  }
  func.func @transform_8(%arg0: i32) -> (i32, i32) {
    %c0_i32 = arith.constant 0 : i32
    %c0_i32_0 = arith.constant 0 : i32
    %c0_i32_1 = arith.constant 0 : i32
    return %c0_i32, %c0_i32_0 : i32, i32
  }
  func.func @transform_9(%arg0: i32) -> (i32, i32) {
    %c0_i32 = arith.constant 0 : i32
    %c0_i32_0 = arith.constant 0 : i32
    %c0_i32_1 = arith.constant 0 : i32
    return %c0_i32, %c0_i32_0 : i32, i32
  }
  func.func @transform_10(%arg0: i32) -> (i32, i32) {
    %c0_i32 = arith.constant 0 : i32
    %c0_i32_0 = arith.constant 0 : i32
    %c0_i32_1 = arith.constant 0 : i32
    return %c0_i32, %c0_i32_0 : i32, i32
  }
  func.func @transform_11(%arg0: i32) -> (i32, i32) {
    %c0_i32 = arith.constant 0 : i32
    %c0_i32_0 = arith.constant 0 : i32
    %c0_i32_1 = arith.constant 0 : i32
    return %c0_i32, %c0_i32_0 : i32, i32
  }
  func.func @transform_12(%arg0: i32) -> (i32, i32) {
    %c0_i32 = arith.constant 0 : i32
    %c0_i32_0 = arith.constant 0 : i32
    %c0_i32_1 = arith.constant 0 : i32
    return %c0_i32, %c0_i32_0 : i32, i32
  }
  func.func @transform_13(%arg0: i32) -> (i32, i32) {
    %c0_i32 = arith.constant 0 : i32
    %c0_i32_0 = arith.constant 0 : i32
    %c0_i32_1 = arith.constant 0 : i32
    return %c0_i32, %c0_i32_0 : i32, i32
  }
  func.func @transform_14(%arg0: i32) -> (i32, i32) {
    %c0_i32 = arith.constant 0 : i32
    %c0_i32_0 = arith.constant 0 : i32
    %c0_i32_1 = arith.constant 0 : i32
    return %c0_i32, %c0_i32_0 : i32, i32
  }
  func.func @transform_15(%arg0: i32) -> (i32, i32) {
    %c0_i32 = arith.constant 0 : i32
    %c0_i32_0 = arith.constant 0 : i32
    %c0_i32_1 = arith.constant 0 : i32
    return %c0_i32, %c0_i32_0 : i32, i32
  }
  func.func @transform_16(%arg0: i32) -> (i32, i32) {
    %c0_i32 = arith.constant 0 : i32
    %c0_i32_0 = arith.constant 0 : i32
    %c0_i32_1 = arith.constant 0 : i32
    return %c0_i32, %c0_i32_0 : i32, i32
  }
  func.func @transform_17(%arg0: i32) -> (i32, i32) {
    %c0_i32 = arith.constant 0 : i32
    %c0_i32_0 = arith.constant 0 : i32
    return %arg0, %c0_i32 : i32, i32
  }
  func.func @transform_18(%arg0: i32) -> (i32, i32) {
    %c0_i32 = arith.constant 0 : i32
    %c0_i32_0 = arith.constant 0 : i32
    return %arg0, %c0_i32 : i32, i32
  }
}

module attributes {stable_mosaic.version = 11 : i64} {
  func.func @_disc_kernel(%arg0: i32, %arg1: memref<8x130xf32, #tpu.memory_space<vmem>>, %arg2: memref<130x256xf32, #tpu.memory_space<vmem>>, %arg3: memref<1x256xf32, #tpu.memory_space<vmem>>, %arg4: memref<256x512xbf16, #tpu.memory_space<vmem>>, %arg5: memref<1x512xf32, #tpu.memory_space<vmem>>, %arg6: memref<512x256xbf16, #tpu.memory_space<vmem>>, %arg7: memref<1x256xf32, #tpu.memory_space<vmem>>, %arg8: memref<256x128xbf16, #tpu.memory_space<vmem>>, %arg9: memref<1x128xf32, #tpu.memory_space<vmem>>, %arg10: memref<128x1xbf16, #tpu.memory_space<vmem>>, %arg11: memref<1x1xf32, #tpu.memory_space<vmem>>, %arg12: memref<8x1xf32, #tpu.memory_space<vmem>>) attributes {dimension_semantics = [#tpu.dimension_semantics<parallel>], iteration_bounds = array<i64: 4>, scalar_prefetch = 0 : i64, scratch_operands = 0 : i64, tpu.core_type = #tpu.core_type<tc>, window_params = [{transform_indices = @transform_0, window_bounds = array<i64: 8, 130>}, {pipeline_mode = #tpu.pipeline_mode<synchronous>, transform_indices = @transform_1, window_bounds = array<i64: 130, 256>}, {pipeline_mode = #tpu.pipeline_mode<synchronous>, transform_indices = @transform_2, window_bounds = array<i64: 1, 256>}, {pipeline_mode = #tpu.pipeline_mode<synchronous>, transform_indices = @transform_3, window_bounds = array<i64: 256, 512>}, {pipeline_mode = #tpu.pipeline_mode<synchronous>, transform_indices = @transform_4, window_bounds = array<i64: 1, 512>}, {pipeline_mode = #tpu.pipeline_mode<synchronous>, transform_indices = @transform_5, window_bounds = array<i64: 512, 256>}, {pipeline_mode = #tpu.pipeline_mode<synchronous>, transform_indices = @transform_6, window_bounds = array<i64: 1, 256>}, {pipeline_mode = #tpu.pipeline_mode<synchronous>, transform_indices = @transform_7, window_bounds = array<i64: 256, 128>}, {pipeline_mode = #tpu.pipeline_mode<synchronous>, transform_indices = @transform_8, window_bounds = array<i64: 1, 128>}, {pipeline_mode = #tpu.pipeline_mode<synchronous>, transform_indices = @transform_9, window_bounds = array<i64: 128, 1>}, {pipeline_mode = #tpu.pipeline_mode<synchronous>, transform_indices = @transform_10, window_bounds = array<i64: 1, 1>}, {transform_indices = @transform_11, window_bounds = array<i64: 8, 1>}]} {
    %c0 = arith.constant 0 : index
    %c0_0 = arith.constant 0 : index
    %0 = vector.load %arg1[%c0, %c0_0] : memref<8x130xf32, #tpu.memory_space<vmem>>, vector<8x130xf32>
    %c0_1 = arith.constant 0 : index
    %c0_2 = arith.constant 0 : index
    %1 = vector.load %arg2[%c0_1, %c0_2] : memref<130x256xf32, #tpu.memory_space<vmem>>, vector<130x256xf32>
    %cst = arith.constant dense<0.000000e+00> : vector<8x256xf32>
    %2 = tpu.matmul %0, %1, %cst {dimension_numbers = #tpu.dot_dimension_numbers<[1], [0], [0], [1], [0, 0, 1, 1], [], []>} : vector<8x130xf32>, vector<130x256xf32>, vector<8x256xf32> -> vector<8x256xf32>
    %c0_3 = arith.constant 0 : index
    %c0_4 = arith.constant 0 : index
    %3 = vector.load %arg3[%c0_3, %c0_4] : memref<1x256xf32, #tpu.memory_space<vmem>>, vector<1x256xf32>
    %4 = vector.broadcast %3 : vector<1x256xf32> to vector<8x256xf32>
    %5 = arith.addf %2, %4 : vector<8x256xf32>
    %cst_5 = arith.constant 0.000000e+00 : f32
    %6 = vector.broadcast %cst_5 : f32 to vector<8x256xf32>
    %7 = arith.maximumf %5, %6 : vector<8x256xf32>
    %c0_6 = arith.constant 0 : index
    %c0_7 = arith.constant 0 : index
    %8 = vector.load %arg4[%c0_6, %c0_7] : memref<256x512xbf16, #tpu.memory_space<vmem>>, vector<256x512xbf16>
    %9 = arith.truncf %7 : vector<8x256xf32> to vector<8x256xbf16>
    %cst_8 = arith.constant dense<0.000000e+00> : vector<8x512xf32>
    %10 = tpu.matmul %9, %8, %cst_8 {dimension_numbers = #tpu.dot_dimension_numbers<[1], [0], [0], [1], [0, 0, 1, 1], [], []>} : vector<8x256xbf16>, vector<256x512xbf16>, vector<8x512xf32> -> vector<8x512xf32>
    %c0_9 = arith.constant 0 : index
    %c0_10 = arith.constant 0 : index
    %11 = vector.load %arg5[%c0_9, %c0_10] : memref<1x512xf32, #tpu.memory_space<vmem>>, vector<1x512xf32>
    %12 = vector.broadcast %11 : vector<1x512xf32> to vector<8x512xf32>
    %13 = arith.addf %10, %12 : vector<8x512xf32>
    %cst_11 = arith.constant 0.000000e+00 : f32
    %14 = vector.broadcast %cst_11 : f32 to vector<8x512xf32>
    %15 = arith.maximumf %13, %14 : vector<8x512xf32>
    %c0_12 = arith.constant 0 : index
    %c0_13 = arith.constant 0 : index
    %16 = vector.load %arg6[%c0_12, %c0_13] : memref<512x256xbf16, #tpu.memory_space<vmem>>, vector<512x256xbf16>
    %17 = arith.truncf %15 : vector<8x512xf32> to vector<8x512xbf16>
    %cst_14 = arith.constant dense<0.000000e+00> : vector<8x256xf32>
    %18 = tpu.matmul %17, %16, %cst_14 {dimension_numbers = #tpu.dot_dimension_numbers<[1], [0], [0], [1], [0, 0, 1, 1], [], []>} : vector<8x512xbf16>, vector<512x256xbf16>, vector<8x256xf32> -> vector<8x256xf32>
    %c0_15 = arith.constant 0 : index
    %c0_16 = arith.constant 0 : index
    %19 = vector.load %arg7[%c0_15, %c0_16] : memref<1x256xf32, #tpu.memory_space<vmem>>, vector<1x256xf32>
    %20 = vector.broadcast %19 : vector<1x256xf32> to vector<8x256xf32>
    %21 = arith.addf %18, %20 : vector<8x256xf32>
    %cst_17 = arith.constant 0.000000e+00 : f32
    %22 = vector.broadcast %cst_17 : f32 to vector<8x256xf32>
    %23 = arith.maximumf %21, %22 : vector<8x256xf32>
    %c0_18 = arith.constant 0 : index
    %c0_19 = arith.constant 0 : index
    %24 = vector.load %arg8[%c0_18, %c0_19] : memref<256x128xbf16, #tpu.memory_space<vmem>>, vector<256x128xbf16>
    %25 = arith.truncf %23 : vector<8x256xf32> to vector<8x256xbf16>
    %cst_20 = arith.constant dense<0.000000e+00> : vector<8x128xf32>
    %26 = tpu.matmul %25, %24, %cst_20 {dimension_numbers = #tpu.dot_dimension_numbers<[1], [0], [0], [1], [0, 0, 1, 1], [], []>} : vector<8x256xbf16>, vector<256x128xbf16>, vector<8x128xf32> -> vector<8x128xf32>
    %c0_21 = arith.constant 0 : index
    %c0_22 = arith.constant 0 : index
    %27 = vector.load %arg9[%c0_21, %c0_22] : memref<1x128xf32, #tpu.memory_space<vmem>>, vector<1x128xf32>
    %28 = vector.broadcast %27 : vector<1x128xf32> to vector<8x128xf32>
    %29 = arith.addf %26, %28 : vector<8x128xf32>
    %cst_23 = arith.constant 0.000000e+00 : f32
    %30 = vector.broadcast %cst_23 : f32 to vector<8x128xf32>
    %31 = arith.maximumf %29, %30 : vector<8x128xf32>
    %c0_24 = arith.constant 0 : index
    %c0_25 = arith.constant 0 : index
    %32 = vector.load %arg10[%c0_24, %c0_25] : memref<128x1xbf16, #tpu.memory_space<vmem>>, vector<128x1xbf16>
    %33 = arith.truncf %31 : vector<8x128xf32> to vector<8x128xbf16>
    %cst_26 = arith.constant dense<0.000000e+00> : vector<8x1xf32>
    %34 = tpu.matmul %33, %32, %cst_26 {dimension_numbers = #tpu.dot_dimension_numbers<[1], [0], [0], [1], [0, 0, 1, 1], [], []>} : vector<8x128xbf16>, vector<128x1xbf16>, vector<8x1xf32> -> vector<8x1xf32>
    %c0_27 = arith.constant 0 : index
    %c0_28 = arith.constant 0 : index
    %35 = vector.load %arg11[%c0_27, %c0_28] : memref<1x1xf32, #tpu.memory_space<vmem>>, vector<1x1xf32>
    %36 = vector.broadcast %35 : vector<1x1xf32> to vector<8x1xf32>
    %37 = arith.addf %34, %36 : vector<8x1xf32>
    %c0_29 = arith.constant 0 : index
    %c0_30 = arith.constant 0 : index
    %38 = vector.load %arg12[%c0_29, %c0_30] : memref<8x1xf32, #tpu.memory_space<vmem>>, vector<8x1xf32>
    tpu.vector_store %arg12[%c0_29, %c0_30], %37 {strides = array<i32>} : memref<8x1xf32, #tpu.memory_space<vmem>>, vector<8x1xf32>,
    return
  }
  func.func @transform_0(%arg0: i32) -> (i32, i32) {
    %c0_i32 = arith.constant 0 : i32
    %c0_i32_0 = arith.constant 0 : i32
    return %arg0, %c0_i32 : i32, i32
  }
  func.func @transform_1(%arg0: i32) -> (i32, i32) {
    %c0_i32 = arith.constant 0 : i32
    %c0_i32_0 = arith.constant 0 : i32
    %c0_i32_1 = arith.constant 0 : i32
    return %c0_i32, %c0_i32_0 : i32, i32
  }
  func.func @transform_2(%arg0: i32) -> (i32, i32) {
    %c0_i32 = arith.constant 0 : i32
    %c0_i32_0 = arith.constant 0 : i32
    %c0_i32_1 = arith.constant 0 : i32
    return %c0_i32, %c0_i32_0 : i32, i32
  }
  func.func @transform_3(%arg0: i32) -> (i32, i32) {
    %c0_i32 = arith.constant 0 : i32
    %c0_i32_0 = arith.constant 0 : i32
    %c0_i32_1 = arith.constant 0 : i32
    return %c0_i32, %c0_i32_0 : i32, i32
  }
  func.func @transform_4(%arg0: i32) -> (i32, i32) {
    %c0_i32 = arith.constant 0 : i32
    %c0_i32_0 = arith.constant 0 : i32
    %c0_i32_1 = arith.constant 0 : i32
    return %c0_i32, %c0_i32_0 : i32, i32
  }
  func.func @transform_5(%arg0: i32) -> (i32, i32) {
    %c0_i32 = arith.constant 0 : i32
    %c0_i32_0 = arith.constant 0 : i32
    %c0_i32_1 = arith.constant 0 : i32
    return %c0_i32, %c0_i32_0 : i32, i32
  }
  func.func @transform_6(%arg0: i32) -> (i32, i32) {
    %c0_i32 = arith.constant 0 : i32
    %c0_i32_0 = arith.constant 0 : i32
    %c0_i32_1 = arith.constant 0 : i32
    return %c0_i32, %c0_i32_0 : i32, i32
  }
  func.func @transform_7(%arg0: i32) -> (i32, i32) {
    %c0_i32 = arith.constant 0 : i32
    %c0_i32_0 = arith.constant 0 : i32
    %c0_i32_1 = arith.constant 0 : i32
    return %c0_i32, %c0_i32_0 : i32, i32
  }
  func.func @transform_8(%arg0: i32) -> (i32, i32) {
    %c0_i32 = arith.constant 0 : i32
    %c0_i32_0 = arith.constant 0 : i32
    %c0_i32_1 = arith.constant 0 : i32
    return %c0_i32, %c0_i32_0 : i32, i32
  }
  func.func @transform_9(%arg0: i32) -> (i32, i32) {
    %c0_i32 = arith.constant 0 : i32
    %c0_i32_0 = arith.constant 0 : i32
    %c0_i32_1 = arith.constant 0 : i32
    return %c0_i32, %c0_i32_0 : i32, i32
  }
  func.func @transform_10(%arg0: i32) -> (i32, i32) {
    %c0_i32 = arith.constant 0 : i32
    %c0_i32_0 = arith.constant 0 : i32
    %c0_i32_1 = arith.constant 0 : i32
    return %c0_i32, %c0_i32_0 : i32, i32
  }
  func.func @transform_11(%arg0: i32) -> (i32, i32) {
    %c0_i32 = arith.constant 0 : i32
    %c0_i32_0 = arith.constant 0 : i32
    return %arg0, %c0_i32 : i32, i32
  }
}

</mosaic_0001>

<llo_original>
// kernel: ctg_forward.7
$region0: #{ctg_forward.7}
  #allocation0 [shape = 'u32[]', space=smem, size = 0x4, offset = 0x4, fixed_abs, tag = 'smem constant byte address 0x4 - core index']
  #allocation1 [shape = 'u32[144,128]{1,0:T(1,128)}', space=vmem, size = 0x12000, scoped, tag = 'internal scratch']
  %s0 = inlined_call_operand.vmem [shape: f32[16,128], index: 0, kind: input, shape index: {}]
  %s1 = inlined_call_operand.vmem [shape: bf16[128,128], index: 1, kind: input, shape index: {}]
  %s2 = inlined_call_operand.vmem [shape: f32[1,128], index: 2, kind: input, shape index: {}]
  %s3 = inlined_call_operand.vmem [shape: bf16[128,128], index: 3, kind: input, shape index: {}]
  %s4 = inlined_call_operand.vmem [shape: f32[1,128], index: 4, kind: input, shape index: {}]
  %s5 = inlined_call_operand.vmem [shape: f32[16,128], index: 5, kind: input, shape index: {}]
  %s6 = inlined_call_operand.hbm [shape: f32[16,128], index: 6, kind: output, shape index: {0}]
  %s7 = inlined_call_operand.hbm [shape: f32[16,128], index: 7, kind: output, shape index: {1}]
  %s8 = inlined_call_operand.vmem [shape: f32[16,128], index: 8, kind: output, shape index: {2}]
  %9 = xla_tuple %s6, %s7, %s8
  %s10 = sld [smem:[#allocation0]]
  $region73: #{ctg_forward.7} parent=0
    _
  %s12 = ssub.s32 1, %s10
  %s13 = scalar_select 0, %s12, %s10
  $region1: #{ctg_forward.7} parent=0
    #allocation2 [shape = 'u8[8192]{0}', space=vmem, size = 0x2000, scoped, tag = 'output window, operand 0']
    #allocation3 [shape = 's32[2]{0}', space=sflag, size = 0x8, scoped, tag = 'scoped memory for ctg_forward.7']
    #allocation4 [shape = 'u8[8192]{0}', space=vmem, size = 0x2000, scoped, tag = 'output window, operand 1']
    #allocation5 [shape = 's32[2]{0}', space=sflag, size = 0x8, scoped, tag = 'scoped memory for ctg_forward.7']
    %14 = vsyncpa [#allocation3], 0
    %s15 = scalar_lea.sflag [#allocation3], 1
    %16 = vsyncpa %s15, 0
    %17 = vsyncpa [#allocation5], 0
    %s18 = scalar_lea.sflag [#allocation5], 1
    %19 = vsyncpa %s18, 0
    loop: start=0, step=1, limit=4
    $region2: #{ctg_forward.7} parent=1 // loop_pre_header
      _
    $region3: #{ctg_forward.7} parent=1 // loop_header
      %s21 = sphi 0, %s25
      %p22 = scmp.ge.s32.totalorder %s21, 4
      %s31 = sphi 0, %s33
      %s34 = sphi 0, %s31
      %s35 = sphi 0, %s34
      %s51 = sphi 0, %s35
      %s55 = sphi 0, %s55
      %s57 = sphi 0, %s55
      %s58 = sphi 0, %s57
      %s72 = sphi 0, %s58
      %s76 = sphi 0, %s76
      %s78 = sphi 0, %s76
      %s79 = sphi 0, %s78
      %s93 = sphi 0, %s79
      %s97 = sphi 0, %s97
      %s99 = sphi 0, %s97
      %s100 = sphi 0, %s99
      %s114 = sphi 0, %s100
      %s118 = sphi 0, %s118
      %s120 = sphi 0, %s118
      %s121 = sphi 0, %s120
      %s135 = sphi 0, %s121
      %s141 = sphi 0, %s143
      %s144 = sphi 0, %s141
      %s145 = sphi 0, %s144
      %s161 = sphi 0, %s145
      %s167 = sphi 0, %s169
      %s170 = sphi 0, %s167
      %s171 = sphi 0, %s170
      %s187 = sphi 0, %s171
      %s193 = sphi 0, %s195
      %s196 = sphi 0, %s193
      %s197 = sphi 0, %s196
      %s213 = sphi 0, %s197
      %s219 = sphi 0, %s221
      %s222 = sphi 0, %s219
      %s223 = sphi 0, %s222
      %s239 = sphi 0, %s223
    $region4: #{ctg_forward.7} parent=1 // loop_header_branch
      %24 = sbr.rel (%p22) target = $region8
    $region5: #{ctg_forward.7} parent=1 // loop_body
      %s26 = ssub.s32 %s21, 1
      %s27 = ssub.s32 %s21, 2
      %s28 = sadd.s32 %s21, 1
      %s29 = ssub.s32 %s21, %s28
      %p30 = scmp.eq.s32.totalorder %s29, 0
      %s32 = sadd.s32 %s31, 1
      %s33 = scalar_select %p30, %s31, %s32
      %p36 = pneg %p30
      %p37 = scmp.eq.s32.totalorder %s21, 1
      %p38 = por %p36, %p37
      %p39 = scmp.ne.s32.totalorder %s31, %s34
      %p40 = scmp.eq.s32.totalorder %s21, 0
      %p41 = por %p39, %p40
      %p42 = scmp.ne.s32.totalorder %s31, %s34
      %p43 = scmp.eq.s32.totalorder %s26, 1
      %p44 = por %p42, %p43
      %p45 = scmp.ne.s32.totalorder %s34, %s35
      %p46 = scmp.eq.s32.totalorder %s26, 0
      %p47 = por %p45, %p46
      %p48 = scmp.ne.s32.totalorder %s34, %s35
      %p49 = scmp.eq.s32.totalorder %s27, 1
      %p50 = por %p48, %p49
      %p52 = scmp.ne.s32.totalorder %s35, %s51
      %p53 = scmp.eq.s32.totalorder %s27, 0
      %p54 = por %p52, %p53
      %s56 = sadd.s32 %s55, 1
      %p59 = scmp.eq.s32.totalorder %s21, 1
      %p60 = scmp.ne.s32.totalorder %s55, %s57
      %p61 = scmp.eq.s32.totalorder %s21, 0
      %p62 = por %p60, %p61
      %p63 = scmp.ne.s32.totalorder %s55, %s57
      %p64 = scmp.eq.s32.totalorder %s26, 1
      %p65 = por %p63, %p64
      %p66 = scmp.ne.s32.totalorder %s57, %s58
      %p67 = scmp.eq.s32.totalorder %s26, 0
      %p68 = por %p66, %p67
      %p69 = scmp.ne.s32.totalorder %s57, %s58
      %p70 = scmp.eq.s32.totalorder %s27, 1
      %p71 = por %p69, %p70
      %p73 = scmp.ne.s32.totalorder %s58, %s72
      %p74 = scmp.eq.s32.totalorder %s27, 0
      %p75 = por %p73, %p74
      %s77 = sadd.s32 %s76, 1
      %p80 = scmp.eq.s32.totalorder %s21, 1
      %p81 = scmp.ne.s32.totalorder %s76, %s78
      %p82 = scmp.eq.s32.totalorder %s21, 0
      %p83 = por %p81, %p82
      %p84 = scmp.ne.s32.totalorder %s76, %s78
      %p85 = scmp.eq.s32.totalorder %s26, 1
      %p86 = por %p84, %p85
      %p87 = scmp.ne.s32.totalorder %s78, %s79
      %p88 = scmp.eq.s32.totalorder %s26, 0
      %p89 = por %p87, %p88
      %p90 = scmp.ne.s32.totalorder %s78, %s79
      %p91 = scmp.eq.s32.totalorder %s27, 1
      %p92 = por %p90, %p91
      %p94 = scmp.ne.s32.totalorder %s79, %s93
      %p95 = scmp.eq.s32.totalorder %s27, 0
      %p96 = por %p94, %p95
      %s98 = sadd.s32 %s97, 1
      %p101 = scmp.eq.s32.totalorder %s21, 1
      %p102 = scmp.ne.s32.totalorder %s97, %s99
      %p103 = scmp.eq.s32.totalorder %s21, 0
      %p104 = por %p102, %p103
      %p105 = scmp.ne.s32.totalorder %s97, %s99
      %p106 = scmp.eq.s32.totalorder %s26, 1
      %p107 = por %p105, %p106
      %p108 = scmp.ne.s32.totalorder %s99, %s100
      %p109 = scmp.eq.s32.totalorder %s26, 0
      %p110 = por %p108, %p109
      %p111 = scmp.ne.s32.totalorder %s99, %s100
      %p112 = scmp.eq.s32.totalorder %s27, 1
      %p113 = por %p111, %p112
      %p115 = scmp.ne.s32.totalorder %s100, %s114
      %p116 = scmp.eq.s32.totalorder %s27, 0
      %p117 = por %p115, %p116
      %s119 = sadd.s32 %s118, 1
      %p122 = scmp.eq.s32.totalorder %s21, 1
      %p123 = scmp.ne.s32.totalorder %s118, %s120
      %p124 = scmp.eq.s32.totalorder %s21, 0
      %p125 = por %p123, %p124
      %p126 = scmp.ne.s32.totalorder %s118, %s120
      %p127 = scmp.eq.s32.totalorder %s26, 1
      %p128 = por %p126, %p127
      %p129 = scmp.ne.s32.totalorder %s120, %s121
      %p130 = scmp.eq.s32.totalorder %s26, 0
      %p131 = por %p129, %p130
      %p132 = scmp.ne.s32.totalorder %s120, %s121
      %p133 = scmp.eq.s32.totalorder %s27, 1
      %p134 = por %p132, %p133
      %p136 = scmp.ne.s32.totalorder %s121, %s135
      %p137 = scmp.eq.s32.totalorder %s27, 0
      %p138 = por %p136, %p137
      %s139 = ssub.s32 %s21, %s28
      %p140 = scmp.eq.s32.totalorder %s139, 0
      %s142 = sadd.s32 %s141, 1
      %s143 = scalar_select %p140, %s141, %s142
      %p146 = pneg %p140
      %p147 = scmp.eq.s32.totalorder %s21, 1
      %p148 = por %p146, %p147
      %p149 = scmp.ne.s32.totalorder %s141, %s144
      %p150 = scmp.eq.s32.totalorder %s21, 0
      %p151 = por %p149, %p150
      %p152 = scmp.ne.s32.totalorder %s141, %s144
      %p153 = scmp.eq.s32.totalorder %s26, 1
      %p154 = por %p152, %p153
      %p155 = scmp.ne.s32.totalorder %s144, %s145
      %p156 = scmp.eq.s32.totalorder %s26, 0
      %p157 = por %p155, %p156
      %p158 = scmp.ne.s32.totalorder %s144, %s145
      %p159 = scmp.eq.s32.totalorder %s27, 1
      %p160 = por %p158, %p159
      %p162 = scmp.ne.s32.totalorder %s145, %s161
      %p163 = scmp.eq.s32.totalorder %s27, 0
      %p164 = por %p162, %p163
      %s165 = ssub.s32 %s21, %s28
      %p166 = scmp.eq.s32.totalorder %s165, 0
      %s168 = sadd.s32 %s167, 1
      %s169 = scalar_select %p166, %s167, %s168
      %p172 = pneg %p166
      %p173 = scmp.eq.s32.totalorder %s21, 1
      %p174 = por %p172, %p173
      %p175 = scmp.ne.s32.totalorder %s167, %s170
      %p176 = scmp.eq.s32.totalorder %s21, 0
      %p177 = por %p175, %p176
      %p178 = scmp.ne.s32.totalorder %s167, %s170
      %p179 = scmp.eq.s32.totalorder %s26, 1
      %p180 = por %p178, %p179
      %p181 = scmp.ne.s32.totalorder %s170, %s171
      %p182 = scmp.eq.s32.totalorder %s26, 0
      %p183 = por %p181, %p182
      %p184 = scmp.ne.s32.totalorder %s170, %s171
      %p185 = scmp.eq.s32.totalorder %s27, 1
      %p186 = por %p184, %p185
      %p188 = scmp.ne.s32.totalorder %s171, %s187
      %p189 = scmp.eq.s32.totalorder %s27, 0
      %p190 = por %p188, %p189
      %s191 = ssub.s32 %s21, %s28
      %p192 = scmp.eq.s32.totalorder %s191, 0
      %s194 = sadd.s32 %s193, 1
      %s195 = scalar_select %p192, %s193, %s194
      %p198 = pneg %p192
      %p199 = scmp.eq.s32.totalorder %s21, 1
      %p200 = por %p198, %p199
      %p201 = scmp.ne.s32.totalorder %s193, %s196
      %p202 = scmp.eq.s32.totalorder %s21, 0
      %p203 = por %p201, %p202
      %p204 = scmp.ne.s32.totalorder %s193, %s196
      %p205 = scmp.eq.s32.totalorder %s26, 1
      %p206 = por %p204, %p205
      %p207 = scmp.ne.s32.totalorder %s196, %s197
      %p208 = scmp.eq.s32.totalorder %s26, 0
      %p209 = por %p207, %p208
      %p210 = scmp.ne.s32.totalorder %s196, %s197
      %p211 = scmp.eq.s32.totalorder %s27, 1
      %p212 = por %p210, %p211
      %p214 = scmp.ne.s32.totalorder %s197, %s213
      %p215 = scmp.eq.s32.totalorder %s27, 0
      %p216 = por %p214, %p215
      %s217 = ssub.s32 %s21, %s28
      %p218 = scmp.eq.s32.totalorder %s217, 0
      %s220 = sadd.s32 %s219, 1
      %s221 = scalar_select %p218, %s219, %s220
      %p224 = pneg %p218
      %p225 = scmp.eq.s32.totalorder %s21, 1
      %p226 = por %p224, %p225
      %p227 = scmp.ne.s32.totalorder %s219, %s222
      %p228 = scmp.eq.s32.totalorder %s21, 0
      %p229 = por %p227, %p228
      %p230 = scmp.ne.s32.totalorder %s219, %s222
      %p231 = scmp.eq.s32.totalorder %s26, 1
      %p232 = por %p230, %p231
      %p233 = scmp.ne.s32.totalorder %s222, %s223
      %p234 = scmp.eq.s32.totalorder %s26, 0
      %p235 = por %p233, %p234
      %p236 = scmp.ne.s32.totalorder %s222, %s223
      %p237 = scmp.eq.s32.totalorder %s27, 1
      %p238 = por %p236, %p237
      %p240 = scmp.ne.s32.totalorder %s223, %s239
      %p241 = scmp.eq.s32.totalorder %s27, 0
      %p242 = por %p240, %p241
      %p243 = scmp.le.s32.totalorder 1, %s21
      %p244 = scmp.lt.s32.totalorder %s21, 3
      %p245 = pnand %p243, %p244
      %p246 = pneg %p245
      // Predicated region
      $region9: #{ctg_forward.7} parent=5 // pred_check
        _
      $region10: #{ctg_forward.7} parent=5 // pred_check_branch
        %248 = sbr.rel (%p245) target = $region12
      $region11: #{ctg_forward.7} parent=5 // pred_region
        %s249 = ssub.s32 %s21, 1
        // Predicated region
        $region13: #{ctg_forward.7} parent=11 // pred_check
          %p250 = pneg %p68
        $region14: #{ctg_forward.7} parent=11 // pred_check_branch
          %252 = sbr.rel (%p250) target = $region16
        $region15: #{ctg_forward.7} parent=11 // pred_region
          _
        $region16: #{ctg_forward.7} parent=11 // pred_fallthru
          _
        // Predicated region
        $region17: #{ctg_forward.7} parent=11 // pred_check
          %p253 = pneg %p89
        $region18: #{ctg_forward.7} parent=11 // pred_check_branch
          %255 = sbr.rel (%p253) target = $region20
        $region19: #{ctg_forward.7} parent=11 // pred_region
          _
        $region20: #{ctg_forward.7} parent=11 // pred_fallthru
          _
        // Predicated region
        $region21: #{ctg_forward.7} parent=11 // pred_check
          %p256 = pneg %p110
        $region22: #{ctg_forward.7} parent=11 // pred_check_branch
          %258 = sbr.rel (%p256) target = $region24
        $region23: #{ctg_forward.7} parent=11 // pred_region
          _
        $region24: #{ctg_forward.7} parent=11 // pred_fallthru
          _
        // Predicated region
        $region25: #{ctg_forward.7} parent=11 // pred_check
          %p259 = pneg %p131
        $region26: #{ctg_forward.7} parent=11 // pred_check_branch
          %261 = sbr.rel (%p259) target = $region28
        $region27: #{ctg_forward.7} parent=11 // pred_region
          _
        $region28: #{ctg_forward.7} parent=11 // pred_fallthru
          _
      $region12: #{ctg_forward.7} parent=5 // pred_fallthru
        _
      %p262 = scmp.lt.s32.totalorder %s21, 2
      // Predicated region
      $region29: #{ctg_forward.7} parent=5 // pred_check
        %p263 = pneg %p262
      $region30: #{ctg_forward.7} parent=5 // pred_check_branch
        %265 = sbr.rel (%p263) target = $region32
      $region31: #{ctg_forward.7} parent=5 // pred_region
        // Predicated region
        $region33: #{ctg_forward.7} parent=31 // pred_check
          %p266 = pneg %p41
        $region34: #{ctg_forward.7} parent=31 // pred_check_branch
          %268 = sbr.rel (%p266) target = $region36
        $region35: #{ctg_forward.7} parent=31 // pred_region
          %p269 = scmp.lt.s32.totalorder %s21, 1
          %s270 = scalar_select %p269, %s21, 1
          %s271 = smul.addr %s270, 8
          %s272 = scalar_lea.vmem %s0, %s271
        $region36: #{ctg_forward.7} parent=31 // pred_fallthru
          _
        // Predicated region
        $region37: #{ctg_forward.7} parent=31 // pred_check
          %p273 = pneg %p151
        $region38: #{ctg_forward.7} parent=31 // pred_check_branch
          %275 = sbr.rel (%p273) target = $region40
        $region39: #{ctg_forward.7} parent=31 // pred_region
          %p276 = scmp.lt.s32.totalorder %s21, 1
          %s277 = scalar_select %p276, %s21, 1
          %s278 = smul.addr %s277, 8
          %s279 = scalar_lea.vmem %s5, %s278
        $region40: #{ctg_forward.7} parent=31 // pred_fallthru
          _
      $region32: #{ctg_forward.7} parent=5 // pred_fallthru
        _
      %p280 = scmp.le.s32.totalorder 1, %s21
      %p281 = scmp.lt.s32.totalorder %s21, 3
      %p282 = pnand %p280, %p281
      %p283 = pneg %p282
      // Predicated region
      $region41: #{ctg_forward.7} parent=5 // pred_check
        _
      $region42: #{ctg_forward.7} parent=5 // pred_check_branch
        %285 = sbr.rel (%p282) target = $region44
      $region43: #{ctg_forward.7} parent=5 // pred_region
        %s286 = ssub.s32 %s21, 1
        %p287 = scmp.lt.s32.totalorder %s26, 1
        %s288 = scalar_select %p287, %s26, 1
        %s289 = smul.addr %s288, 8
        %s290 = scalar_lea.vmem %s0, %s289
        %p291 = pneg %p47
        %p292 = pneg %p44
        %p293 = pneg %p68
        %p294 = pneg %p65
        %p295 = pneg %p89
        %p296 = pneg %p86
        %p297 = pneg %p110
        %p298 = pneg %p107
        %p299 = pneg %p131
        %p300 = pneg %p128
        %p301 = scmp.lt.s32.totalorder %s26, 1
        %s302 = scalar_select %p301, %s26, 1
        %s303 = smul.addr %s302, 8
        %s304 = scalar_lea.vmem %s5, %s303
        %p305 = pneg %p157
        %p306 = pneg %p154
        %p307 = pneg %p183
        %p308 = pneg %p180
        %s309 = sand.u32 %s170, 1
        %s310 = scalar_lea.sflag [#allocation3], %s309
        %s311 = sand.u32 %s170, 1
        %s312 = smul.addr %s311, 8
        %s313 = scalar_lea.vmem [#allocation2], %s312
        %p314 = pneg %p209
        %p315 = pneg %p206
        %s316 = sand.u32 %s196, 1
        %s317 = scalar_lea.sflag [#allocation5], %s316
        %s318 = sand.u32 %s196, 1
        %s319 = smul.addr %s318, 8
        %s320 = scalar_lea.vmem [#allocation4], %s319
        %p321 = pneg %p235
        %p322 = pneg %p232
        %p323 = scmp.lt.s32.totalorder %s26, 1
        %s324 = scalar_select %p323, %s26, 1
        %s325 = smul.addr %s324, 8
        %s326 = scalar_lea.vmem %s8, %s325
        %p327 = scmp.lt.s32.totalorder %s26, 1
        %s328 = scalar_select %p327, %s26, 1
        %s329 = smul.addr %s328, 8
        %s330 = scalar_lea.vmem %s0, %s329
        %p331 = scmp.lt.s32.totalorder %s26, 1
        %s332 = scalar_select %p331, %s26, 1
        %s333 = smul.addr %s332, 8
        %s334 = scalar_lea.vmem %s5, %s333
        %p335 = scmp.lt.s32.totalorder %s26, 1
        %s336 = scalar_select %p335, %s26, 1
        %s337 = smul.addr %s336, 8
        %s338 = scalar_lea.vmem %s8, %s337
        %v340 = vld [vmem:[%s330] sm:$0xff]
        %v341 = vld [vmem:[%s1] sm:$0xf]
        %v342 = vld [vmem:[%s1 + $0x4] sm:$0xf]
        %v343 = vld [vmem:[%s1 + $0x8] sm:$0xf]
        %v344 = vld [vmem:[%s1 + $0xc] sm:$0xf]
        %v345 = vld [vmem:[%s1 + $0x10] sm:$0xf]
        %v346 = vld [vmem:[%s1 + $0x14] sm:$0xf]
        %v347 = vld [vmem:[%s1 + $0x18] sm:$0xf]
        %v348 = vld [vmem:[%s1 + $0x1c] sm:$0xf]
        %v349 = vld [vmem:[%s1 + $0x20] sm:$0xf]
        %v350 = vld [vmem:[%s1 + $0x24] sm:$0xf]
        %v351 = vld [vmem:[%s1 + $0x28] sm:$0xf]
        %v352 = vld [vmem:[%s1 + $0x2c] sm:$0xf]
        %v353 = vld [vmem:[%s1 + $0x30] sm:$0xf]
        %v354 = vld [vmem:[%s1 + $0x34] sm:$0xf]
        %v355 = vld [vmem:[%s1 + $0x38] sm:$0xf]
        %v356 = vld [vmem:[%s1 + $0x3c] sm:$0xf]
        %v357 = vpack.c.bf16 %v340, %v340
        %v358 = vld [vmem:[%s2] sm:$0x1]
        %v360 = vlaneseq
        %v361 = vshrl.u32 %v360, 7
        %v362 = vsub.s32 0, %v361
        %v363 = vrot.slane %v358, %v362
        %v381 = vunpack.c.l.b16 %v341
        %v382 = vunpack.c.l.b16 %v342
        %v383 = vunpack.c.l.b16 %v343
        %v384 = vunpack.c.l.b16 %v344
        %v385 = vunpack.c.l.b16 %v345
        %v386 = vunpack.c.l.b16 %v346
        %v387 = vunpack.c.l.b16 %v347
        %v388 = vunpack.c.l.b16 %v348
        %v389 = vunpack.c.l.b16 %v349
        %v390 = vunpack.c.l.b16 %v350
        %v391 = vunpack.c.l.b16 %v351
        %v392 = vunpack.c.l.b16 %v352
        %v393 = vunpack.c.l.b16 %v353
        %v394 = vunpack.c.l.b16 %v354
        %v395 = vunpack.c.l.b16 %v355
        %v396 = vunpack.c.l.b16 %v356
        %v397 = vpack.c.b16 %v382, %v381
        %v398 = vpack.c.b16 %v384, %v383
        %v399 = vpack.c.b16 %v386, %v385
        %v400 = vpack.c.b16 %v388, %v387
        %v401 = vpack.c.b16 %v390, %v389
        %v402 = vpack.c.b16 %v392, %v391
        %v403 = vpack.c.b16 %v394, %v393
        %v404 = vpack.c.b16 %v396, %v395
        %413 = vmatprep.subr.bf16.mxu0 0
        %414 = vmatpush1.bf16.msra.mxu0 %v397
        %415 = vmatprep.subr.bf16.mxu0 0
        %416 = vmatpush1.bf16.msra.mxu0 %v398
        %417 = vmatprep.subr.bf16.mxu0 0
        %418 = vmatpush1.bf16.msra.mxu0 %v399
        %419 = vmatprep.subr.bf16.mxu0 0
        %420 = vmatpush1.bf16.msra.mxu0 %v400
        %421 = vmatprep.subr.bf16.mxu0 0
        %422 = vmatpush1.bf16.msra.mxu0 %v401
        %423 = vmatprep.subr.bf16.mxu0 0
        %424 = vmatpush1.bf16.msra.mxu0 %v402
        %425 = vmatprep.subr.bf16.mxu0 0
        %426 = vmatpush1.bf16.msra.mxu0 %v403
        %427 = vmatprep.subr.bf16.mxu0 0
        %428 = vmatpush1.bf16.msra.mxu0 %v404
        %429 = vmatprep.subr.bf16.mxu0 0
        %430 = vmatpush1.bf16.msra.mxu0 0
        %431 = vmatprep.subr.bf16.mxu0 0
        %432 = vmatpush1.bf16.msra.mxu0 0
        %433 = vmatprep.subr.bf16.mxu0 0
        %434 = vmatpush1.bf16.msra.mxu0 0
        %435 = vmatprep.subr.bf16.mxu0 0
        %436 = vmatpush1.bf16.msra.mxu0 0
        %437 = vmatprep.subr.bf16.mxu0 0
        %438 = vmatpush1.bf16.msra.mxu0 0
        %439 = vmatprep.subr.bf16.mxu0 0
        %440 = vmatpush1.bf16.msra.mxu0 0
        %441 = vmatprep.subr.bf16.mxu0 0
        %442 = vmatpush1.bf16.msra.mxu0 0
        %443 = vmatprep.subr.bf16.mxu0 0
        %444 = vmatpush1.bf16.msra.mxu0 0
        %445 = vmatprep.mubr.bf16.mxu0 0
        %446 = vmatmul.mubr.bf16.gmra.mrb[0].mxu0 %v357
        %v447 = vpop.f32.mrb[0].mxu0
        %v448 = vadd.f32 %v363, %v447
        %v449 = vpop.f32.mrb[0].mxu0
        %v450 = vpop.f32.mrb[0].mxu0
        %v451 = vpop.f32.mrb[0].mxu0
        %452 = vdwg.mxu0
        %v453 = vld [vmem:[%s3] sm:$0xf]
        %v454 = vld [vmem:[%s3 + $0x4] sm:$0xf]
        %v455 = vld [vmem:[%s3 + $0x8] sm:$0xf]
        %v456 = vld [vmem:[%s3 + $0xc] sm:$0xf]
        %v457 = vld [vmem:[%s3 + $0x10] sm:$0xf]
        %v458 = vld [vmem:[%s3 + $0x14] sm:$0xf]
        %v459 = vld [vmem:[%s3 + $0x18] sm:$0xf]
        %v460 = vld [vmem:[%s3 + $0x1c] sm:$0xf]
        %v461 = vld [vmem:[%s3 + $0x20] sm:$0xf]
        %v462 = vld [vmem:[%s3 + $0x24] sm:$0xf]
        %v463 = vld [vmem:[%s3 + $0x28] sm:$0xf]
        %v464 = vld [vmem:[%s3 + $0x2c] sm:$0xf]
        %v465 = vld [vmem:[%s3 + $0x30] sm:$0xf]
        %v466 = vld [vmem:[%s3 + $0x34] sm:$0xf]
        %v467 = vld [vmem:[%s3 + $0x38] sm:$0xf]
        %v468 = vld [vmem:[%s3 + $0x3c] sm:$0xf]
        %v469 = vld [vmem:[%s4] sm:$0x1]
        %v471 = vlaneseq
        %v472 = vshrl.u32 %v471, 7
        %v473 = vsub.s32 0, %v472
        %v474 = vrot.slane %v469, %v473
        %v492 = vunpack.c.l.b16 %v453
        %v493 = vunpack.c.l.b16 %v454
        %v494 = vunpack.c.l.b16 %v455
        %v495 = vunpack.c.l.b16 %v456
        %v496 = vunpack.c.l.b16 %v457
        %v497 = vunpack.c.l.b16 %v458
        %v498 = vunpack.c.l.b16 %v459
        %v499 = vunpack.c.l.b16 %v460
        %v500 = vunpack.c.l.b16 %v461
        %v501 = vunpack.c.l.b16 %v462
        %v502 = vunpack.c.l.b16 %v463
        %v503 = vunpack.c.l.b16 %v464
        %v504 = vunpack.c.l.b16 %v465
        %v505 = vunpack.c.l.b16 %v466
        %v506 = vunpack.c.l.b16 %v467
        %v507 = vunpack.c.l.b16 %v468
        %v508 = vpack.c.b16 %v493, %v492
        %v509 = vpack.c.b16 %v495, %v494
        %v510 = vpack.c.b16 %v497, %v496
        %v511 = vpack.c.b16 %v499, %v498
        %v512 = vpack.c.b16 %v501, %v500
        %v513 = vpack.c.b16 %v503, %v502
        %v514 = vpack.c.b16 %v505, %v504
        %v515 = vpack.c.b16 %v507, %v506
        %524 = vmatprep.subr.bf16.mxu0 0
        %525 = vmatpush1.bf16.msra.mxu0 %v508
        %526 = vmatprep.subr.bf16.mxu0 0
        %527 = vmatpush1.bf16.msra.mxu0 %v509
        %528 = vmatprep.subr.bf16.mxu0 0
        %529 = vmatpush1.bf16.msra.mxu0 %v510
        %530 = vmatprep.subr.bf16.mxu0 0
        %531 = vmatpush1.bf16.msra.mxu0 %v511
        %532 = vmatprep.subr.bf16.mxu0 0
        %533 = vmatpush1.bf16.msra.mxu0 %v512
        %534 = vmatprep.subr.bf16.mxu0 0
        %535 = vmatpush1.bf16.msra.mxu0 %v513
        %536 = vmatprep.subr.bf16.mxu0 0
        %537 = vmatpush1.bf16.msra.mxu0 %v514
        %538 = vmatprep.subr.bf16.mxu0 0
        %539 = vmatpush1.bf16.msra.mxu0 %v515
        %540 = vmatprep.subr.bf16.mxu0 0
        %541 = vmatpush1.bf16.msra.mxu0 0
        %542 = vmatprep.subr.bf16.mxu0 0
        %543 = vmatpush1.bf16.msra.mxu0 0
        %544 = vmatprep.subr.bf16.mxu0 0
        %545 = vmatpush1.bf16.msra.mxu0 0
        %546 = vmatprep.subr.bf16.mxu0 0
        %547 = vmatpush1.bf16.msra.mxu0 0
        %548 = vmatprep.subr.bf16.mxu0 0
        %549 = vmatpush1.bf16.msra.mxu0 0
        %550 = vmatprep.subr.bf16.mxu0 0
        %551 = vmatpush1.bf16.msra.mxu0 0
        %552 = vmatprep.subr.bf16.mxu0 0
        %553 = vmatpush1.bf16.msra.mxu0 0
        %554 = vmatprep.subr.bf16.mxu0 0
        %555 = vmatpush1.bf16.msra.mxu0 0
        %556 = vmatprep.mubr.bf16.mxu0 0
        %557 = vmatmul.mubr.bf16.gmra.mrb[0].mxu0 %v357
        %v558 = vpop.f32.mrb[0].mxu0
        %v559 = vadd.f32 %v474, %v558
        %v560 = vpop.f32.mrb[0].mxu0
        %v561 = vpop.f32.mrb[0].mxu0
        %v562 = vpop.f32.mrb[0].mxu0
        %563 = vdwg.mxu0
        %564 = vst [vmem:[%s313] sm:$0xff] %v448
        %565 = vst [vmem:[%s320] sm:$0xff] %v559
        %v566 = vld [vmem:[%s334] sm:$0xff]
        %v567 = vmul.f32 %v559, 0.5
        %v568 = vmul.f32 %v567, 1.442695
        %v569 = vpow.pop %v568
        %v570 = vmul.f32 %v566, %v569
        %v571 = vadd.f32 %v570, %v448
        %572 = vst [vmem:[%s338] sm:$0xff] %v571
        %s573 = sand.u32 %s170, 1
        %s574 = scalar_lea.sflag [#allocation3], %s573
        %s575 = sand.u32 %s170, 1
        %s576 = smul.addr %s575, 8
        %s577 = scalar_lea.vmem [#allocation2], %s576
        %s578 = sand.u32 %s196, 1
        %s579 = scalar_lea.sflag [#allocation5], %s578
        %s580 = sand.u32 %s196, 1
        %s581 = smul.addr %s580, 8
        %s582 = scalar_lea.vmem [#allocation4], %s581
        %p583 = scmp.lt.s32.totalorder %s26, 1
        %s584 = scalar_select %p583, %s26, 1
        %s585 = smul.addr %s584, 8
        %s586 = scalar_lea.vmem %s8, %s585
        // Predicated region
        $region45: #{ctg_forward.7} parent=43 // pred_check
          %p587 = pneg %p180
        $region46: #{ctg_forward.7} parent=43 // pred_check_branch
          %589 = sbr.rel (%p587) target = $region48
        $region47: #{ctg_forward.7} parent=43 // pred_region
          %s591 = ssub.s32 128, 128
          %592 = vsyncadd %s574, %s591
          %s593 = smul.addr %s26, 128
          %s594 = scalar_lea.hbm %s6, %s593
          %s596 = sshll.u32 %s577, 4
          %s597 = int_to_ptr.vmem [resolvable:$true] %s596
          %599 = dma.vmem_to_hbm [thread:$0]  %s597, 128, %s594, %s574
        $region48: #{ctg_forward.7} parent=43 // pred_fallthru
          _
        // Predicated region
        $region49: #{ctg_forward.7} parent=43 // pred_check
          %p600 = pneg %p206
        $region50: #{ctg_forward.7} parent=43 // pred_check_branch
          %602 = sbr.rel (%p600) target = $region52
        $region51: #{ctg_forward.7} parent=43 // pred_region
          %s604 = ssub.s32 128, 128
          %605 = vsyncadd %s579, %s604
          %s606 = smul.addr %s26, 128
          %s607 = scalar_lea.hbm %s7, %s606
          %s609 = sshll.u32 %s582, 4
          %s610 = int_to_ptr.vmem [resolvable:$true] %s609
          %612 = dma.vmem_to_hbm [thread:$0]  %s610, 128, %s607, %s579
        $region52: #{ctg_forward.7} parent=43 // pred_fallthru
          _
        // Predicated region
        $region53: #{ctg_forward.7} parent=43 // pred_check
          %p613 = pneg %p232
        $region54: #{ctg_forward.7} parent=43 // pred_check_branch
          %615 = sbr.rel (%p613) target = $region56
        $region55: #{ctg_forward.7} parent=43 // pred_region
          _
        $region56: #{ctg_forward.7} parent=43 // pred_fallthru
          _
      $region44: #{ctg_forward.7} parent=5 // pred_fallthru
        _
      %p616 = scmp.le.s32.totalorder 2, %s21
      // Predicated region
      $region57: #{ctg_forward.7} parent=5 // pred_check
        %p617 = pneg %p616
      $region58: #{ctg_forward.7} parent=5 // pred_check_branch
        %619 = sbr.rel (%p617) target = $region60
      $region59: #{ctg_forward.7} parent=5 // pred_region
        %s620 = ssub.s32 %s21, 2
        // Predicated region
        $region61: #{ctg_forward.7} parent=59 // pred_check
          %p621 = pneg %p186
        $region62: #{ctg_forward.7} parent=59 // pred_check_branch
          %623 = sbr.rel (%p621) target = $region64
        $region63: #{ctg_forward.7} parent=59 // pred_region
          %s624 = sand.u32 %s171, 1
          %s625 = scalar_lea.sflag [#allocation3], %s624
          %s626 = sand.u32 %s171, 1
          %s627 = smul.addr %s626, 8
          %s628 = scalar_lea.vmem [#allocation2], %s627
          %629 = dma.done %s625, 128
        $region64: #{ctg_forward.7} parent=59 // pred_fallthru
          _
        // Predicated region
        $region65: #{ctg_forward.7} parent=59 // pred_check
          %p630 = pneg %p212
        $region66: #{ctg_forward.7} parent=59 // pred_check_branch
          %632 = sbr.rel (%p630) target = $region68
        $region67: #{ctg_forward.7} parent=59 // pred_region
          %s633 = sand.u32 %s197, 1
          %s634 = scalar_lea.sflag [#allocation5], %s633
          %s635 = sand.u32 %s197, 1
          %s636 = smul.addr %s635, 8
          %s637 = scalar_lea.vmem [#allocation4], %s636
          %638 = dma.done %s634, 128
        $region68: #{ctg_forward.7} parent=59 // pred_fallthru
          _
        // Predicated region
        $region69: #{ctg_forward.7} parent=59 // pred_check
          %p639 = pneg %p238
        $region70: #{ctg_forward.7} parent=59 // pred_check_branch
          %641 = sbr.rel (%p639) target = $region72
        $region71: #{ctg_forward.7} parent=59 // pred_region
          %p642 = scmp.lt.s32.totalorder %s27, 1
          %s643 = scalar_select %p642, %s27, 1
          %s644 = smul.addr %s643, 8
          %s645 = scalar_lea.vmem %s8, %s644
        $region72: #{ctg_forward.7} parent=59 // pred_fallthru
          _
      $region60: #{ctg_forward.7} parent=5 // pred_fallthru
        _
    $region6: #{ctg_forward.7} parent=1 // loop_footer
      %s25 = sadd.s32 1, %s21
    $region7: #{ctg_forward.7} parent=1 // loop_footer_branch
      %20 = sbr.rel target = $region3
    $region8: #{ctg_forward.7} parent=1 // loop_exit
      _
    %646 = vsyncpa [#allocation3], 1
    %s647 = scalar_lea.sflag [#allocation3], 1
    %648 = vsyncpa %s647, 1
    %649 = vsyncpa [#allocation5], 1
    %s650 = scalar_lea.sflag [#allocation5], 1
    %651 = vsyncpa %s650, 1

// kernel: ctg_forward.8
$region0: #{ctg_forward.8}
  #allocation0 [shape = 'u32[]', space=smem, size = 0x4, offset = 0x4, fixed_abs, tag = 'smem constant byte address 0x4 - core index']
  #allocation1 [shape = 'u32[144,128]{1,0:T(1,128)}', space=vmem, size = 0x12000, scoped, tag = 'internal scratch']
  %s0 = inlined_call_operand.vmem [shape: f32[16,130], index: 0, kind: input, shape index: {}]
  %s1 = inlined_call_operand.vmem [shape: f32[130,128], index: 1, kind: input, shape index: {}]
  %s2 = inlined_call_operand.vmem [shape: f32[1,128], index: 2, kind: input, shape index: {}]
  %s3 = inlined_call_operand.vmem [shape: bf16[128,256], index: 3, kind: input, shape index: {}]
  %s4 = inlined_call_operand.vmem [shape: f32[1,256], index: 4, kind: input, shape index: {}]
  %s5 = inlined_call_operand.vmem [shape: bf16[256,128], index: 5, kind: input, shape index: {}]
  %s6 = inlined_call_operand.vmem [shape: f32[1,128], index: 6, kind: input, shape index: {}]
  %s7 = inlined_call_operand.vmem [shape: f32[1,128], index: 7, kind: input, shape index: {}, may-alias: {7,13}]
  %s8 = inlined_call_operand.vmem [shape: f32[1,128], index: 8, kind: input, shape index: {}, may-alias: {8,14}]
  %s9 = inlined_call_operand.vmem [shape: bf16[128,256], index: 9, kind: input, shape index: {}]
  %s10 = inlined_call_operand.vmem [shape: f32[1,256], index: 10, kind: input, shape index: {}]
  %s11 = inlined_call_operand.vmem [shape: bf16[256,128], index: 11, kind: input, shape index: {}]
  %s12 = inlined_call_operand.vmem [shape: f32[1,128], index: 12, kind: input, shape index: {}]
  %s13 = inlined_call_operand.vmem [shape: f32[1,128], index: 13, kind: input, shape index: {}, may-alias: {7,13}]
  %s14 = inlined_call_operand.vmem [shape: f32[1,128], index: 14, kind: input, shape index: {}, may-alias: {8,14}]
  %s15 = inlined_call_operand.vmem [shape: bf16[128,256], index: 15, kind: input, shape index: {}]
  %s16 = inlined_call_operand.vmem [shape: f32[1,256], index: 16, kind: input, shape index: {}]
  %s17 = inlined_call_operand.vmem [shape: f32[16,128], index: 17, kind: output, shape index: {0}]
  %s18 = inlined_call_operand.hbm [shape: f32[16,256], index: 18, kind: output, shape index: {1}]
  %19 = xla_tuple %s17, %s18
  %s20 = sld [smem:[#allocation0]]
  $region109: #{ctg_forward.8} parent=0
    _
  %s22 = ssub.s32 1, %s20
  %s23 = scalar_select 0, %s22, %s20
  $region1: #{ctg_forward.8} parent=0
    #allocation2 [shape = 'u8[16384]{0}', space=vmem, size = 0x4000, scoped, tag = 'output window, operand 1']
    #allocation3 [shape = 's32[2]{0}', space=sflag, size = 0x8, scoped, tag = 'scoped memory for ctg_forward.8']
    %24 = vsyncpa [#allocation3], 0
    %s25 = scalar_lea.sflag [#allocation3], 1
    %26 = vsyncpa %s25, 0
    loop: start=0, step=1, limit=4
    $region2: #{ctg_forward.8} parent=1 // loop_pre_header
      _
    $region3: #{ctg_forward.8} parent=1 // loop_header
      %s28 = sphi 0, %s32
      %p29 = scmp.ge.s32.totalorder %s28, 4
      %s38 = sphi 0, %s40
      %s41 = sphi 0, %s38
      %s42 = sphi 0, %s41
      %s58 = sphi 0, %s42
      %s62 = sphi 0, %s62
      %s64 = sphi 0, %s62
      %s65 = sphi 0, %s64
      %s79 = sphi 0, %s65
      %s83 = sphi 0, %s83
      %s85 = sphi 0, %s83
      %s86 = sphi 0, %s85
      %s100 = sphi 0, %s86
      %s104 = sphi 0, %s104
      %s106 = sphi 0, %s104
      %s107 = sphi 0, %s106
      %s121 = sphi 0, %s107
      %s125 = sphi 0, %s125
      %s127 = sphi 0, %s125
      %s128 = sphi 0, %s127
      %s142 = sphi 0, %s128
      %s146 = sphi 0, %s146
      %s148 = sphi 0, %s146
      %s149 = sphi 0, %s148
      %s163 = sphi 0, %s149
      %s167 = sphi 0, %s167
      %s169 = sphi 0, %s167
      %s170 = sphi 0, %s169
      %s184 = sphi 0, %s170
      %s188 = sphi 0, %s188
      %s190 = sphi 0, %s188
      %s191 = sphi 0, %s190
      %s205 = sphi 0, %s191
      %s209 = sphi 0, %s209
      %s211 = sphi 0, %s209
      %s212 = sphi 0, %s211
      %s226 = sphi 0, %s212
      %s230 = sphi 0, %s230
      %s232 = sphi 0, %s230
      %s233 = sphi 0, %s232
      %s247 = sphi 0, %s233
      %s251 = sphi 0, %s251
      %s253 = sphi 0, %s251
      %s254 = sphi 0, %s253
      %s268 = sphi 0, %s254
      %s272 = sphi 0, %s272
      %s274 = sphi 0, %s272
      %s275 = sphi 0, %s274
      %s289 = sphi 0, %s275
      %s293 = sphi 0, %s293
      %s295 = sphi 0, %s293
      %s296 = sphi 0, %s295
      %s310 = sphi 0, %s296
      %s314 = sphi 0, %s314
      %s316 = sphi 0, %s314
      %s317 = sphi 0, %s316
      %s331 = sphi 0, %s317
      %s335 = sphi 0, %s335
      %s337 = sphi 0, %s335
      %s338 = sphi 0, %s337
      %s352 = sphi 0, %s338
      %s356 = sphi 0, %s356
      %s358 = sphi 0, %s356
      %s359 = sphi 0, %s358
      %s373 = sphi 0, %s359
      %s377 = sphi 0, %s377
      %s379 = sphi 0, %s377
      %s380 = sphi 0, %s379
      %s394 = sphi 0, %s380
      %s400 = sphi 0, %s402
      %s403 = sphi 0, %s400
      %s404 = sphi 0, %s403
      %s420 = sphi 0, %s404
      %s426 = sphi 0, %s428
      %s429 = sphi 0, %s426
      %s430 = sphi 0, %s429
      %s446 = sphi 0, %s430
    $region4: #{ctg_forward.8} parent=1 // loop_header_branch
      %31 = sbr.rel (%p29) target = $region8
    $region5: #{ctg_forward.8} parent=1 // loop_body
      %s33 = ssub.s32 %s28, 1
      %s34 = ssub.s32 %s28, 2
      %s35 = sadd.s32 %s28, 1
      %s36 = ssub.s32 %s28, %s35
      %p37 = scmp.eq.s32.totalorder %s36, 0
      %s39 = sadd.s32 %s38, 1
      %s40 = scalar_select %p37, %s38, %s39
      %p43 = pneg %p37
      %p44 = scmp.eq.s32.totalorder %s28, 1
      %p45 = por %p43, %p44
      %p46 = scmp.ne.s32.totalorder %s38, %s41
      %p47 = scmp.eq.s32.totalorder %s28, 0
      %p48 = por %p46, %p47
      %p49 = scmp.ne.s32.totalorder %s38, %s41
      %p50 = scmp.eq.s32.totalorder %s33, 1
      %p51 = por %p49, %p50
      %p52 = scmp.ne.s32.totalorder %s41, %s42
      %p53 = scmp.eq.s32.totalorder %s33, 0
      %p54 = por %p52, %p53
      %p55 = scmp.ne.s32.totalorder %s41, %s42
      %p56 = scmp.eq.s32.totalorder %s34, 1
      %p57 = por %p55, %p56
      %p59 = scmp.ne.s32.totalorder %s42, %s58
      %p60 = scmp.eq.s32.totalorder %s34, 0
      %p61 = por %p59, %p60
      %s63 = sadd.s32 %s62, 1
      %p66 = scmp.eq.s32.totalorder %s28, 1
      %p67 = scmp.ne.s32.totalorder %s62, %s64
      %p68 = scmp.eq.s32.totalorder %s28, 0
      %p69 = por %p67, %p68
      %p70 = scmp.ne.s32.totalorder %s62, %s64
      %p71 = scmp.eq.s32.totalorder %s33, 1
      %p72 = por %p70, %p71
      %p73 = scmp.ne.s32.totalorder %s64, %s65
      %p74 = scmp.eq.s32.totalorder %s33, 0
      %p75 = por %p73, %p74
      %p76 = scmp.ne.s32.totalorder %s64, %s65
      %p77 = scmp.eq.s32.totalorder %s34, 1
      %p78 = por %p76, %p77
      %p80 = scmp.ne.s32.totalorder %s65, %s79
      %p81 = scmp.eq.s32.totalorder %s34, 0
      %p82 = por %p80, %p81
      %s84 = sadd.s32 %s83, 1
      %p87 = scmp.eq.s32.totalorder %s28, 1
      %p88 = scmp.ne.s32.totalorder %s83, %s85
      %p89 = scmp.eq.s32.totalorder %s28, 0
      %p90 = por %p88, %p89
      %p91 = scmp.ne.s32.totalorder %s83, %s85
      %p92 = scmp.eq.s32.totalorder %s33, 1
      %p93 = por %p91, %p92
      %p94 = scmp.ne.s32.totalorder %s85, %s86
      %p95 = scmp.eq.s32.totalorder %s33, 0
      %p96 = por %p94, %p95
      %p97 = scmp.ne.s32.totalorder %s85, %s86
      %p98 = scmp.eq.s32.totalorder %s34, 1
      %p99 = por %p97, %p98
      %p101 = scmp.ne.s32.totalorder %s86, %s100
      %p102 = scmp.eq.s32.totalorder %s34, 0
      %p103 = por %p101, %p102
      %s105 = sadd.s32 %s104, 1
      %p108 = scmp.eq.s32.totalorder %s28, 1
      %p109 = scmp.ne.s32.totalorder %s104, %s106
      %p110 = scmp.eq.s32.totalorder %s28, 0
      %p111 = por %p109, %p110
      %p112 = scmp.ne.s32.totalorder %s104, %s106
      %p113 = scmp.eq.s32.totalorder %s33, 1
      %p114 = por %p112, %p113
      %p115 = scmp.ne.s32.totalorder %s106, %s107
      %p116 = scmp.eq.s32.totalorder %s33, 0
      %p117 = por %p115, %p116
      %p118 = scmp.ne.s32.totalorder %s106, %s107
      %p119 = scmp.eq.s32.totalorder %s34, 1
      %p120 = por %p118, %p119
      %p122 = scmp.ne.s32.totalorder %s107, %s121
      %p123 = scmp.eq.s32.totalorder %s34, 0
      %p124 = por %p122, %p123
      %s126 = sadd.s32 %s125, 1
      %p129 = scmp.eq.s32.totalorder %s28, 1
      %p130 = scmp.ne.s32.totalorder %s125, %s127
      %p131 = scmp.eq.s32.totalorder %s28, 0
      %p132 = por %p130, %p131
      %p133 = scmp.ne.s32.totalorder %s125, %s127
      %p134 = scmp.eq.s32.totalorder %s33, 1
      %p135 = por %p133, %p134
      %p136 = scmp.ne.s32.totalorder %s127, %s128
      %p137 = scmp.eq.s32.totalorder %s33, 0
      %p138 = por %p136, %p137
      %p139 = scmp.ne.s32.totalorder %s127, %s128
      %p140 = scmp.eq.s32.totalorder %s34, 1
      %p141 = por %p139, %p140
      %p143 = scmp.ne.s32.totalorder %s128, %s142
      %p144 = scmp.eq.s32.totalorder %s34, 0
      %p145 = por %p143, %p144
      %s147 = sadd.s32 %s146, 1
      %p150 = scmp.eq.s32.totalorder %s28, 1
      %p151 = scmp.ne.s32.totalorder %s146, %s148
      %p152 = scmp.eq.s32.totalorder %s28, 0
      %p153 = por %p151, %p152
      %p154 = scmp.ne.s32.totalorder %s146, %s148
      %p155 = scmp.eq.s32.totalorder %s33, 1
      %p156 = por %p154, %p155
      %p157 = scmp.ne.s32.totalorder %s148, %s149
      %p158 = scmp.eq.s32.totalorder %s33, 0
      %p159 = por %p157, %p158
      %p160 = scmp.ne.s32.totalorder %s148, %s149
      %p161 = scmp.eq.s32.totalorder %s34, 1
      %p162 = por %p160, %p161
      %p164 = scmp.ne.s32.totalorder %s149, %s163
      %p165 = scmp.eq.s32.totalorder %s34, 0
      %p166 = por %p164, %p165
      %s168 = sadd.s32 %s167, 1
      %p171 = scmp.eq.s32.totalorder %s28, 1
      %p172 = scmp.ne.s32.totalorder %s167, %s169
      %p173 = scmp.eq.s32.totalorder %s28, 0
      %p174 = por %p172, %p173
      %p175 = scmp.ne.s32.totalorder %s167, %s169
      %p176 = scmp.eq.s32.totalorder %s33, 1
      %p177 = por %p175, %p176
      %p178 = scmp.ne.s32.totalorder %s169, %s170
      %p179 = scmp.eq.s32.totalorder %s33, 0
      %p180 = por %p178, %p179
      %p181 = scmp.ne.s32.totalorder %s169, %s170
      %p182 = scmp.eq.s32.totalorder %s34, 1
      %p183 = por %p181, %p182
      %p185 = scmp.ne.s32.totalorder %s170, %s184
      %p186 = scmp.eq.s32.totalorder %s34, 0
      %p187 = por %p185, %p186
      %s189 = sadd.s32 %s188, 1
      %p192 = scmp.eq.s32.totalorder %s28, 1
      %p193 = scmp.ne.s32.totalorder %s188, %s190
      %p194 = scmp.eq.s32.totalorder %s28, 0
      %p195 = por %p193, %p194
      %p196 = scmp.ne.s32.totalorder %s188, %s190
      %p197 = scmp.eq.s32.totalorder %s33, 1
      %p198 = por %p196, %p197
      %p199 = scmp.ne.s32.totalorder %s190, %s191
      %p200 = scmp.eq.s32.totalorder %s33, 0
      %p201 = por %p199, %p200
      %p202 = scmp.ne.s32.totalorder %s190, %s191
      %p203 = scmp.eq.s32.totalorder %s34, 1
      %p204 = por %p202, %p203
      %p206 = scmp.ne.s32.totalorder %s191, %s205
      %p207 = scmp.eq.s32.totalorder %s34, 0
      %p208 = por %p206, %p207
      %s210 = sadd.s32 %s209, 1
      %p213 = scmp.eq.s32.totalorder %s28, 1
      %p214 = scmp.ne.s32.totalorder %s209, %s211
      %p215 = scmp.eq.s32.totalorder %s28, 0
      %p216 = por %p214, %p215
      %p217 = scmp.ne.s32.totalorder %s209, %s211
      %p218 = scmp.eq.s32.totalorder %s33, 1
      %p219 = por %p217, %p218
      %p220 = scmp.ne.s32.totalorder %s211, %s212
      %p221 = scmp.eq.s32.totalorder %s33, 0
      %p222 = por %p220, %p221
      %p223 = scmp.ne.s32.totalorder %s211, %s212
      %p224 = scmp.eq.s32.totalorder %s34, 1
      %p225 = por %p223, %p224
      %p227 = scmp.ne.s32.totalorder %s212, %s226
      %p228 = scmp.eq.s32.totalorder %s34, 0
      %p229 = por %p227, %p228
      %s231 = sadd.s32 %s230, 1
      %p234 = scmp.eq.s32.totalorder %s28, 1
      %p235 = scmp.ne.s32.totalorder %s230, %s232
      %p236 = scmp.eq.s32.totalorder %s28, 0
      %p237 = por %p235, %p236
      %p238 = scmp.ne.s32.totalorder %s230, %s232
      %p239 = scmp.eq.s32.totalorder %s33, 1
      %p240 = por %p238, %p239
      %p241 = scmp.ne.s32.totalorder %s232, %s233
      %p242 = scmp.eq.s32.totalorder %s33, 0
      %p243 = por %p241, %p242
      %p244 = scmp.ne.s32.totalorder %s232, %s233
      %p245 = scmp.eq.s32.totalorder %s34, 1
      %p246 = por %p244, %p245
      %p248 = scmp.ne.s32.totalorder %s233, %s247
      %p249 = scmp.eq.s32.totalorder %s34, 0
      %p250 = por %p248, %p249
      %s252 = sadd.s32 %s251, 1
      %p255 = scmp.eq.s32.totalorder %s28, 1
      %p256 = scmp.ne.s32.totalorder %s251, %s253
      %p257 = scmp.eq.s32.totalorder %s28, 0
      %p258 = por %p256, %p257
      %p259 = scmp.ne.s32.totalorder %s251, %s253
      %p260 = scmp.eq.s32.totalorder %s33, 1
      %p261 = por %p259, %p260
      %p262 = scmp.ne.s32.totalorder %s253, %s254
      %p263 = scmp.eq.s32.totalorder %s33, 0
      %p264 = por %p262, %p263
      %p265 = scmp.ne.s32.totalorder %s253, %s254
      %p266 = scmp.eq.s32.totalorder %s34, 1
      %p267 = por %p265, %p266
      %p269 = scmp.ne.s32.totalorder %s254, %s268
      %p270 = scmp.eq.s32.totalorder %s34, 0
      %p271 = por %p269, %p270
      %s273 = sadd.s32 %s272, 1
      %p276 = scmp.eq.s32.totalorder %s28, 1
      %p277 = scmp.ne.s32.totalorder %s272, %s274
      %p278 = scmp.eq.s32.totalorder %s28, 0
      %p279 = por %p277, %p278
      %p280 = scmp.ne.s32.totalorder %s272, %s274
      %p281 = scmp.eq.s32.totalorder %s33, 1
      %p282 = por %p280, %p281
      %p283 = scmp.ne.s32.totalorder %s274, %s275
      %p284 = scmp.eq.s32.totalorder %s33, 0
      %p285 = por %p283, %p284
      %p286 = scmp.ne.s32.totalorder %s274, %s275
      %p287 = scmp.eq.s32.totalorder %s34, 1
      %p288 = por %p286, %p287
      %p290 = scmp.ne.s32.totalorder %s275, %s289
      %p291 = scmp.eq.s32.totalorder %s34, 0
      %p292 = por %p290, %p291
      %s294 = sadd.s32 %s293, 1
      %p297 = scmp.eq.s32.totalorder %s28, 1
      %p298 = scmp.ne.s32.totalorder %s293, %s295
      %p299 = scmp.eq.s32.totalorder %s28, 0
      %p300 = por %p298, %p299
      %p301 = scmp.ne.s32.totalorder %s293, %s295
      %p302 = scmp.eq.s32.totalorder %s33, 1
      %p303 = por %p301, %p302
      %p304 = scmp.ne.s32.totalorder %s295, %s296
      %p305 = scmp.eq.s32.totalorder %s33, 0
      %p306 = por %p304, %p305
      %p307 = scmp.ne.s32.totalorder %s295, %s296
      %p308 = scmp.eq.s32.totalorder %s34, 1
      %p309 = por %p307, %p308
      %p311 = scmp.ne.s32.totalorder %s296, %s310
      %p312 = scmp.eq.s32.totalorder %s34, 0
      %p313 = por %p311, %p312
      %s315 = sadd.s32 %s314, 1
      %p318 = scmp.eq.s32.totalorder %s28, 1
      %p319 = scmp.ne.s32.totalorder %s314, %s316
      %p320 = scmp.eq.s32.totalorder %s28, 0
      %p321 = por %p319, %p320
      %p322 = scmp.ne.s32.totalorder %s314, %s316
      %p323 = scmp.eq.s32.totalorder %s33, 1
      %p324 = por %p322, %p323
      %p325 = scmp.ne.s32.totalorder %s316, %s317
      %p326 = scmp.eq.s32.totalorder %s33, 0
      %p327 = por %p325, %p326
      %p328 = scmp.ne.s32.totalorder %s316, %s317
      %p329 = scmp.eq.s32.totalorder %s34, 1
      %p330 = por %p328, %p329
      %p332 = scmp.ne.s32.totalorder %s317, %s331
      %p333 = scmp.eq.s32.totalorder %s34, 0
      %p334 = por %p332, %p333
      %s336 = sadd.s32 %s335, 1
      %p339 = scmp.eq.s32.totalorder %s28, 1
      %p340 = scmp.ne.s32.totalorder %s335, %s337
      %p341 = scmp.eq.s32.totalorder %s28, 0
      %p342 = por %p340, %p341
      %p343 = scmp.ne.s32.totalorder %s335, %s337
      %p344 = scmp.eq.s32.totalorder %s33, 1
      %p345 = por %p343, %p344
      %p346 = scmp.ne.s32.totalorder %s337, %s338
      %p347 = scmp.eq.s32.totalorder %s33, 0
      %p348 = por %p346, %p347
      %p349 = scmp.ne.s32.totalorder %s337, %s338
      %p350 = scmp.eq.s32.totalorder %s34, 1
      %p351 = por %p349, %p350
      %p353 = scmp.ne.s32.totalorder %s338, %s352
      %p354 = scmp.eq.s32.totalorder %s34, 0
      %p355 = por %p353, %p354
      %s357 = sadd.s32 %s356, 1
      %p360 = scmp.eq.s32.totalorder %s28, 1
      %p361 = scmp.ne.s32.totalorder %s356, %s358
      %p362 = scmp.eq.s32.totalorder %s28, 0
      %p363 = por %p361, %p362
      %p364 = scmp.ne.s32.totalorder %s356, %s358
      %p365 = scmp.eq.s32.totalorder %s33, 1
      %p366 = por %p364, %p365
      %p367 = scmp.ne.s32.totalorder %s358, %s359
      %p368 = scmp.eq.s32.totalorder %s33, 0
      %p369 = por %p367, %p368
      %p370 = scmp.ne.s32.totalorder %s358, %s359
      %p371 = scmp.eq.s32.totalorder %s34, 1
      %p372 = por %p370, %p371
      %p374 = scmp.ne.s32.totalorder %s359, %s373
      %p375 = scmp.eq.s32.totalorder %s34, 0
      %p376 = por %p374, %p375
      %s378 = sadd.s32 %s377, 1
      %p381 = scmp.eq.s32.totalorder %s28, 1
      %p382 = scmp.ne.s32.totalorder %s377, %s379
      %p383 = scmp.eq.s32.totalorder %s28, 0
      %p384 = por %p382, %p383
      %p385 = scmp.ne.s32.totalorder %s377, %s379
      %p386 = scmp.eq.s32.totalorder %s33, 1
      %p387 = por %p385, %p386
      %p388 = scmp.ne.s32.totalorder %s379, %s380
      %p389 = scmp.eq.s32.totalorder %s33, 0
      %p390 = por %p388, %p389
      %p391 = scmp.ne.s32.totalorder %s379, %s380
      %p392 = scmp.eq.s32.totalorder %s34, 1
      %p393 = por %p391, %p392
      %p395 = scmp.ne.s32.totalorder %s380, %s394
      %p396 = scmp.eq.s32.totalorder %s34, 0
      %p397 = por %p395, %p396
      %s398 = ssub.s32 %s28, %s35
      %p399 = scmp.eq.s32.totalorder %s398, 0
      %s401 = sadd.s32 %s400, 1
      %s402 = scalar_select %p399, %s400, %s401
      %p405 = pneg %p399
      %p406 = scmp.eq.s32.totalorder %s28, 1
      %p407 = por %p405, %p406
      %p408 = scmp.ne.s32.totalorder %s400, %s403
      %p409 = scmp.eq.s32.totalorder %s28, 0
      %p410 = por %p408, %p409
      %p411 = scmp.ne.s32.totalorder %s400, %s403
      %p412 = scmp.eq.s32.totalorder %s33, 1
      %p413 = por %p411, %p412
      %p414 = scmp.ne.s32.totalorder %s403, %s404
      %p415 = scmp.eq.s32.totalorder %s33, 0
      %p416 = por %p414, %p415
      %p417 = scmp.ne.s32.totalorder %s403, %s404
      %p418 = scmp.eq.s32.totalorder %s34, 1
      %p419 = por %p417, %p418
      %p421 = scmp.ne.s32.totalorder %s404, %s420
      %p422 = scmp.eq.s32.totalorder %s34, 0
      %p423 = por %p421, %p422
      %s424 = ssub.s32 %s28, %s35
      %p425 = scmp.eq.s32.totalorder %s424, 0
      %s427 = sadd.s32 %s426, 1
      %s428 = scalar_select %p425, %s426, %s427
      %p431 = pneg %p425
      %p432 = scmp.eq.s32.totalorder %s28, 1
      %p433 = por %p431, %p432
      %p434 = scmp.ne.s32.totalorder %s426, %s429
      %p435 = scmp.eq.s32.totalorder %s28, 0
      %p436 = por %p434, %p435
      %p437 = scmp.ne.s32.totalorder %s426, %s429
      %p438 = scmp.eq.s32.totalorder %s33, 1
      %p439 = por %p437, %p438
      %p440 = scmp.ne.s32.totalorder %s429, %s430
      %p441 = scmp.eq.s32.totalorder %s33, 0
      %p442 = por %p440, %p441
      %p443 = scmp.ne.s32.totalorder %s429, %s430
      %p444 = scmp.eq.s32.totalorder %s34, 1
      %p445 = por %p443, %p444
      %p447 = scmp.ne.s32.totalorder %s430, %s446
      %p448 = scmp.eq.s32.totalorder %s34, 0
      %p449 = por %p447, %p448
      %p450 = scmp.le.s32.totalorder 1, %s28
      %p451 = scmp.lt.s32.totalorder %s28, 3
      %p452 = pnand %p450, %p451
      %p453 = pneg %p452
      // Predicated region
      $region9: #{ctg_forward.8} parent=5 // pred_check
        _
      $region10: #{ctg_forward.8} parent=5 // pred_check_branch
        %455 = sbr.rel (%p452) target = $region12
      $region11: #{ctg_forward.8} parent=5 // pred_region
        %s456 = ssub.s32 %s28, 1
        // Predicated region
        $region13: #{ctg_forward.8} parent=11 // pred_check
          %p457 = pneg %p75
        $region14: #{ctg_forward.8} parent=11 // pred_check_branch
          %459 = sbr.rel (%p457) target = $region16
        $region15: #{ctg_forward.8} parent=11 // pred_region
          _
        $region16: #{ctg_forward.8} parent=11 // pred_fallthru
          _
        // Predicated region
        $region17: #{ctg_forward.8} parent=11 // pred_check
          %p460 = pneg %p96
        $region18: #{ctg_forward.8} parent=11 // pred_check_branch
          %462 = sbr.rel (%p460) target = $region20
        $region19: #{ctg_forward.8} parent=11 // pred_region
          _
        $region20: #{ctg_forward.8} parent=11 // pred_fallthru
          _
        // Predicated region
        $region21: #{ctg_forward.8} parent=11 // pred_check
          %p463 = pneg %p117
        $region22: #{ctg_forward.8} parent=11 // pred_check_branch
          %465 = sbr.rel (%p463) target = $region24
        $region23: #{ctg_forward.8} parent=11 // pred_region
          _
        $region24: #{ctg_forward.8} parent=11 // pred_fallthru
          _
        // Predicated region
        $region25: #{ctg_forward.8} parent=11 // pred_check
          %p466 = pneg %p138
        $region26: #{ctg_forward.8} parent=11 // pred_check_branch
          %468 = sbr.rel (%p466) target = $region28
        $region27: #{ctg_forward.8} parent=11 // pred_region
          _
        $region28: #{ctg_forward.8} parent=11 // pred_fallthru
          _
        // Predicated region
        $region29: #{ctg_forward.8} parent=11 // pred_check
          %p469 = pneg %p159
        $region30: #{ctg_forward.8} parent=11 // pred_check_branch
          %471 = sbr.rel (%p469) target = $region32
        $region31: #{ctg_forward.8} parent=11 // pred_region
          _
        $region32: #{ctg_forward.8} parent=11 // pred_fallthru
          _
        // Predicated region
        $region33: #{ctg_forward.8} parent=11 // pred_check
          %p472 = pneg %p180
        $region34: #{ctg_forward.8} parent=11 // pred_check_branch
          %474 = sbr.rel (%p472) target = $region36
        $region35: #{ctg_forward.8} parent=11 // pred_region
          _
        $region36: #{ctg_forward.8} parent=11 // pred_fallthru
          _
        // Predicated region
        $region37: #{ctg_forward.8} parent=11 // pred_check
          %p475 = pneg %p201
        $region38: #{ctg_forward.8} parent=11 // pred_check_branch
          %477 = sbr.rel (%p475) target = $region40
        $region39: #{ctg_forward.8} parent=11 // pred_region
          _
        $region40: #{ctg_forward.8} parent=11 // pred_fallthru
          _
        // Predicated region
        $region41: #{ctg_forward.8} parent=11 // pred_check
          %p478 = pneg %p222
        $region42: #{ctg_forward.8} parent=11 // pred_check_branch
          %480 = sbr.rel (%p478) target = $region44
        $region43: #{ctg_forward.8} parent=11 // pred_region
          _
        $region44: #{ctg_forward.8} parent=11 // pred_fallthru
          _
        // Predicated region
        $region45: #{ctg_forward.8} parent=11 // pred_check
          %p481 = pneg %p243
        $region46: #{ctg_forward.8} parent=11 // pred_check_branch
          %483 = sbr.rel (%p481) target = $region48
        $region47: #{ctg_forward.8} parent=11 // pred_region
          _
        $region48: #{ctg_forward.8} parent=11 // pred_fallthru
          _
        // Predicated region
        $region49: #{ctg_forward.8} parent=11 // pred_check
          %p484 = pneg %p264
        $region50: #{ctg_forward.8} parent=11 // pred_check_branch
          %486 = sbr.rel (%p484) target = $region52
        $region51: #{ctg_forward.8} parent=11 // pred_region
          _
        $region52: #{ctg_forward.8} parent=11 // pred_fallthru
          _
        // Predicated region
        $region53: #{ctg_forward.8} parent=11 // pred_check
          %p487 = pneg %p285
        $region54: #{ctg_forward.8} parent=11 // pred_check_branch
          %489 = sbr.rel (%p487) target = $region56
        $region55: #{ctg_forward.8} parent=11 // pred_region
          _
        $region56: #{ctg_forward.8} parent=11 // pred_fallthru
          _
        // Predicated region
        $region57: #{ctg_forward.8} parent=11 // pred_check
          %p490 = pneg %p306
        $region58: #{ctg_forward.8} parent=11 // pred_check_branch
          %492 = sbr.rel (%p490) target = $region60
        $region59: #{ctg_forward.8} parent=11 // pred_region
          _
        $region60: #{ctg_forward.8} parent=11 // pred_fallthru
          _
        // Predicated region
        $region61: #{ctg_forward.8} parent=11 // pred_check
          %p493 = pneg %p327
        $region62: #{ctg_forward.8} parent=11 // pred_check_branch
          %495 = sbr.rel (%p493) target = $region64
        $region63: #{ctg_forward.8} parent=11 // pred_region
          _
        $region64: #{ctg_forward.8} parent=11 // pred_fallthru
          _
        // Predicated region
        $region65: #{ctg_forward.8} parent=11 // pred_check
          %p496 = pneg %p348
        $region66: #{ctg_forward.8} parent=11 // pred_check_branch
          %498 = sbr.rel (%p496) target = $region68
        $region67: #{ctg_forward.8} parent=11 // pred_region
          _
        $region68: #{ctg_forward.8} parent=11 // pred_fallthru
          _
        // Predicated region
        $region69: #{ctg_forward.8} parent=11 // pred_check
          %p499 = pneg %p369
        $region70: #{ctg_forward.8} parent=11 // pred_check_branch
          %501 = sbr.rel (%p499) target = $region72
        $region71: #{ctg_forward.8} parent=11 // pred_region
          _
        $region72: #{ctg_forward.8} parent=11 // pred_fallthru
          _
        // Predicated region
        $region73: #{ctg_forward.8} parent=11 // pred_check
          %p502 = pneg %p390
        $region74: #{ctg_forward.8} parent=11 // pred_check_branch
          %504 = sbr.rel (%p502) target = $region76
        $region75: #{ctg_forward.8} parent=11 // pred_region
          _
        $region76: #{ctg_forward.8} parent=11 // pred_fallthru
          _
      $region12: #{ctg_forward.8} parent=5 // pred_fallthru
        _
      %p505 = scmp.lt.s32.totalorder %s28, 2
      // Predicated region
      $region77: #{ctg_forward.8} parent=5 // pred_check
        %p506 = pneg %p505
      $region78: #{ctg_forward.8} parent=5 // pred_check_branch
        %508 = sbr.rel (%p506) target = $region80
      $region79: #{ctg_forward.8} parent=5 // pred_region
        // Predicated region
        $region81: #{ctg_forward.8} parent=79 // pred_check
          %p509 = pneg %p48
        $region82: #{ctg_forward.8} parent=79 // pred_check_branch
          %511 = sbr.rel (%p509) target = $region84
        $region83: #{ctg_forward.8} parent=79 // pred_region
          %p512 = scmp.lt.s32.totalorder %s28, 1
          %s513 = scalar_select %p512, %s28, 1
          %s514 = smul.addr %s513, 2
          %s515 = smul.addr %s514, 8
          %s516 = scalar_lea.vmem %s0, %s515
        $region84: #{ctg_forward.8} parent=79 // pred_fallthru
          _
      $region80: #{ctg_forward.8} parent=5 // pred_fallthru
        _
      %p517 = scmp.le.s32.totalorder 1, %s28
      %p518 = scmp.lt.s32.totalorder %s28, 3
      %p519 = pnand %p517, %p518
      %p520 = pneg %p519
      // Predicated region
      $region85: #{ctg_forward.8} parent=5 // pred_check
        _
      $region86: #{ctg_forward.8} parent=5 // pred_check_branch
        %522 = sbr.rel (%p519) target = $region88
      $region87: #{ctg_forward.8} parent=5 // pred_region
        %s523 = ssub.s32 %s28, 1
        %p524 = scmp.lt.s32.totalorder %s33, 1
        %s525 = scalar_select %p524, %s33, 1
        %s526 = smul.addr %s525, 2
        %s527 = smul.addr %s526, 8
        %s528 = scalar_lea.vmem %s0, %s527
        %p529 = pneg %p54
        %p530 = pneg %p51
        %p531 = pneg %p75
        %p532 = pneg %p72
        %p533 = pneg %p96
        %p534 = pneg %p93
        %p535 = pneg %p117
        %p536 = pneg %p114
        %p537 = pneg %p138
        %p538 = pneg %p135
        %p539 = pneg %p159
        %p540 = pneg %p156
        %p541 = pneg %p180
        %p542 = pneg %p177
        %p543 = pneg %p201
        %p544 = pneg %p198
        %p545 = pneg %p222
        %p546 = pneg %p219
        %p547 = pneg %p243
        %p548 = pneg %p240
        %p549 = pneg %p264
        %p550 = pneg %p261
        %p551 = pneg %p285
        %p552 = pneg %p282
        %p553 = pneg %p306
        %p554 = pneg %p303
        %p555 = pneg %p327
        %p556 = pneg %p324
        %p557 = pneg %p348
        %p558 = pneg %p345
        %p559 = pneg %p369
        %p560 = pneg %p366
        %p561 = pneg %p390
        %p562 = pneg %p387
        %p563 = pneg %p416
        %p564 = pneg %p413
        %p565 = scmp.lt.s32.totalorder %s33, 1
        %s566 = scalar_select %p565, %s33, 1
        %s567 = smul.addr %s566, 8
        %s568 = scalar_lea.vmem %s17, %s567
        %p569 = pneg %p442
        %p570 = pneg %p439
        %s571 = sand.u32 %s429, 1
        %s572 = scalar_lea.sflag [#allocation3], %s571
        %s573 = sand.u32 %s429, 1
        %s574 = smul.addr %s573, 16
        %s575 = scalar_lea.vmem [#allocation2], %s574
        %p576 = scmp.lt.s32.totalorder %s33, 1
        %s577 = scalar_select %p576, %s33, 1
        %s578 = smul.addr %s577, 2
        %s579 = smul.addr %s578, 8
        %s580 = scalar_lea.vmem %s0, %s579
        %p581 = scmp.lt.s32.totalorder %s33, 1
        %s582 = scalar_select %p581, %s33, 1
        %s583 = smul.addr %s582, 8
        %s584 = scalar_lea.vmem %s17, %s583
        %v586 = vld [vmem:[%s580] sm:$0xff]
        %v587 = vld [vmem:[%s580 + $0x8] sm:$0xff]
        %v588 = vld [vmem:[%s1] sm:$0xff]
        %v589 = vld [vmem:[%s1 + $0x8] sm:$0xff]
        %v590 = vld [vmem:[%s1 + $0x10] sm:$0xff]
        %v591 = vld [vmem:[%s1 + $0x18] sm:$0xff]
        %v592 = vld [vmem:[%s1 + $0x20] sm:$0xff]
        %v593 = vld [vmem:[%s1 + $0x28] sm:$0xff]
        %v594 = vld [vmem:[%s1 + $0x30] sm:$0xff]
        %v595 = vld [vmem:[%s1 + $0x38] sm:$0xff]
        %v596 = vld [vmem:[%s1 + $0x40] sm:$0xff]
        %v597 = vld [vmem:[%s1 + $0x48] sm:$0xff]
        %v598 = vld [vmem:[%s1 + $0x50] sm:$0xff]
        %v599 = vld [vmem:[%s1 + $0x58] sm:$0xff]
        %v600 = vld [vmem:[%s1 + $0x60] sm:$0xff]
        %v601 = vld [vmem:[%s1 + $0x68] sm:$0xff]
        %v602 = vld [vmem:[%s1 + $0x70] sm:$0xff]
        %v603 = vld [vmem:[%s1 + $0x78] sm:$0xff]
        %v604 = vld [vmem:[%s1 + $0x80] sm:$0x3]
        %v605 = vld [vmem:[%s2] sm:$0x1]
        %v607 = vlaneseq
        %v608 = vshrl.u32 %v607, 7
        %v609 = vsub.s32 0, %v608
        %v610 = vrot.slane %v605, %v609
        %vm612 = vcmask 15360
        %v614 = vsel %vm612, %v587, 0
        %vm616 = vcmask 1041408
        %v618 = vsel %vm616, %v604, 0
        %620 = vmatprep.subr.mxu0 0.0
        %621 = vmatpush1.msra.mxu0 %v588
        %622 = vmatprep.subr.mxu0 0.0
        %623 = vmatpush1.msra.mxu0 %v589
        %624 = vmatprep.subr.mxu0 0.0
        %625 = vmatpush1.msra.mxu0 %v590
        %626 = vmatprep.subr.mxu0 0.0
        %627 = vmatpush1.msra.mxu0 %v591
        %628 = vmatprep.subr.mxu0 0.0
        %629 = vmatpush1.msra.mxu0 %v592
        %630 = vmatprep.subr.mxu0 0.0
        %631 = vmatpush1.msra.mxu0 %v593
        %632 = vmatprep.subr.mxu0 0.0
        %633 = vmatpush1.msra.mxu0 %v594
        %634 = vmatprep.subr.mxu0 0.0
        %635 = vmatpush1.msra.mxu0 %v595
        %636 = vmatprep.subr.mxu0 0.0
        %637 = vmatpush1.msra.mxu0 %v596
        %638 = vmatprep.subr.mxu0 0.0
        %639 = vmatpush1.msra.mxu0 %v597
        %640 = vmatprep.subr.mxu0 0.0
        %641 = vmatpush1.msra.mxu0 %v598
        %642 = vmatprep.subr.mxu0 0.0
        %643 = vmatpush1.msra.mxu0 %v599
        %644 = vmatprep.subr.mxu0 0.0
        %645 = vmatpush1.msra.mxu0 %v600
        %646 = vmatprep.subr.mxu0 0.0
        %647 = vmatpush1.msra.mxu0 %v601
        %648 = vmatprep.subr.mxu0 0.0
        %649 = vmatpush1.msra.mxu0 %v602
        %650 = vmatprep.subr.mxu0 0.0
        %651 = vmatpush1.msra.mxu0 %v603
        %652 = vmatprep.subr.mxu0 0.0
        %653 = vmatpush1.msra.mxu0 %v618
        %654 = vmatprep.subr.mxu0 0.0
        %655 = vmatpush1.msra.mxu0 0.0
        %656 = vmatprep.subr.mxu0 0.0
        %657 = vmatpush1.msra.mxu0 0.0
        %658 = vmatprep.subr.mxu0 0.0
        %659 = vmatpush1.msra.mxu0 0.0
        %660 = vmatprep.subr.mxu0 0.0
        %661 = vmatpush1.msra.mxu0 0.0
        %662 = vmatprep.subr.mxu0 0.0
        %663 = vmatpush1.msra.mxu0 0.0
        %664 = vmatprep.subr.mxu0 0.0
        %665 = vmatpush1.msra.mxu0 0.0
        %666 = vmatprep.subr.mxu0 0.0
        %667 = vmatpush1.msra.mxu0 0.0
        %668 = vmatprep.subr.mxu0 0.0
        %669 = vmatpush1.msra.mxu0 0.0
        %670 = vmatprep.subr.mxu0 0.0
        %671 = vmatpush1.msra.mxu0 0.0
        %672 = vmatprep.subr.mxu0 0.0
        %673 = vmatpush1.msra.mxu0 0.0
        %674 = vmatprep.subr.mxu0 0.0
        %675 = vmatpush1.msra.mxu0 0.0
        %676 = vmatprep.subr.mxu0 0.0
        %677 = vmatpush1.msra.mxu0 0.0
        %678 = vmatprep.subr.mxu0 0.0
        %679 = vmatpush1.msra.mxu0 0.0
        %680 = vmatprep.subr.mxu0 0.0
        %681 = vmatpush1.msra.mxu0 0.0
        %682 = vmatprep.subr.mxu0 0.0
        %683 = vmatpush1.msra.mxu0 0.0
        %684 = vmatprep.mubr.f32.mxu0 %v614
        %685 = vmatmul.mubr.f32.gmra.mrb[0].mxu0 %v586
        %v686 = vpop.f32.mrb[0].mxu0
        %v687 = vadd.f32 %v610, %v686
        %v688 = vpop.f32.mrb[0].mxu0
        %689 = vdwg.mxu0
        %v690 = vld [vmem:[%s3] sm:$0xff]
        %v691 = vld [vmem:[%s3 + $0x8] sm:$0xff]
        %v692 = vld [vmem:[%s3 + $0x10] sm:$0xff]
        %v693 = vld [vmem:[%s3 + $0x18] sm:$0xff]
        %v694 = vld [vmem:[%s3 + $0x20] sm:$0xff]
        %v695 = vld [vmem:[%s3 + $0x28] sm:$0xff]
        %v696 = vld [vmem:[%s3 + $0x30] sm:$0xff]
        %v697 = vld [vmem:[%s3 + $0x38] sm:$0xff]
        %v698 = vld [vmem:[%s3 + $0x40] sm:$0xff]
        %v699 = vld [vmem:[%s3 + $0x48] sm:$0xff]
        %v700 = vld [vmem:[%s3 + $0x50] sm:$0xff]
        %v701 = vld [vmem:[%s3 + $0x58] sm:$0xff]
        %v702 = vld [vmem:[%s3 + $0x60] sm:$0xff]
        %v703 = vld [vmem:[%s3 + $0x68] sm:$0xff]
        %v704 = vld [vmem:[%s3 + $0x70] sm:$0xff]
        %v705 = vld [vmem:[%s3 + $0x78] sm:$0xff]
        %v706 = vpack.c.bf16 %v687, %v687
        %v707 = vld [vmem:[%s4] sm:$0x3]
        %v709 = vlaneseq
        %v710 = vshrl.u32 %v709, 7
        %v711 = vsub.s32 0, %v710
        %v712 = vrot.slane %v707, %v711
        %v713 = vlaneseq
        %v714 = vshrl.u32 %v713, 7
        %v715 = vsub.s32 1, %v714
        %v716 = vrot.slane %v707, %v715
        %v735 = vunpack.c.l.b16 %v690
        %v736 = vunpack.c.h.b16 %v690
        %v737 = vunpack.c.l.b16 %v691
        %v738 = vunpack.c.h.b16 %v691
        %v739 = vunpack.c.l.b16 %v692
        %v740 = vunpack.c.h.b16 %v692
        %v741 = vunpack.c.l.b16 %v693
        %v742 = vunpack.c.h.b16 %v693
        %v743 = vunpack.c.l.b16 %v694
        %v744 = vunpack.c.h.b16 %v694
        %v745 = vunpack.c.l.b16 %v695
        %v746 = vunpack.c.h.b16 %v695
        %v747 = vunpack.c.l.b16 %v696
        %v748 = vunpack.c.h.b16 %v696
        %v749 = vunpack.c.l.b16 %v697
        %v750 = vunpack.c.h.b16 %v697
        %v751 = vunpack.c.l.b16 %v698
        %v752 = vunpack.c.h.b16 %v698
        %v753 = vunpack.c.l.b16 %v699
        %v754 = vunpack.c.h.b16 %v699
        %v755 = vunpack.c.l.b16 %v700
        %v756 = vunpack.c.h.b16 %v700
        %v757 = vunpack.c.l.b16 %v701
        %v758 = vunpack.c.h.b16 %v701
        %v759 = vunpack.c.l.b16 %v702
        %v760 = vunpack.c.h.b16 %v702
        %v761 = vunpack.c.l.b16 %v703
        %v762 = vunpack.c.h.b16 %v703
        %v763 = vunpack.c.l.b16 %v704
        %v764 = vunpack.c.h.b16 %v704
        %v765 = vunpack.c.l.b16 %v705
        %v766 = vunpack.c.h.b16 %v705
        %v767 = vpack.c.b16 %v737, %v735
        %v768 = vpack.c.b16 %v738, %v736
        %v769 = vpack.c.b16 %v741, %v739
        %v770 = vpack.c.b16 %v742, %v740
        %v771 = vpack.c.b16 %v745, %v743
        %v772 = vpack.c.b16 %v746, %v744
        %v773 = vpack.c.b16 %v749, %v747
        %v774 = vpack.c.b16 %v750, %v748
        %v775 = vpack.c.b16 %v753, %v751
        %v776 = vpack.c.b16 %v754, %v752
        %v777 = vpack.c.b16 %v757, %v755
        %v778 = vpack.c.b16 %v758, %v756
        %v779 = vpack.c.b16 %v761, %v759
        %v780 = vpack.c.b16 %v762, %v760
        %v781 = vpack.c.b16 %v765, %v763
        %v782 = vpack.c.b16 %v766, %v764
        %799 = vmatprep.subr.bf16.mxu0 %v768
        %800 = vmatpush1.bf16.msra.mxu0 %v767
        %801 = vmatprep.subr.bf16.mxu0 %v770
        %802 = vmatpush1.bf16.msra.mxu0 %v769
        %803 = vmatprep.subr.bf16.mxu0 %v772
        %804 = vmatpush1.bf16.msra.mxu0 %v771
        %805 = vmatprep.subr.bf16.mxu0 %v774
        %806 = vmatpush1.bf16.msra.mxu0 %v773
        %807 = vmatprep.subr.bf16.mxu0 %v776
        %808 = vmatpush1.bf16.msra.mxu0 %v775
        %809 = vmatprep.subr.bf16.mxu0 %v778
        %810 = vmatpush1.bf16.msra.mxu0 %v777
        %811 = vmatprep.subr.bf16.mxu0 %v780
        %812 = vmatpush1.bf16.msra.mxu0 %v779
        %813 = vmatprep.subr.bf16.mxu0 %v782
        %814 = vmatpush1.bf16.msra.mxu0 %v781
        %815 = vmatprep.subr.bf16.mxu0 0
        %816 = vmatpush1.bf16.msra.mxu0 0
        %817 = vmatprep.subr.bf16.mxu0 0
        %818 = vmatpush1.bf16.msra.mxu0 0
        %819 = vmatprep.subr.bf16.mxu0 0
        %820 = vmatpush1.bf16.msra.mxu0 0
        %821 = vmatprep.subr.bf16.mxu0 0
        %822 = vmatpush1.bf16.msra.mxu0 0
        %823 = vmatprep.subr.bf16.mxu0 0
        %824 = vmatpush1.bf16.msra.mxu0 0
        %825 = vmatprep.subr.bf16.mxu0 0
        %826 = vmatpush1.bf16.msra.mxu0 0
        %827 = vmatprep.subr.bf16.mxu0 0
        %828 = vmatpush1.bf16.msra.mxu0 0
        %829 = vmatprep.subr.bf16.mxu0 0
        %830 = vmatpush1.bf16.msra.mxu0 0
        %831 = vmatprep.mubr.bf16.mxu0 0
        %832 = vmatmul.mubr.bf16.gmra.mrb[0].mxu0 %v706
        %v833 = vpop.f32.mrb[0].mxu0
        %v834 = vadd.f32 %v712, %v833
        %v835 = vpop.f32.mrb[0].mxu0
        %v836 = vadd.f32 %v716, %v835
        %v837 = vpop.f32.mrb[0].mxu0
        %v838 = vpop.f32.mrb[0].mxu0
        %839 = vdwg.mxu0
        %v840 = vmax.f32 %v834, 0.0
        %v841 = vmax.f32 %v836, 0.0
        %v842 = vld [vmem:[%s5] sm:$0xf]
        %v843 = vld [vmem:[%s5 + $0x4] sm:$0xf]
        %v844 = vld [vmem:[%s5 + $0x8] sm:$0xf]
        %v845 = vld [vmem:[%s5 + $0xc] sm:$0xf]
        %v846 = vld [vmem:[%s5 + $0x10] sm:$0xf]
        %v847 = vld [vmem:[%s5 + $0x14] sm:$0xf]
        %v848 = vld [vmem:[%s5 + $0x18] sm:$0xf]
        %v849 = vld [vmem:[%s5 + $0x1c] sm:$0xf]
        %v850 = vld [vmem:[%s5 + $0x20] sm:$0xf]
        %v851 = vld [vmem:[%s5 + $0x24] sm:$0xf]
        %v852 = vld [vmem:[%s5 + $0x28] sm:$0xf]
        %v853 = vld [vmem:[%s5 + $0x2c] sm:$0xf]
        %v854 = vld [vmem:[%s5 + $0x30] sm:$0xf]
        %v855 = vld [vmem:[%s5 + $0x34] sm:$0xf]
        %v856 = vld [vmem:[%s5 + $0x38] sm:$0xf]
        %v857 = vld [vmem:[%s5 + $0x3c] sm:$0xf]
        %v858 = vld [vmem:[%s5 + $0x40] sm:$0xf]
        %v859 = vld [vmem:[%s5 + $0x44] sm:$0xf]
        %v860 = vld [vmem:[%s5 + $0x48] sm:$0xf]
        %v861 = vld [vmem:[%s5 + $0x4c] sm:$0xf]
        %v862 = vld [vmem:[%s5 + $0x50] sm:$0xf]
        %v863 = vld [vmem:[%s5 + $0x54] sm:$0xf]
        %v864 = vld [vmem:[%s5 + $0x58] sm:$0xf]
        %v865 = vld [vmem:[%s5 + $0x5c] sm:$0xf]
        %v866 = vld [vmem:[%s5 + $0x60] sm:$0xf]
        %v867 = vld [vmem:[%s5 + $0x64] sm:$0xf]
        %v868 = vld [vmem:[%s5 + $0x68] sm:$0xf]
        %v869 = vld [vmem:[%s5 + $0x6c] sm:$0xf]
        %v870 = vld [vmem:[%s5 + $0x70] sm:$0xf]
        %v871 = vld [vmem:[%s5 + $0x74] sm:$0xf]
        %v872 = vld [vmem:[%s5 + $0x78] sm:$0xf]
        %v873 = vld [vmem:[%s5 + $0x7c] sm:$0xf]
        %v874 = vpack.c.bf16 %v840, %v840
        %v875 = vpack.c.bf16 %v841, %v841
        %v876 = vld [vmem:[%s6] sm:$0x1]
        %v878 = vlaneseq
        %v879 = vshrl.u32 %v878, 7
        %v880 = vsub.s32 0, %v879
        %v881 = vrot.slane %v876, %v880
        %v915 = vunpack.c.l.b16 %v842
        %v916 = vunpack.c.l.b16 %v843
        %v917 = vunpack.c.l.b16 %v844
        %v918 = vunpack.c.l.b16 %v845
        %v919 = vunpack.c.l.b16 %v846
        %v920 = vunpack.c.l.b16 %v847
        %v921 = vunpack.c.l.b16 %v848
        %v922 = vunpack.c.l.b16 %v849
        %v923 = vunpack.c.l.b16 %v850
        %v924 = vunpack.c.l.b16 %v851
        %v925 = vunpack.c.l.b16 %v852
        %v926 = vunpack.c.l.b16 %v853
        %v927 = vunpack.c.l.b16 %v854
        %v928 = vunpack.c.l.b16 %v855
        %v929 = vunpack.c.l.b16 %v856
        %v930 = vunpack.c.l.b16 %v857
        %v931 = vunpack.c.l.b16 %v858
        %v932 = vunpack.c.l.b16 %v859
        %v933 = vunpack.c.l.b16 %v860
        %v934 = vunpack.c.l.b16 %v861
        %v935 = vunpack.c.l.b16 %v862
        %v936 = vunpack.c.l.b16 %v863
        %v937 = vunpack.c.l.b16 %v864
        %v938 = vunpack.c.l.b16 %v865
        %v939 = vunpack.c.l.b16 %v866
        %v940 = vunpack.c.l.b16 %v867
        %v941 = vunpack.c.l.b16 %v868
        %v942 = vunpack.c.l.b16 %v869
        %v943 = vunpack.c.l.b16 %v870
        %v944 = vunpack.c.l.b16 %v871
        %v945 = vunpack.c.l.b16 %v872
        %v946 = vunpack.c.l.b16 %v873
        %v947 = vpack.c.b16 %v916, %v915
        %v948 = vpack.c.b16 %v918, %v917
        %v949 = vpack.c.b16 %v920, %v919
        %v950 = vpack.c.b16 %v922, %v921
        %v951 = vpack.c.b16 %v924, %v923
        %v952 = vpack.c.b16 %v926, %v925
        %v953 = vpack.c.b16 %v928, %v927
        %v954 = vpack.c.b16 %v930, %v929
        %v955 = vpack.c.b16 %v932, %v931
        %v956 = vpack.c.b16 %v934, %v933
        %v957 = vpack.c.b16 %v936, %v935
        %v958 = vpack.c.b16 %v938, %v937
        %v959 = vpack.c.b16 %v940, %v939
        %v960 = vpack.c.b16 %v942, %v941
        %v961 = vpack.c.b16 %v944, %v943
        %v962 = vpack.c.b16 %v946, %v945
        %979 = vmatprep.subr.bf16.mxu0 0
        %980 = vmatpush1.bf16.msra.mxu0 %v947
        %981 = vmatprep.subr.bf16.mxu0 0
        %982 = vmatpush1.bf16.msra.mxu0 %v948
        %983 = vmatprep.subr.bf16.mxu0 0
        %984 = vmatpush1.bf16.msra.mxu0 %v949
        %985 = vmatprep.subr.bf16.mxu0 0
        %986 = vmatpush1.bf16.msra.mxu0 %v950
        %987 = vmatprep.subr.bf16.mxu0 0
        %988 = vmatpush1.bf16.msra.mxu0 %v951
        %989 = vmatprep.subr.bf16.mxu0 0
        %990 = vmatpush1.bf16.msra.mxu0 %v952
        %991 = vmatprep.subr.bf16.mxu0 0
        %992 = vmatpush1.bf16.msra.mxu0 %v953
        %993 = vmatprep.subr.bf16.mxu0 0
        %994 = vmatpush1.bf16.msra.mxu0 %v954
        %995 = vmatprep.subr.bf16.mxu0 0
        %996 = vmatpush1.bf16.msra.mxu0 %v955
        %997 = vmatprep.subr.bf16.mxu0 0
        %998 = vmatpush1.bf16.msra.mxu0 %v956
        %999 = vmatprep.subr.bf16.mxu0 0
        %1000 = vmatpush1.bf16.msra.mxu0 %v957
        %1001 = vmatprep.subr.bf16.mxu0 0
        %1002 = vmatpush1.bf16.msra.mxu0 %v958
        %1003 = vmatprep.subr.bf16.mxu0 0
        %1004 = vmatpush1.bf16.msra.mxu0 %v959
        %1005 = vmatprep.subr.bf16.mxu0 0
        %1006 = vmatpush1.bf16.msra.mxu0 %v960
        %1007 = vmatprep.subr.bf16.mxu0 0
        %1008 = vmatpush1.bf16.msra.mxu0 %v961
        %1009 = vmatprep.subr.bf16.mxu0 0
        %1010 = vmatpush1.bf16.msra.mxu0 %v962
        %1011 = vmatprep.mubr.bf16.mxu0 %v875
        %1012 = vmatmul.mubr.bf16.gmra.mrb[0].mxu0 %v874
        %v1013 = vpop.f32.mrb[0].mxu0
        %v1014 = vadd.f32 %v881, %v1013
        %v1015 = vpop.f32.mrb[0].mxu0
        %v1016 = vpop.f32.mrb[0].mxu0
        %v1017 = vpop.f32.mrb[0].mxu0
        %1018 = vdwg.mxu0
        %v1019 = vadd.f32 %v1014, %v687
        %v1020 = vld [vmem:[%s7] sm:$0x1]
        %v1021 = vld [vmem:[%s8] sm:$0x1]
        %1022 = vadd.xlane.f32.xlu0 %v1019
        %v1023 = vpop.xlane.xlu0 %1022
        %v1024 = vrcp.pop 128.0
        %v1025 = vmul.f32 %v1023, %v1024
        %v1026 = vsub.f32 %v1019, %v1025
        %v1027 = vmul.f32 %v1026, %v1026
        %1028 = vadd.xlane.f32.xlu0 %v1027
        %v1029 = vpop.xlane.xlu0 %1028
        %v1030 = vmul.f32 %v1029, %v1024
        %v1031 = vadd.f32 %v1030, 1e-05
        %v1032 = vrsqrt.pop %v1031
        %v1033 = vmul.f32 %v1026, %v1032
        %v1035 = vlaneseq
        %v1036 = vshrl.u32 %v1035, 7
        %v1037 = vsub.s32 0, %v1036
        %v1038 = vrot.slane %v1020, %v1037
        %v1040 = vmul.f32 %v1033, %v1038
        %v1042 = vlaneseq
        %v1043 = vshrl.u32 %v1042, 7
        %v1044 = vsub.s32 0, %v1043
        %v1045 = vrot.slane %v1021, %v1044
        %v1047 = vadd.f32 %v1040, %v1045
        %v1048 = vld [vmem:[%s9] sm:$0xff]
        %v1049 = vld [vmem:[%s9 + $0x8] sm:$0xff]
        %v1050 = vld [vmem:[%s9 + $0x10] sm:$0xff]
        %v1051 = vld [vmem:[%s9 + $0x18] sm:$0xff]
        %v1052 = vld [vmem:[%s9 + $0x20] sm:$0xff]
        %v1053 = vld [vmem:[%s9 + $0x28] sm:$0xff]
        %v1054 = vld [vmem:[%s9 + $0x30] sm:$0xff]
        %v1055 = vld [vmem:[%s9 + $0x38] sm:$0xff]
        %v1056 = vld [vmem:[%s9 + $0x40] sm:$0xff]
        %v1057 = vld [vmem:[%s9 + $0x48] sm:$0xff]
        %v1058 = vld [vmem:[%s9 + $0x50] sm:$0xff]
        %v1059 = vld [vmem:[%s9 + $0x58] sm:$0xff]
        %v1060 = vld [vmem:[%s9 + $0x60] sm:$0xff]
        %v1061 = vld [vmem:[%s9 + $0x68] sm:$0xff]
        %v1062 = vld [vmem:[%s9 + $0x70] sm:$0xff]
        %v1063 = vld [vmem:[%s9 + $0x78] sm:$0xff]
        %v1064 = vpack.c.bf16 %v1047, %v1047
        %v1065 = vld [vmem:[%s10] sm:$0x3]
        %v1067 = vlaneseq
        %v1068 = vshrl.u32 %v1067, 7
        %v1069 = vsub.s32 0, %v1068
        %v1070 = vrot.slane %v1065, %v1069
        %v1071 = vlaneseq
        %v1072 = vshrl.u32 %v1071, 7
        %v1073 = vsub.s32 1, %v1072
        %v1074 = vrot.slane %v1065, %v1073
        %v1093 = vunpack.c.l.b16 %v1048
        %v1094 = vunpack.c.h.b16 %v1048
        %v1095 = vunpack.c.l.b16 %v1049
        %v1096 = vunpack.c.h.b16 %v1049
        %v1097 = vunpack.c.l.b16 %v1050
        %v1098 = vunpack.c.h.b16 %v1050
        %v1099 = vunpack.c.l.b16 %v1051
        %v1100 = vunpack.c.h.b16 %v1051
        %v1101 = vunpack.c.l.b16 %v1052
        %v1102 = vunpack.c.h.b16 %v1052
        %v1103 = vunpack.c.l.b16 %v1053
        %v1104 = vunpack.c.h.b16 %v1053
        %v1105 = vunpack.c.l.b16 %v1054
        %v1106 = vunpack.c.h.b16 %v1054
        %v1107 = vunpack.c.l.b16 %v1055
        %v1108 = vunpack.c.h.b16 %v1055
        %v1109 = vunpack.c.l.b16 %v1056
        %v1110 = vunpack.c.h.b16 %v1056
        %v1111 = vunpack.c.l.b16 %v1057
        %v1112 = vunpack.c.h.b16 %v1057
        %v1113 = vunpack.c.l.b16 %v1058
        %v1114 = vunpack.c.h.b16 %v1058
        %v1115 = vunpack.c.l.b16 %v1059
        %v1116 = vunpack.c.h.b16 %v1059
        %v1117 = vunpack.c.l.b16 %v1060
        %v1118 = vunpack.c.h.b16 %v1060
        %v1119 = vunpack.c.l.b16 %v1061
        %v1120 = vunpack.c.h.b16 %v1061
        %v1121 = vunpack.c.l.b16 %v1062
        %v1122 = vunpack.c.h.b16 %v1062
        %v1123 = vunpack.c.l.b16 %v1063
        %v1124 = vunpack.c.h.b16 %v1063
        %v1125 = vpack.c.b16 %v1095, %v1093
        %v1126 = vpack.c.b16 %v1096, %v1094
        %v1127 = vpack.c.b16 %v1099, %v1097
        %v1128 = vpack.c.b16 %v1100, %v1098
        %v1129 = vpack.c.b16 %v1103, %v1101
        %v1130 = vpack.c.b16 %v1104, %v1102
        %v1131 = vpack.c.b16 %v1107, %v1105
        %v1132 = vpack.c.b16 %v1108, %v1106
        %v1133 = vpack.c.b16 %v1111, %v1109
        %v1134 = vpack.c.b16 %v1112, %v1110
        %v1135 = vpack.c.b16 %v1115, %v1113
        %v1136 = vpack.c.b16 %v1116, %v1114
        %v1137 = vpack.c.b16 %v1119, %v1117
        %v1138 = vpack.c.b16 %v1120, %v1118
        %v1139 = vpack.c.b16 %v1123, %v1121
        %v1140 = vpack.c.b16 %v1124, %v1122
        %1157 = vmatprep.subr.bf16.mxu0 %v1126
        %1158 = vmatpush1.bf16.msra.mxu0 %v1125
        %1159 = vmatprep.subr.bf16.mxu0 %v1128
        %1160 = vmatpush1.bf16.msra.mxu0 %v1127
        %1161 = vmatprep.subr.bf16.mxu0 %v1130
        %1162 = vmatpush1.bf16.msra.mxu0 %v1129
        %1163 = vmatprep.subr.bf16.mxu0 %v1132
        %1164 = vmatpush1.bf16.msra.mxu0 %v1131
        %1165 = vmatprep.subr.bf16.mxu0 %v1134
        %1166 = vmatpush1.bf16.msra.mxu0 %v1133
        %1167 = vmatprep.subr.bf16.mxu0 %v1136
        %1168 = vmatpush1.bf16.msra.mxu0 %v1135
        %1169 = vmatprep.subr.bf16.mxu0 %v1138
        %1170 = vmatpush1.bf16.msra.mxu0 %v1137
        %1171 = vmatprep.subr.bf16.mxu0 %v1140
        %1172 = vmatpush1.bf16.msra.mxu0 %v1139
        %1173 = vmatprep.subr.bf16.mxu0 0
        %1174 = vmatpush1.bf16.msra.mxu0 0
        %1175 = vmatprep.subr.bf16.mxu0 0
        %1176 = vmatpush1.bf16.msra.mxu0 0
        %1177 = vmatprep.subr.bf16.mxu0 0
        %1178 = vmatpush1.bf16.msra.mxu0 0
        %1179 = vmatprep.subr.bf16.mxu0 0
        %1180 = vmatpush1.bf16.msra.mxu0 0
        %1181 = vmatprep.subr.bf16.mxu0 0
        %1182 = vmatpush1.bf16.msra.mxu0 0
        %1183 = vmatprep.subr.bf16.mxu0 0
        %1184 = vmatpush1.bf16.msra.mxu0 0
        %1185 = vmatprep.subr.bf16.mxu0 0
        %1186 = vmatpush1.bf16.msra.mxu0 0
        %1187 = vmatprep.subr.bf16.mxu0 0
        %1188 = vmatpush1.bf16.msra.mxu0 0
        %1189 = vmatprep.mubr.bf16.mxu0 0
        %1190 = vmatmul.mubr.bf16.gmra.mrb[0].mxu0 %v1064
        %v1191 = vpop.f32.mrb[0].mxu0
        %v1192 = vadd.f32 %v1070, %v1191
        %v1193 = vpop.f32.mrb[0].mxu0
        %v1194 = vadd.f32 %v1074, %v1193
        %v1195 = vpop.f32.mrb[0].mxu0
        %v1196 = vpop.f32.mrb[0].mxu0
        %1197 = vdwg.mxu0
        %v1198 = vmax.f32 %v1192, 0.0
        %v1199 = vmax.f32 %v1194, 0.0
        %v1200 = vld [vmem:[%s11] sm:$0xf]
        %v1201 = vld [vmem:[%s11 + $0x4] sm:$0xf]
        %v1202 = vld [vmem:[%s11 + $0x8] sm:$0xf]
        %v1203 = vld [vmem:[%s11 + $0xc] sm:$0xf]
        %v1204 = vld [vmem:[%s11 + $0x10] sm:$0xf]
        %v1205 = vld [vmem:[%s11 + $0x14] sm:$0xf]
        %v1206 = vld [vmem:[%s11 + $0x18] sm:$0xf]
        %v1207 = vld [vmem:[%s11 + $0x1c] sm:$0xf]
        %v1208 = vld [vmem:[%s11 + $0x20] sm:$0xf]
        %v1209 = vld [vmem:[%s11 + $0x24] sm:$0xf]
        %v1210 = vld [vmem:[%s11 + $0x28] sm:$0xf]
        %v1211 = vld [vmem:[%s11 + $0x2c] sm:$0xf]
        %v1212 = vld [vmem:[%s11 + $0x30] sm:$0xf]
        %v1213 = vld [vmem:[%s11 + $0x34] sm:$0xf]
        %v1214 = vld [vmem:[%s11 + $0x38] sm:$0xf]
        %v1215 = vld [vmem:[%s11 + $0x3c] sm:$0xf]
        %v1216 = vld [vmem:[%s11 + $0x40] sm:$0xf]
        %v1217 = vld [vmem:[%s11 + $0x44] sm:$0xf]
        %v1218 = vld [vmem:[%s11 + $0x48] sm:$0xf]
        %v1219 = vld [vmem:[%s11 + $0x4c] sm:$0xf]
        %v1220 = vld [vmem:[%s11 + $0x50] sm:$0xf]
        %v1221 = vld [vmem:[%s11 + $0x54] sm:$0xf]
        %v1222 = vld [vmem:[%s11 + $0x58] sm:$0xf]
        %v1223 = vld [vmem:[%s11 + $0x5c] sm:$0xf]
        %v1224 = vld [vmem:[%s11 + $0x60] sm:$0xf]
        %v1225 = vld [vmem:[%s11 + $0x64] sm:$0xf]
        %v1226 = vld [vmem:[%s11 + $0x68] sm:$0xf]
        %v1227 = vld [vmem:[%s11 + $0x6c] sm:$0xf]
        %v1228 = vld [vmem:[%s11 + $0x70] sm:$0xf]
        %v1229 = vld [vmem:[%s11 + $0x74] sm:$0xf]
        %v1230 = vld [vmem:[%s11 + $0x78] sm:$0xf]
        %v1231 = vld [vmem:[%s11 + $0x7c] sm:$0xf]
        %v1232 = vpack.c.bf16 %v1198, %v1198
        %v1233 = vpack.c.bf16 %v1199, %v1199
        %v1234 = vld [vmem:[%s12] sm:$0x1]
        %v1236 = vlaneseq
        %v1237 = vshrl.u32 %v1236, 7
        %v1238 = vsub.s32 0, %v1237
        %v1239 = vrot.slane %v1234, %v1238
        %v1273 = vunpack.c.l.b16 %v1200
        %v1274 = vunpack.c.l.b16 %v1201
        %v1275 = vunpack.c.l.b16 %v1202
        %v1276 = vunpack.c.l.b16 %v1203
        %v1277 = vunpack.c.l.b16 %v1204
        %v1278 = vunpack.c.l.b16 %v1205
        %v1279 = vunpack.c.l.b16 %v1206
        %v1280 = vunpack.c.l.b16 %v1207
        %v1281 = vunpack.c.l.b16 %v1208
        %v1282 = vunpack.c.l.b16 %v1209
        %v1283 = vunpack.c.l.b16 %v1210
        %v1284 = vunpack.c.l.b16 %v1211
        %v1285 = vunpack.c.l.b16 %v1212
        %v1286 = vunpack.c.l.b16 %v1213
        %v1287 = vunpack.c.l.b16 %v1214
        %v1288 = vunpack.c.l.b16 %v1215
        %v1289 = vunpack.c.l.b16 %v1216
        %v1290 = vunpack.c.l.b16 %v1217
        %v1291 = vunpack.c.l.b16 %v1218
        %v1292 = vunpack.c.l.b16 %v1219
        %v1293 = vunpack.c.l.b16 %v1220
        %v1294 = vunpack.c.l.b16 %v1221
        %v1295 = vunpack.c.l.b16 %v1222
        %v1296 = vunpack.c.l.b16 %v1223
        %v1297 = vunpack.c.l.b16 %v1224
        %v1298 = vunpack.c.l.b16 %v1225
        %v1299 = vunpack.c.l.b16 %v1226
        %v1300 = vunpack.c.l.b16 %v1227
        %v1301 = vunpack.c.l.b16 %v1228
        %v1302 = vunpack.c.l.b16 %v1229
        %v1303 = vunpack.c.l.b16 %v1230
        %v1304 = vunpack.c.l.b16 %v1231
        %v1305 = vpack.c.b16 %v1274, %v1273
        %v1306 = vpack.c.b16 %v1276, %v1275
        %v1307 = vpack.c.b16 %v1278, %v1277
        %v1308 = vpack.c.b16 %v1280, %v1279
        %v1309 = vpack.c.b16 %v1282, %v1281
        %v1310 = vpack.c.b16 %v1284, %v1283
        %v1311 = vpack.c.b16 %v1286, %v1285
        %v1312 = vpack.c.b16 %v1288, %v1287
        %v1313 = vpack.c.b16 %v1290, %v1289
        %v1314 = vpack.c.b16 %v1292, %v1291
        %v1315 = vpack.c.b16 %v1294, %v1293
        %v1316 = vpack.c.b16 %v1296, %v1295
        %v1317 = vpack.c.b16 %v1298, %v1297
        %v1318 = vpack.c.b16 %v1300, %v1299
        %v1319 = vpack.c.b16 %v1302, %v1301
        %v1320 = vpack.c.b16 %v1304, %v1303
        %1337 = vmatprep.subr.bf16.mxu0 0
        %1338 = vmatpush1.bf16.msra.mxu0 %v1305
        %1339 = vmatprep.subr.bf16.mxu0 0
        %1340 = vmatpush1.bf16.msra.mxu0 %v1306
        %1341 = vmatprep.subr.bf16.mxu0 0
        %1342 = vmatpush1.bf16.msra.mxu0 %v1307
        %1343 = vmatprep.subr.bf16.mxu0 0
        %1344 = vmatpush1.bf16.msra.mxu0 %v1308
        %1345 = vmatprep.subr.bf16.mxu0 0
        %1346 = vmatpush1.bf16.msra.mxu0 %v1309
        %1347 = vmatprep.subr.bf16.mxu0 0
        %1348 = vmatpush1.bf16.msra.mxu0 %v1310
        %1349 = vmatprep.subr.bf16.mxu0 0
        %1350 = vmatpush1.bf16.msra.mxu0 %v1311
        %1351 = vmatprep.subr.bf16.mxu0 0
        %1352 = vmatpush1.bf16.msra.mxu0 %v1312
        %1353 = vmatprep.subr.bf16.mxu0 0
        %1354 = vmatpush1.bf16.msra.mxu0 %v1313
        %1355 = vmatprep.subr.bf16.mxu0 0
        %1356 = vmatpush1.bf16.msra.mxu0 %v1314
        %1357 = vmatprep.subr.bf16.mxu0 0
        %1358 = vmatpush1.bf16.msra.mxu0 %v1315
        %1359 = vmatprep.subr.bf16.mxu0 0
        %1360 = vmatpush1.bf16.msra.mxu0 %v1316
        %1361 = vmatprep.subr.bf16.mxu0 0
        %1362 = vmatpush1.bf16.msra.mxu0 %v1317
        %1363 = vmatprep.subr.bf16.mxu0 0
        %1364 = vmatpush1.bf16.msra.mxu0 %v1318
        %1365 = vmatprep.subr.bf16.mxu0 0
        %1366 = vmatpush1.bf16.msra.mxu0 %v1319
        %1367 = vmatprep.subr.bf16.mxu0 0
        %1368 = vmatpush1.bf16.msra.mxu0 %v1320
        %1369 = vmatprep.mubr.bf16.mxu0 %v1233
        %1370 = vmatmul.mubr.bf16.gmra.mrb[0].mxu0 %v1232
        %v1371 = vpop.f32.mrb[0].mxu0
        %v1372 = vadd.f32 %v1239, %v1371
        %v1373 = vpop.f32.mrb[0].mxu0
        %v1374 = vpop.f32.mrb[0].mxu0
        %v1375 = vpop.f32.mrb[0].mxu0
        %1376 = vdwg.mxu0
        %v1377 = vadd.f32 %v1372, %v1047
        %v1378 = vld [vmem:[%s13] sm:$0x1]
        %v1379 = vld [vmem:[%s14] sm:$0x1]
        %1380 = vadd.xlane.f32.xlu0 %v1377
        %v1381 = vpop.xlane.xlu0 %1380
        %v1382 = vmul.f32 %v1381, %v1024
        %v1383 = vsub.f32 %v1377, %v1382
        %v1384 = vmul.f32 %v1383, %v1383
        %1385 = vadd.xlane.f32.xlu0 %v1384
        %v1386 = vpop.xlane.xlu0 %1385
        %v1387 = vmul.f32 %v1386, %v1024
        %v1388 = vadd.f32 %v1387, 1e-05
        %v1389 = vrsqrt.pop %v1388
        %v1390 = vmul.f32 %v1383, %v1389
        %v1392 = vlaneseq
        %v1393 = vshrl.u32 %v1392, 7
        %v1394 = vsub.s32 0, %v1393
        %v1395 = vrot.slane %v1378, %v1394
        %v1397 = vmul.f32 %v1390, %v1395
        %v1399 = vlaneseq
        %v1400 = vshrl.u32 %v1399, 7
        %v1401 = vsub.s32 0, %v1400
        %v1402 = vrot.slane %v1379, %v1401
        %v1404 = vadd.f32 %v1397, %v1402
        %1405 = vst [vmem:[%s584] sm:$0xff] %v1404
        %v1406 = vld [vmem:[%s15] sm:$0xff]
        %v1407 = vld [vmem:[%s15 + $0x8] sm:$0xff]
        %v1408 = vld [vmem:[%s15 + $0x10] sm:$0xff]
        %v1409 = vld [vmem:[%s15 + $0x18] sm:$0xff]
        %v1410 = vld [vmem:[%s15 + $0x20] sm:$0xff]
        %v1411 = vld [vmem:[%s15 + $0x28] sm:$0xff]
        %v1412 = vld [vmem:[%s15 + $0x30] sm:$0xff]
        %v1413 = vld [vmem:[%s15 + $0x38] sm:$0xff]
        %v1414 = vld [vmem:[%s15 + $0x40] sm:$0xff]
        %v1415 = vld [vmem:[%s15 + $0x48] sm:$0xff]
        %v1416 = vld [vmem:[%s15 + $0x50] sm:$0xff]
        %v1417 = vld [vmem:[%s15 + $0x58] sm:$0xff]
        %v1418 = vld [vmem:[%s15 + $0x60] sm:$0xff]
        %v1419 = vld [vmem:[%s15 + $0x68] sm:$0xff]
        %v1420 = vld [vmem:[%s15 + $0x70] sm:$0xff]
        %v1421 = vld [vmem:[%s15 + $0x78] sm:$0xff]
        %v1422 = vpack.c.bf16 %v1404, %v1404
        %v1423 = vld [vmem:[%s16] sm:$0x3]
        %v1425 = vlaneseq
        %v1426 = vshrl.u32 %v1425, 7
        %v1427 = vsub.s32 0, %v1426
        %v1428 = vrot.slane %v1423, %v1427
        %v1429 = vlaneseq
        %v1430 = vshrl.u32 %v1429, 7
        %v1431 = vsub.s32 1, %v1430
        %v1432 = vrot.slane %v1423, %v1431
        %v1451 = vunpack.c.l.b16 %v1406
        %v1452 = vunpack.c.h.b16 %v1406
        %v1453 = vunpack.c.l.b16 %v1407
        %v1454 = vunpack.c.h.b16 %v1407
        %v1455 = vunpack.c.l.b16 %v1408
        %v1456 = vunpack.c.h.b16 %v1408
        %v1457 = vunpack.c.l.b16 %v1409
        %v1458 = vunpack.c.h.b16 %v1409
        %v1459 = vunpack.c.l.b16 %v1410
        %v1460 = vunpack.c.h.b16 %v1410
        %v1461 = vunpack.c.l.b16 %v1411
        %v1462 = vunpack.c.h.b16 %v1411
        %v1463 = vunpack.c.l.b16 %v1412
        %v1464 = vunpack.c.h.b16 %v1412
        %v1465 = vunpack.c.l.b16 %v1413
        %v1466 = vunpack.c.h.b16 %v1413
        %v1467 = vunpack.c.l.b16 %v1414
        %v1468 = vunpack.c.h.b16 %v1414
        %v1469 = vunpack.c.l.b16 %v1415
        %v1470 = vunpack.c.h.b16 %v1415
        %v1471 = vunpack.c.l.b16 %v1416
        %v1472 = vunpack.c.h.b16 %v1416
        %v1473 = vunpack.c.l.b16 %v1417
        %v1474 = vunpack.c.h.b16 %v1417
        %v1475 = vunpack.c.l.b16 %v1418
        %v1476 = vunpack.c.h.b16 %v1418
        %v1477 = vunpack.c.l.b16 %v1419
        %v1478 = vunpack.c.h.b16 %v1419
        %v1479 = vunpack.c.l.b16 %v1420
        %v1480 = vunpack.c.h.b16 %v1420
        %v1481 = vunpack.c.l.b16 %v1421
        %v1482 = vunpack.c.h.b16 %v1421
        %v1483 = vpack.c.b16 %v1453, %v1451
        %v1484 = vpack.c.b16 %v1454, %v1452
        %v1485 = vpack.c.b16 %v1457, %v1455
        %v1486 = vpack.c.b16 %v1458, %v1456
        %v1487 = vpack.c.b16 %v1461, %v1459
        %v1488 = vpack.c.b16 %v1462, %v1460
        %v1489 = vpack.c.b16 %v1465, %v1463
        %v1490 = vpack.c.b16 %v1466, %v1464
        %v1491 = vpack.c.b16 %v1469, %v1467
        %v1492 = vpack.c.b16 %v1470, %v1468
        %v1493 = vpack.c.b16 %v1473, %v1471
        %v1494 = vpack.c.b16 %v1474, %v1472
        %v1495 = vpack.c.b16 %v1477, %v1475
        %v1496 = vpack.c.b16 %v1478, %v1476
        %v1497 = vpack.c.b16 %v1481, %v1479
        %v1498 = vpack.c.b16 %v1482, %v1480
        %1515 = vmatprep.subr.bf16.mxu0 %v1484
        %1516 = vmatpush1.bf16.msra.mxu0 %v1483
        %1517 = vmatprep.subr.bf16.mxu0 %v1486
        %1518 = vmatpush1.bf16.msra.mxu0 %v1485
        %1519 = vmatprep.subr.bf16.mxu0 %v1488
        %1520 = vmatpush1.bf16.msra.mxu0 %v1487
        %1521 = vmatprep.subr.bf16.mxu0 %v1490
        %1522 = vmatpush1.bf16.msra.mxu0 %v1489
        %1523 = vmatprep.subr.bf16.mxu0 %v1492
        %1524 = vmatpush1.bf16.msra.mxu0 %v1491
        %1525 = vmatprep.subr.bf16.mxu0 %v1494
        %1526 = vmatpush1.bf16.msra.mxu0 %v1493
        %1527 = vmatprep.subr.bf16.mxu0 %v1496
        %1528 = vmatpush1.bf16.msra.mxu0 %v1495
        %1529 = vmatprep.subr.bf16.mxu0 %v1498
        %1530 = vmatpush1.bf16.msra.mxu0 %v1497
        %1531 = vmatprep.subr.bf16.mxu0 0
        %1532 = vmatpush1.bf16.msra.mxu0 0
        %1533 = vmatprep.subr.bf16.mxu0 0
        %1534 = vmatpush1.bf16.msra.mxu0 0
        %1535 = vmatprep.subr.bf16.mxu0 0
        %1536 = vmatpush1.bf16.msra.mxu0 0
        %1537 = vmatprep.subr.bf16.mxu0 0
        %1538 = vmatpush1.bf16.msra.mxu0 0
        %1539 = vmatprep.subr.bf16.mxu0 0
        %1540 = vmatpush1.bf16.msra.mxu0 0
        %1541 = vmatprep.subr.bf16.mxu0 0
        %1542 = vmatpush1.bf16.msra.mxu0 0
        %1543 = vmatprep.subr.bf16.mxu0 0
        %1544 = vmatpush1.bf16.msra.mxu0 0
        %1545 = vmatprep.subr.bf16.mxu0 0
        %1546 = vmatpush1.bf16.msra.mxu0 0
        %1547 = vmatprep.mubr.bf16.mxu0 0
        %1548 = vmatmul.mubr.bf16.gmra.mrb[0].mxu0 %v1422
        %v1549 = vpop.f32.mrb[0].mxu0
        %v1550 = vadd.f32 %v1428, %v1549
        %v1551 = vpop.f32.mrb[0].mxu0
        %v1552 = vadd.f32 %v1432, %v1551
        %v1553 = vpop.f32.mrb[0].mxu0
        %v1554 = vpop.f32.mrb[0].mxu0
        %1555 = vdwg.mxu0
        %1556 = vst [vmem:[%s575] sm:$0xff] %v1550
        %1557 = vst [vmem:[%s575 + $0x8] sm:$0xff] %v1552
        %p1558 = scmp.lt.s32.totalorder %s33, 1
        %s1559 = scalar_select %p1558, %s33, 1
        %s1560 = smul.addr %s1559, 8
        %s1561 = scalar_lea.vmem %s17, %s1560
        %s1562 = sand.u32 %s429, 1
        %s1563 = scalar_lea.sflag [#allocation3], %s1562
        %s1564 = sand.u32 %s429, 1
        %s1565 = smul.addr %s1564, 16
        %s1566 = scalar_lea.vmem [#allocation2], %s1565
        // Predicated region
        $region89: #{ctg_forward.8} parent=87 // pred_check
          %p1567 = pneg %p413
        $region90: #{ctg_forward.8} parent=87 // pred_check_branch
          %1569 = sbr.rel (%p1567) target = $region92
        $region91: #{ctg_forward.8} parent=87 // pred_region
          _
        $region92: #{ctg_forward.8} parent=87 // pred_fallthru
          _
        // Predicated region
        $region93: #{ctg_forward.8} parent=87 // pred_check
          %p1570 = pneg %p439
        $region94: #{ctg_forward.8} parent=87 // pred_check_branch
          %1572 = sbr.rel (%p1570) target = $region96
        $region95: #{ctg_forward.8} parent=87 // pred_region
          %s1574 = ssub.s32 256, 256
          %1575 = vsyncadd %s1563, %s1574
          %s1576 = smul.addr %s33, 2
          %s1577 = smul.addr %s1576, 128
          %s1578 = scalar_lea.hbm %s18, %s1577
          %s1580 = sshll.u32 %s1566, 4
          %s1581 = int_to_ptr.vmem [resolvable:$true] %s1580
          %1583 = dma.vmem_to_hbm [thread:$0]  %s1581, 256, %s1578, %s1563
        $region96: #{ctg_forward.8} parent=87 // pred_fallthru
          _
      $region88: #{ctg_forward.8} parent=5 // pred_fallthru
        _
      %p1584 = scmp.le.s32.totalorder 2, %s28
      // Predicated region
      $region97: #{ctg_forward.8} parent=5 // pred_check
        %p1585 = pneg %p1584
      $region98: #{ctg_forward.8} parent=5 // pred_check_branch
        %1587 = sbr.rel (%p1585) target = $region100
      $region99: #{ctg_forward.8} parent=5 // pred_region
        %s1588 = ssub.s32 %s28, 2
        // Predicated region
        $region101: #{ctg_forward.8} parent=99 // pred_check
          %p1589 = pneg %p419
        $region102: #{ctg_forward.8} parent=99 // pred_check_branch
          %1591 = sbr.rel (%p1589) target = $region104
        $region103: #{ctg_forward.8} parent=99 // pred_region
          %p1592 = scmp.lt.s32.totalorder %s34, 1
          %s1593 = scalar_select %p1592, %s34, 1
          %s1594 = smul.addr %s1593, 8
          %s1595 = scalar_lea.vmem %s17, %s1594
        $region104: #{ctg_forward.8} parent=99 // pred_fallthru
          _
        // Predicated region
        $region105: #{ctg_forward.8} parent=99 // pred_check
          %p1596 = pneg %p445
        $region106: #{ctg_forward.8} parent=99 // pred_check_branch
          %1598 = sbr.rel (%p1596) target = $region108
        $region107: #{ctg_forward.8} parent=99 // pred_region
          %s1599 = sand.u32 %s430, 1
          %s1600 = scalar_lea.sflag [#allocation3], %s1599
          %s1601 = sand.u32 %s430, 1
          %s1602 = smul.addr %s1601, 16
          %s1603 = scalar_lea.vmem [#allocation2], %s1602
          %1604 = dma.done %s1600, 256
        $region108: #{ctg_forward.8} parent=99 // pred_fallthru
          _
      $region100: #{ctg_forward.8} parent=5 // pred_fallthru
        _
    $region6: #{ctg_forward.8} parent=1 // loop_footer
      %s32 = sadd.s32 1, %s28
    $region7: #{ctg_forward.8} parent=1 // loop_footer_branch
      %27 = sbr.rel target = $region3
    $region8: #{ctg_forward.8} parent=1 // loop_exit
      _
    %1605 = vsyncpa [#allocation3], 1
    %s1606 = scalar_lea.sflag [#allocation3], 1
    %1607 = vsyncpa %s1606, 1

// kernel: ctg_forward.5
$region0: #{ctg_forward.5}
  #allocation0 [shape = 'u32[]', space=smem, size = 0x4, offset = 0x4, fixed_abs, tag = 'smem constant byte address 0x4 - core index']
  #allocation1 [shape = 'u32[144,128]{1,0:T(1,128)}', space=vmem, size = 0x12000, scoped, tag = 'internal scratch']
  %s0 = inlined_call_operand.vmem [shape: f32[2,8,128], index: 0, kind: input, shape index: {}]
  %s1 = inlined_call_operand.vmem [shape: s32[2,1,8], index: 1, kind: input, shape index: {}]
  %s2 = inlined_call_operand.vmem [shape: bf16[128,384], index: 2, kind: input, shape index: {}]
  %s3 = inlined_call_operand.vmem [shape: f32[1,384], index: 3, kind: input, shape index: {}]
  %s4 = inlined_call_operand.vmem [shape: f32[1,128], index: 4, kind: input, shape index: {}, may-alias: {4,10}]
  %s5 = inlined_call_operand.vmem [shape: f32[1,128], index: 5, kind: input, shape index: {}, may-alias: {5,11}]
  %s6 = inlined_call_operand.vmem [shape: bf16[128,256], index: 6, kind: input, shape index: {}]
  %s7 = inlined_call_operand.vmem [shape: f32[1,256], index: 7, kind: input, shape index: {}]
  %s8 = inlined_call_operand.vmem [shape: bf16[256,128], index: 8, kind: input, shape index: {}]
  %s9 = inlined_call_operand.vmem [shape: f32[1,128], index: 9, kind: input, shape index: {}]
  %s10 = inlined_call_operand.vmem [shape: f32[1,128], index: 10, kind: input, shape index: {}, may-alias: {4,10}]
  %s11 = inlined_call_operand.vmem [shape: f32[1,128], index: 11, kind: input, shape index: {}, may-alias: {5,11}]
  %s12 = inlined_call_operand.vmem [shape: f32[2,8,128], index: 12, kind: output, shape index: {}]
  %s13 = sld [smem:[#allocation0]]
  $region81: #{ctg_forward.5} parent=0
    _
  %s15 = ssub.s32 1, %s13
  %s16 = scalar_select 0, %s15, %s13
  loop: start=0, step=1, limit=4
  $region2: #{ctg_forward.5} parent=0 // loop_pre_header
    _
  $region3: #{ctg_forward.5} parent=0 // loop_header
    %s18 = sphi 0, %s22
    %p19 = scmp.ge.s32.totalorder %s18, 4
    %s28 = sphi 0, %s30
    %s31 = sphi 0, %s28
    %s32 = sphi 0, %s31
    %s48 = sphi 0, %s32
    %s54 = sphi 0, %s56
    %s57 = sphi 0, %s54
    %s58 = sphi 0, %s57
    %s74 = sphi 0, %s58
    %s78 = sphi 0, %s78
    %s80 = sphi 0, %s78
    %s81 = sphi 0, %s80
    %s95 = sphi 0, %s81
    %s99 = sphi 0, %s99
    %s101 = sphi 0, %s99
    %s102 = sphi 0, %s101
    %s116 = sphi 0, %s102
    %s120 = sphi 0, %s120
    %s122 = sphi 0, %s120
    %s123 = sphi 0, %s122
    %s137 = sphi 0, %s123
    %s141 = sphi 0, %s141
    %s143 = sphi 0, %s141
    %s144 = sphi 0, %s143
    %s158 = sphi 0, %s144
    %s162 = sphi 0, %s162
    %s164 = sphi 0, %s162
    %s165 = sphi 0, %s164
    %s179 = sphi 0, %s165
    %s183 = sphi 0, %s183
    %s185 = sphi 0, %s183
    %s186 = sphi 0, %s185
    %s200 = sphi 0, %s186
    %s204 = sphi 0, %s204
    %s206 = sphi 0, %s204
    %s207 = sphi 0, %s206
    %s221 = sphi 0, %s207
    %s225 = sphi 0, %s225
    %s227 = sphi 0, %s225
    %s228 = sphi 0, %s227
    %s242 = sphi 0, %s228
    %s246 = sphi 0, %s246
    %s248 = sphi 0, %s246
    %s249 = sphi 0, %s248
    %s263 = sphi 0, %s249
    %s267 = sphi 0, %s267
    %s269 = sphi 0, %s267
    %s270 = sphi 0, %s269
    %s284 = sphi 0, %s270
    %s290 = sphi 0, %s292
    %s293 = sphi 0, %s290
    %s294 = sphi 0, %s293
    %s310 = sphi 0, %s294
  $region4: #{ctg_forward.5} parent=0 // loop_header_branch
    %21 = sbr.rel (%p19) target = $region8
  $region5: #{ctg_forward.5} parent=0 // loop_body
    %s23 = ssub.s32 %s18, 1
    %s24 = ssub.s32 %s18, 2
    %s25 = sadd.s32 %s18, 1
    %s26 = ssub.s32 %s18, %s25
    %p27 = scmp.eq.s32.totalorder %s26, 0
    %s29 = sadd.s32 %s28, 1
    %s30 = scalar_select %p27, %s28, %s29
    %p33 = pneg %p27
    %p34 = scmp.eq.s32.totalorder %s18, 1
    %p35 = por %p33, %p34
    %p36 = scmp.ne.s32.totalorder %s28, %s31
    %p37 = scmp.eq.s32.totalorder %s18, 0
    %p38 = por %p36, %p37
    %p39 = scmp.ne.s32.totalorder %s28, %s31
    %p40 = scmp.eq.s32.totalorder %s23, 1
    %p41 = por %p39, %p40
    %p42 = scmp.ne.s32.totalorder %s31, %s32
    %p43 = scmp.eq.s32.totalorder %s23, 0
    %p44 = por %p42, %p43
    %p45 = scmp.ne.s32.totalorder %s31, %s32
    %p46 = scmp.eq.s32.totalorder %s24, 1
    %p47 = por %p45, %p46
    %p49 = scmp.ne.s32.totalorder %s32, %s48
    %p50 = scmp.eq.s32.totalorder %s24, 0
    %p51 = por %p49, %p50
    %s52 = ssub.s32 %s18, %s25
    %p53 = scmp.eq.s32.totalorder %s52, 0
    %s55 = sadd.s32 %s54, 1
    %s56 = scalar_select %p53, %s54, %s55
    %p59 = pneg %p53
    %p60 = scmp.eq.s32.totalorder %s18, 1
    %p61 = por %p59, %p60
    %p62 = scmp.ne.s32.totalorder %s54, %s57
    %p63 = scmp.eq.s32.totalorder %s18, 0
    %p64 = por %p62, %p63
    %p65 = scmp.ne.s32.totalorder %s54, %s57
    %p66 = scmp.eq.s32.totalorder %s23, 1
    %p67 = por %p65, %p66
    %p68 = scmp.ne.s32.totalorder %s57, %s58
    %p69 = scmp.eq.s32.totalorder %s23, 0
    %p70 = por %p68, %p69
    %p71 = scmp.ne.s32.totalorder %s57, %s58
    %p72 = scmp.eq.s32.totalorder %s24, 1
    %p73 = por %p71, %p72
    %p75 = scmp.ne.s32.totalorder %s58, %s74
    %p76 = scmp.eq.s32.totalorder %s24, 0
    %p77 = por %p75, %p76
    %s79 = sadd.s32 %s78, 1
    %p82 = scmp.eq.s32.totalorder %s18, 1
    %p83 = scmp.ne.s32.totalorder %s78, %s80
    %p84 = scmp.eq.s32.totalorder %s18, 0
    %p85 = por %p83, %p84
    %p86 = scmp.ne.s32.totalorder %s78, %s80
    %p87 = scmp.eq.s32.totalorder %s23, 1
    %p88 = por %p86, %p87
    %p89 = scmp.ne.s32.totalorder %s80, %s81
    %p90 = scmp.eq.s32.totalorder %s23, 0
    %p91 = por %p89, %p90
    %p92 = scmp.ne.s32.totalorder %s80, %s81
    %p93 = scmp.eq.s32.totalorder %s24, 1
    %p94 = por %p92, %p93
    %p96 = scmp.ne.s32.totalorder %s81, %s95
    %p97 = scmp.eq.s32.totalorder %s24, 0
    %p98 = por %p96, %p97
    %s100 = sadd.s32 %s99, 1
    %p103 = scmp.eq.s32.totalorder %s18, 1
    %p104 = scmp.ne.s32.totalorder %s99, %s101
    %p105 = scmp.eq.s32.totalorder %s18, 0
    %p106 = por %p104, %p105
    %p107 = scmp.ne.s32.totalorder %s99, %s101
    %p108 = scmp.eq.s32.totalorder %s23, 1
    %p109 = por %p107, %p108
    %p110 = scmp.ne.s32.totalorder %s101, %s102
    %p111 = scmp.eq.s32.totalorder %s23, 0
    %p112 = por %p110, %p111
    %p113 = scmp.ne.s32.totalorder %s101, %s102
    %p114 = scmp.eq.s32.totalorder %s24, 1
    %p115 = por %p113, %p114
    %p117 = scmp.ne.s32.totalorder %s102, %s116
    %p118 = scmp.eq.s32.totalorder %s24, 0
    %p119 = por %p117, %p118
    %s121 = sadd.s32 %s120, 1
    %p124 = scmp.eq.s32.totalorder %s18, 1
    %p125 = scmp.ne.s32.totalorder %s120, %s122
    %p126 = scmp.eq.s32.totalorder %s18, 0
    %p127 = por %p125, %p126
    %p128 = scmp.ne.s32.totalorder %s120, %s122
    %p129 = scmp.eq.s32.totalorder %s23, 1
    %p130 = por %p128, %p129
    %p131 = scmp.ne.s32.totalorder %s122, %s123
    %p132 = scmp.eq.s32.totalorder %s23, 0
    %p133 = por %p131, %p132
    %p134 = scmp.ne.s32.totalorder %s122, %s123
    %p135 = scmp.eq.s32.totalorder %s24, 1
    %p136 = por %p134, %p135
    %p138 = scmp.ne.s32.totalorder %s123, %s137
    %p139 = scmp.eq.s32.totalorder %s24, 0
    %p140 = por %p138, %p139
    %s142 = sadd.s32 %s141, 1
    %p145 = scmp.eq.s32.totalorder %s18, 1
    %p146 = scmp.ne.s32.totalorder %s141, %s143
    %p147 = scmp.eq.s32.totalorder %s18, 0
    %p148 = por %p146, %p147
    %p149 = scmp.ne.s32.totalorder %s141, %s143
    %p150 = scmp.eq.s32.totalorder %s23, 1
    %p151 = por %p149, %p150
    %p152 = scmp.ne.s32.totalorder %s143, %s144
    %p153 = scmp.eq.s32.totalorder %s23, 0
    %p154 = por %p152, %p153
    %p155 = scmp.ne.s32.totalorder %s143, %s144
    %p156 = scmp.eq.s32.totalorder %s24, 1
    %p157 = por %p155, %p156
    %p159 = scmp.ne.s32.totalorder %s144, %s158
    %p160 = scmp.eq.s32.totalorder %s24, 0
    %p161 = por %p159, %p160
    %s163 = sadd.s32 %s162, 1
    %p166 = scmp.eq.s32.totalorder %s18, 1
    %p167 = scmp.ne.s32.totalorder %s162, %s164
    %p168 = scmp.eq.s32.totalorder %s18, 0
    %p169 = por %p167, %p168
    %p170 = scmp.ne.s32.totalorder %s162, %s164
    %p171 = scmp.eq.s32.totalorder %s23, 1
    %p172 = por %p170, %p171
    %p173 = scmp.ne.s32.totalorder %s164, %s165
    %p174 = scmp.eq.s32.totalorder %s23, 0
    %p175 = por %p173, %p174
    %p176 = scmp.ne.s32.totalorder %s164, %s165
    %p177 = scmp.eq.s32.totalorder %s24, 1
    %p178 = por %p176, %p177
    %p180 = scmp.ne.s32.totalorder %s165, %s179
    %p181 = scmp.eq.s32.totalorder %s24, 0
    %p182 = por %p180, %p181
    %s184 = sadd.s32 %s183, 1
    %p187 = scmp.eq.s32.totalorder %s18, 1
    %p188 = scmp.ne.s32.totalorder %s183, %s185
    %p189 = scmp.eq.s32.totalorder %s18, 0
    %p190 = por %p188, %p189
    %p191 = scmp.ne.s32.totalorder %s183, %s185
    %p192 = scmp.eq.s32.totalorder %s23, 1
    %p193 = por %p191, %p192
    %p194 = scmp.ne.s32.totalorder %s185, %s186
    %p195 = scmp.eq.s32.totalorder %s23, 0
    %p196 = por %p194, %p195
    %p197 = scmp.ne.s32.totalorder %s185, %s186
    %p198 = scmp.eq.s32.totalorder %s24, 1
    %p199 = por %p197, %p198
    %p201 = scmp.ne.s32.totalorder %s186, %s200
    %p202 = scmp.eq.s32.totalorder %s24, 0
    %p203 = por %p201, %p202
    %s205 = sadd.s32 %s204, 1
    %p208 = scmp.eq.s32.totalorder %s18, 1
    %p209 = scmp.ne.s32.totalorder %s204, %s206
    %p210 = scmp.eq.s32.totalorder %s18, 0
    %p211 = por %p209, %p210
    %p212 = scmp.ne.s32.totalorder %s204, %s206
    %p213 = scmp.eq.s32.totalorder %s23, 1
    %p214 = por %p212, %p213
    %p215 = scmp.ne.s32.totalorder %s206, %s207
    %p216 = scmp.eq.s32.totalorder %s23, 0
    %p217 = por %p215, %p216
    %p218 = scmp.ne.s32.totalorder %s206, %s207
    %p219 = scmp.eq.s32.totalorder %s24, 1
    %p220 = por %p218, %p219
    %p222 = scmp.ne.s32.totalorder %s207, %s221
    %p223 = scmp.eq.s32.totalorder %s24, 0
    %p224 = por %p222, %p223
    %s226 = sadd.s32 %s225, 1
    %p229 = scmp.eq.s32.totalorder %s18, 1
    %p230 = scmp.ne.s32.totalorder %s225, %s227
    %p231 = scmp.eq.s32.totalorder %s18, 0
    %p232 = por %p230, %p231
    %p233 = scmp.ne.s32.totalorder %s225, %s227
    %p234 = scmp.eq.s32.totalorder %s23, 1
    %p235 = por %p233, %p234
    %p236 = scmp.ne.s32.totalorder %s227, %s228
    %p237 = scmp.eq.s32.totalorder %s23, 0
    %p238 = por %p236, %p237
    %p239 = scmp.ne.s32.totalorder %s227, %s228
    %p240 = scmp.eq.s32.totalorder %s24, 1
    %p241 = por %p239, %p240
    %p243 = scmp.ne.s32.totalorder %s228, %s242
    %p244 = scmp.eq.s32.totalorder %s24, 0
    %p245 = por %p243, %p244
    %s247 = sadd.s32 %s246, 1
    %p250 = scmp.eq.s32.totalorder %s18, 1
    %p251 = scmp.ne.s32.totalorder %s246, %s248
    %p252 = scmp.eq.s32.totalorder %s18, 0
    %p253 = por %p251, %p252
    %p254 = scmp.ne.s32.totalorder %s246, %s248
    %p255 = scmp.eq.s32.totalorder %s23, 1
    %p256 = por %p254, %p255
    %p257 = scmp.ne.s32.totalorder %s248, %s249
    %p258 = scmp.eq.s32.totalorder %s23, 0
    %p259 = por %p257, %p258
    %p260 = scmp.ne.s32.totalorder %s248, %s249
    %p261 = scmp.eq.s32.totalorder %s24, 1
    %p262 = por %p260, %p261
    %p264 = scmp.ne.s32.totalorder %s249, %s263
    %p265 = scmp.eq.s32.totalorder %s24, 0
    %p266 = por %p264, %p265
    %s268 = sadd.s32 %s267, 1
    %p271 = scmp.eq.s32.totalorder %s18, 1
    %p272 = scmp.ne.s32.totalorder %s267, %s269
    %p273 = scmp.eq.s32.totalorder %s18, 0
    %p274 = por %p272, %p273
    %p275 = scmp.ne.s32.totalorder %s267, %s269
    %p276 = scmp.eq.s32.totalorder %s23, 1
    %p277 = por %p275, %p276
    %p278 = scmp.ne.s32.totalorder %s269, %s270
    %p279 = scmp.eq.s32.totalorder %s23, 0
    %p280 = por %p278, %p279
    %p281 = scmp.ne.s32.totalorder %s269, %s270
    %p282 = scmp.eq.s32.totalorder %s24, 1
    %p283 = por %p281, %p282
    %p285 = scmp.ne.s32.totalorder %s270, %s284
    %p286 = scmp.eq.s32.totalorder %s24, 0
    %p287 = por %p285, %p286
    %s288 = ssub.s32 %s18, %s25
    %p289 = scmp.eq.s32.totalorder %s288, 0
    %s291 = sadd.s32 %s290, 1
    %s292 = scalar_select %p289, %s290, %s291
    %p295 = pneg %p289
    %p296 = scmp.eq.s32.totalorder %s18, 1
    %p297 = por %p295, %p296
    %p298 = scmp.ne.s32.totalorder %s290, %s293
    %p299 = scmp.eq.s32.totalorder %s18, 0
    %p300 = por %p298, %p299
    %p301 = scmp.ne.s32.totalorder %s290, %s293
    %p302 = scmp.eq.s32.totalorder %s23, 1
    %p303 = por %p301, %p302
    %p304 = scmp.ne.s32.totalorder %s293, %s294
    %p305 = scmp.eq.s32.totalorder %s23, 0
    %p306 = por %p304, %p305
    %p307 = scmp.ne.s32.totalorder %s293, %s294
    %p308 = scmp.eq.s32.totalorder %s24, 1
    %p309 = por %p307, %p308
    %p311 = scmp.ne.s32.totalorder %s294, %s310
    %p312 = scmp.eq.s32.totalorder %s24, 0
    %p313 = por %p311, %p312
    %p314 = scmp.le.s32.totalorder 1, %s18
    %p315 = scmp.lt.s32.totalorder %s18, 3
    %p316 = pnand %p314, %p315
    %p317 = pneg %p316
    // Predicated region
    $region9: #{ctg_forward.5} parent=5 // pred_check
      _
    $region10: #{ctg_forward.5} parent=5 // pred_check_branch
      %319 = sbr.rel (%p316) target = $region12
    $region11: #{ctg_forward.5} parent=5 // pred_region
      %s320 = ssub.s32 %s18, 1
      // Predicated region
      $region13: #{ctg_forward.5} parent=11 // pred_check
        %p321 = pneg %p91
      $region14: #{ctg_forward.5} parent=11 // pred_check_branch
        %323 = sbr.rel (%p321) target = $region16
      $region15: #{ctg_forward.5} parent=11 // pred_region
        _
      $region16: #{ctg_forward.5} parent=11 // pred_fallthru
        _
      // Predicated region
      $region17: #{ctg_forward.5} parent=11 // pred_check
        %p324 = pneg %p112
      $region18: #{ctg_forward.5} parent=11 // pred_check_branch
        %326 = sbr.rel (%p324) target = $region20
      $region19: #{ctg_forward.5} parent=11 // pred_region
        _
      $region20: #{ctg_forward.5} parent=11 // pred_fallthru
        _
      // Predicated region
      $region21: #{ctg_forward.5} parent=11 // pred_check
        %p327 = pneg %p133
      $region22: #{ctg_forward.5} parent=11 // pred_check_branch
        %329 = sbr.rel (%p327) target = $region24
      $region23: #{ctg_forward.5} parent=11 // pred_region
        _
      $region24: #{ctg_forward.5} parent=11 // pred_fallthru
        _
      // Predicated region
      $region25: #{ctg_forward.5} parent=11 // pred_check
        %p330 = pneg %p154
      $region26: #{ctg_forward.5} parent=11 // pred_check_branch
        %332 = sbr.rel (%p330) target = $region28
      $region27: #{ctg_forward.5} parent=11 // pred_region
        _
      $region28: #{ctg_forward.5} parent=11 // pred_fallthru
        _
      // Predicated region
      $region29: #{ctg_forward.5} parent=11 // pred_check
        %p333 = pneg %p175
      $region30: #{ctg_forward.5} parent=11 // pred_check_branch
        %335 = sbr.rel (%p333) target = $region32
      $region31: #{ctg_forward.5} parent=11 // pred_region
        _
      $region32: #{ctg_forward.5} parent=11 // pred_fallthru
        _
      // Predicated region
      $region33: #{ctg_forward.5} parent=11 // pred_check
        %p336 = pneg %p196
      $region34: #{ctg_forward.5} parent=11 // pred_check_branch
        %338 = sbr.rel (%p336) target = $region36
      $region35: #{ctg_forward.5} parent=11 // pred_region
        _
      $region36: #{ctg_forward.5} parent=11 // pred_fallthru
        _
      // Predicated region
      $region37: #{ctg_forward.5} parent=11 // pred_check
        %p339 = pneg %p217
      $region38: #{ctg_forward.5} parent=11 // pred_check_branch
        %341 = sbr.rel (%p339) target = $region40
      $region39: #{ctg_forward.5} parent=11 // pred_region
        _
      $region40: #{ctg_forward.5} parent=11 // pred_fallthru
        _
      // Predicated region
      $region41: #{ctg_forward.5} parent=11 // pred_check
        %p342 = pneg %p238
      $region42: #{ctg_forward.5} parent=11 // pred_check_branch
        %344 = sbr.rel (%p342) target = $region44
      $region43: #{ctg_forward.5} parent=11 // pred_region
        _
      $region44: #{ctg_forward.5} parent=11 // pred_fallthru
        _
      // Predicated region
      $region45: #{ctg_forward.5} parent=11 // pred_check
        %p345 = pneg %p259
      $region46: #{ctg_forward.5} parent=11 // pred_check_branch
        %347 = sbr.rel (%p345) target = $region48
      $region47: #{ctg_forward.5} parent=11 // pred_region
        _
      $region48: #{ctg_forward.5} parent=11 // pred_fallthru
        _
      // Predicated region
      $region49: #{ctg_forward.5} parent=11 // pred_check
        %p348 = pneg %p280
      $region50: #{ctg_forward.5} parent=11 // pred_check_branch
        %350 = sbr.rel (%p348) target = $region52
      $region51: #{ctg_forward.5} parent=11 // pred_region
        _
      $region52: #{ctg_forward.5} parent=11 // pred_fallthru
        _
    $region12: #{ctg_forward.5} parent=5 // pred_fallthru
      _
    %p351 = scmp.lt.s32.totalorder %s18, 2
    // Predicated region
    $region53: #{ctg_forward.5} parent=5 // pred_check
      %p352 = pneg %p351
    $region54: #{ctg_forward.5} parent=5 // pred_check_branch
      %354 = sbr.rel (%p352) target = $region56
    $region55: #{ctg_forward.5} parent=5 // pred_region
      // Predicated region
      $region57: #{ctg_forward.5} parent=55 // pred_check
        %p355 = pneg %p38
      $region58: #{ctg_forward.5} parent=55 // pred_check_branch
        %357 = sbr.rel (%p355) target = $region60
      $region59: #{ctg_forward.5} parent=55 // pred_region
        %p358 = scmp.lt.s32.totalorder %s18, 1
        %s359 = scalar_select %p358, %s18, 1
        %s360 = smul.addr %s359, 8
        %s361 = scalar_lea.vmem %s0, %s360
      $region60: #{ctg_forward.5} parent=55 // pred_fallthru
        _
      // Predicated region
      $region61: #{ctg_forward.5} parent=55 // pred_check
        %p362 = pneg %p64
      $region62: #{ctg_forward.5} parent=55 // pred_check_branch
        %364 = sbr.rel (%p362) target = $region64
      $region63: #{ctg_forward.5} parent=55 // pred_region
        %p365 = scmp.lt.s32.totalorder %s18, 1
        %s366 = scalar_select %p365, %s18, 1
        %s367 = scalar_lea.vmem %s1, %s366
      $region64: #{ctg_forward.5} parent=55 // pred_fallthru
        _
    $region56: #{ctg_forward.5} parent=5 // pred_fallthru
      _
    %p368 = scmp.le.s32.totalorder 1, %s18
    %p369 = scmp.lt.s32.totalorder %s18, 3
    %p370 = pnand %p368, %p369
    %p371 = pneg %p370
    // Predicated region
    $region65: #{ctg_forward.5} parent=5 // pred_check
      _
    $region66: #{ctg_forward.5} parent=5 // pred_check_branch
      %373 = sbr.rel (%p370) target = $region68
    $region67: #{ctg_forward.5} parent=5 // pred_region
      %s374 = ssub.s32 %s18, 1
      %p375 = scmp.lt.s32.totalorder %s23, 1
      %s376 = scalar_select %p375, %s23, 1
      %s377 = smul.addr %s376, 8
      %s378 = scalar_lea.vmem %s0, %s377
      %p379 = pneg %p44
      %p380 = pneg %p41
      %p381 = scmp.lt.s32.totalorder %s23, 1
      %s382 = scalar_select %p381, %s23, 1
      %s383 = scalar_lea.vmem %s1, %s382
      %p384 = pneg %p70
      %p385 = pneg %p67
      %p386 = pneg %p91
      %p387 = pneg %p88
      %p388 = pneg %p112
      %p389 = pneg %p109
      %p390 = pneg %p133
      %p391 = pneg %p130
      %p392 = pneg %p154
      %p393 = pneg %p151
      %p394 = pneg %p175
      %p395 = pneg %p172
      %p396 = pneg %p196
      %p397 = pneg %p193
      %p398 = pneg %p217
      %p399 = pneg %p214
      %p400 = pneg %p238
      %p401 = pneg %p235
      %p402 = pneg %p259
      %p403 = pneg %p256
      %p404 = pneg %p280
      %p405 = pneg %p277
      %p406 = pneg %p306
      %p407 = pneg %p303
      %p408 = scmp.lt.s32.totalorder %s23, 1
      %s409 = scalar_select %p408, %s23, 1
      %s410 = smul.addr %s409, 8
      %s411 = scalar_lea.vmem %s12, %s410
      %p412 = scmp.lt.s32.totalorder %s23, 1
      %s413 = scalar_select %p412, %s23, 1
      %s414 = smul.addr %s413, 8
      %s415 = scalar_lea.vmem %s0, %s414
      %p416 = scmp.lt.s32.totalorder %s23, 1
      %s417 = scalar_select %p416, %s23, 1
      %s418 = scalar_lea.vmem %s1, %s417
      %p419 = scmp.lt.s32.totalorder %s23, 1
      %s420 = scalar_select %p419, %s23, 1
      %s421 = smul.addr %s420, 8
      %s422 = scalar_lea.vmem %s12, %s421
      %v424 = vld [vmem:[%s415] sm:$0xff]
      %v425 = vld [vmem:[%s2] sm:$0xff]
      %v426 = vld [vmem:[%s2 + $0x8] sm:$0xf]
      %v427 = vld [vmem:[%s2 + $0xc] sm:$0xff]
      %v428 = vld [vmem:[%s2 + $0x14] sm:$0xf]
      %v429 = vld [vmem:[%s2 + $0x18] sm:$0xff]
      %v430 = vld [vmem:[%s2 + $0x20] sm:$0xf]
      %v431 = vld [vmem:[%s2 + $0x24] sm:$0xff]
      %v432 = vld [vmem:[%s2 + $0x2c] sm:$0xf]
      %v433 = vld [vmem:[%s2 + $0x30] sm:$0xff]
      %v434 = vld [vmem:[%s2 + $0x38] sm:$0xf]
      %v435 = vld [vmem:[%s2 + $0x3c] sm:$0xff]
      %v436 = vld [vmem:[%s2 + $0x44] sm:$0xf]
      %v437 = vld [vmem:[%s2 + $0x48] sm:$0xff]
      %v438 = vld [vmem:[%s2 + $0x50] sm:$0xf]
      %v439 = vld [vmem:[%s2 + $0x54] sm:$0xff]
      %v440 = vld [vmem:[%s2 + $0x5c] sm:$0xf]
      %v441 = vld [vmem:[%s2 + $0x60] sm:$0xff]
      %v442 = vld [vmem:[%s2 + $0x68] sm:$0xf]
      %v443 = vld [vmem:[%s2 + $0x6c] sm:$0xff]
      %v444 = vld [vmem:[%s2 + $0x74] sm:$0xf]
      %v445 = vld [vmem:[%s2 + $0x78] sm:$0xff]
      %v446 = vld [vmem:[%s2 + $0x80] sm:$0xf]
      %v447 = vld [vmem:[%s2 + $0x84] sm:$0xff]
      %v448 = vld [vmem:[%s2 + $0x8c] sm:$0xf]
      %v449 = vld [vmem:[%s2 + $0x90] sm:$0xff]
      %v450 = vld [vmem:[%s2 + $0x98] sm:$0xf]
      %v451 = vld [vmem:[%s2 + $0x9c] sm:$0xff]
      %v452 = vld [vmem:[%s2 + $0xa4] sm:$0xf]
      %v453 = vld [vmem:[%s2 + $0xa8] sm:$0xff]
      %v454 = vld [vmem:[%s2 + $0xb0] sm:$0xf]
      %v455 = vld [vmem:[%s2 + $0xb4] sm:$0xff]
      %v456 = vld [vmem:[%s2 + $0xbc] sm:$0xf]
      %v457 = vpack.c.bf16 %v424, %v424
      %v458 = vld [vmem:[%s3] sm:$0x7]
      %v460 = vlaneseq
      %v461 = vshrl.u32 %v460, 7
      %v462 = vsub.s32 0, %v461
      %v463 = vrot.slane %v458, %v462
      %v464 = vlaneseq
      %v465 = vshrl.u32 %v464, 7
      %v466 = vsub.s32 1, %v465
      %v467 = vrot.slane %v458, %v466
      %v468 = vlaneseq
      %v469 = vshrl.u32 %v468, 7
      %v470 = vsub.s32 2, %v469
      %v471 = vrot.slane %v458, %v470
      %v507 = vunpack.c.l.b16 %v425
      %v508 = vunpack.c.h.b16 %v425
      %v509 = vunpack.c.l.b16 %v426
      %v510 = vunpack.c.l.b16 %v427
      %v511 = vunpack.c.h.b16 %v427
      %v512 = vunpack.c.l.b16 %v428
      %v513 = vunpack.c.l.b16 %v429
      %v514 = vunpack.c.h.b16 %v429
      %v515 = vunpack.c.l.b16 %v430
      %v516 = vunpack.c.l.b16 %v431
      %v517 = vunpack.c.h.b16 %v431
      %v518 = vunpack.c.l.b16 %v432
      %v519 = vunpack.c.l.b16 %v433
      %v520 = vunpack.c.h.b16 %v433
      %v521 = vunpack.c.l.b16 %v434
      %v522 = vunpack.c.l.b16 %v435
      %v523 = vunpack.c.h.b16 %v435
      %v524 = vunpack.c.l.b16 %v436
      %v525 = vunpack.c.l.b16 %v437
      %v526 = vunpack.c.h.b16 %v437
      %v527 = vunpack.c.l.b16 %v438
      %v528 = vunpack.c.l.b16 %v439
      %v529 = vunpack.c.h.b16 %v439
      %v530 = vunpack.c.l.b16 %v440
      %v531 = vunpack.c.l.b16 %v441
      %v532 = vunpack.c.h.b16 %v441
      %v533 = vunpack.c.l.b16 %v442
      %v534 = vunpack.c.l.b16 %v443
      %v535 = vunpack.c.h.b16 %v443
      %v536 = vunpack.c.l.b16 %v444
      %v537 = vunpack.c.l.b16 %v445
      %v538 = vunpack.c.h.b16 %v445
      %v539 = vunpack.c.l.b16 %v446
      %v540 = vunpack.c.l.b16 %v447
      %v541 = vunpack.c.h.b16 %v447
      %v542 = vunpack.c.l.b16 %v448
      %v543 = vunpack.c.l.b16 %v449
      %v544 = vunpack.c.h.b16 %v449
      %v545 = vunpack.c.l.b16 %v450
      %v546 = vunpack.c.l.b16 %v451
      %v547 = vunpack.c.h.b16 %v451
      %v548 = vunpack.c.l.b16 %v452
      %v549 = vunpack.c.l.b16 %v453
      %v550 = vunpack.c.h.b16 %v453
      %v551 = vunpack.c.l.b16 %v454
      %v552 = vunpack.c.l.b16 %v455
      %v553 = vunpack.c.h.b16 %v455
      %v554 = vunpack.c.l.b16 %v456
      %v555 = vpack.c.b16 %v510, %v507
      %v556 = vpack.c.b16 %v511, %v508
      %v557 = vpack.c.b16 %v512, %v509
      %v558 = vpack.c.b16 %v516, %v513
      %v559 = vpack.c.b16 %v517, %v514
      %v560 = vpack.c.b16 %v518, %v515
      %v561 = vpack.c.b16 %v522, %v519
      %v562 = vpack.c.b16 %v523, %v520
      %v563 = vpack.c.b16 %v524, %v521
      %v564 = vpack.c.b16 %v528, %v525
      %v565 = vpack.c.b16 %v529, %v526
      %v566 = vpack.c.b16 %v530, %v527
      %v567 = vpack.c.b16 %v534, %v531
      %v568 = vpack.c.b16 %v535, %v532
      %v569 = vpack.c.b16 %v536, %v533
      %v570 = vpack.c.b16 %v540, %v537
      %v571 = vpack.c.b16 %v541, %v538
      %v572 = vpack.c.b16 %v542, %v539
      %v573 = vpack.c.b16 %v546, %v543
      %v574 = vpack.c.b16 %v547, %v544
      %v575 = vpack.c.b16 %v548, %v545
      %v576 = vpack.c.b16 %v552, %v549
      %v577 = vpack.c.b16 %v553, %v550
      %v578 = vpack.c.b16 %v554, %v551
      %603 = vmatprep.subr.bf16.mxu0 %v556
      %604 = vmatpush1.bf16.msra.mxu0 %v555
      %605 = vmatprep.subr.bf16.mxu0 %v559
      %606 = vmatpush1.bf16.msra.mxu0 %v558
      %607 = vmatprep.subr.bf16.mxu0 %v562
      %608 = vmatpush1.bf16.msra.mxu0 %v561
      %609 = vmatprep.subr.bf16.mxu0 %v565
      %610 = vmatpush1.bf16.msra.mxu0 %v564
      %611 = vmatprep.subr.bf16.mxu0 %v568
      %612 = vmatpush1.bf16.msra.mxu0 %v567
      %613 = vmatprep.subr.bf16.mxu0 %v571
      %614 = vmatpush1.bf16.msra.mxu0 %v570
      %615 = vmatprep.subr.bf16.mxu0 %v574
      %616 = vmatpush1.bf16.msra.mxu0 %v573
      %617 = vmatprep.subr.bf16.mxu0 %v577
      %618 = vmatpush1.bf16.msra.mxu0 %v576
      %619 = vmatprep.subr.bf16.mxu0 0
      %620 = vmatpush1.bf16.msra.mxu0 0
      %621 = vmatprep.subr.bf16.mxu0 0
      %622 = vmatpush1.bf16.msra.mxu0 0
      %623 = vmatprep.subr.bf16.mxu0 0
      %624 = vmatpush1.bf16.msra.mxu0 0
      %625 = vmatprep.subr.bf16.mxu0 0
      %626 = vmatpush1.bf16.msra.mxu0 0
      %627 = vmatprep.subr.bf16.mxu0 0
      %628 = vmatpush1.bf16.msra.mxu0 0
      %629 = vmatprep.subr.bf16.mxu0 0
      %630 = vmatpush1.bf16.msra.mxu0 0
      %631 = vmatprep.subr.bf16.mxu0 0
      %632 = vmatpush1.bf16.msra.mxu0 0
      %633 = vmatprep.subr.bf16.mxu0 0
      %634 = vmatpush1.bf16.msra.mxu0 0
      %635 = vmatprep.mubr.bf16.mxu0 0
      %636 = vmatmul.mubr.bf16.gmra.mrb[0].mxu0 %v457
      %v637 = vpop.f32.mrb[0].mxu0
      %v638 = vadd.f32 %v463, %v637
      %v639 = vpop.f32.mrb[0].mxu0
      %v640 = vadd.f32 %v467, %v639
      %v641 = vpop.f32.mrb[0].mxu0
      %v642 = vpop.f32.mrb[0].mxu0
      %643 = vdwg.mxu0
      %644 = vmatprep.subr.bf16.mxu0 0
      %645 = vmatpush1.bf16.msra.mxu0 %v557
      %646 = vmatprep.subr.bf16.mxu0 0
      %647 = vmatpush1.bf16.msra.mxu0 %v560
      %648 = vmatprep.subr.bf16.mxu0 0
      %649 = vmatpush1.bf16.msra.mxu0 %v563
      %650 = vmatprep.subr.bf16.mxu0 0
      %651 = vmatpush1.bf16.msra.mxu0 %v566
      %652 = vmatprep.subr.bf16.mxu0 0
      %653 = vmatpush1.bf16.msra.mxu0 %v569
      %654 = vmatprep.subr.bf16.mxu0 0
      %655 = vmatpush1.bf16.msra.mxu0 %v572
      %656 = vmatprep.subr.bf16.mxu0 0
      %657 = vmatpush1.bf16.msra.mxu0 %v575
      %658 = vmatprep.subr.bf16.mxu0 0
      %659 = vmatpush1.bf16.msra.mxu0 %v578
      %660 = vmatprep.subr.bf16.mxu0 0
      %661 = vmatpush1.bf16.msra.mxu0 0
      %662 = vmatprep.subr.bf16.mxu0 0
      %663 = vmatpush1.bf16.msra.mxu0 0
      %664 = vmatprep.subr.bf16.mxu0 0
      %665 = vmatpush1.bf16.msra.mxu0 0
      %666 = vmatprep.subr.bf16.mxu0 0
      %667 = vmatpush1.bf16.msra.mxu0 0
      %668 = vmatprep.subr.bf16.mxu0 0
      %669 = vmatpush1.bf16.msra.mxu0 0
      %670 = vmatprep.subr.bf16.mxu0 0
      %671 = vmatpush1.bf16.msra.mxu0 0
      %672 = vmatprep.subr.bf16.mxu0 0
      %673 = vmatpush1.bf16.msra.mxu0 0
      %674 = vmatprep.subr.bf16.mxu0 0
      %675 = vmatpush1.bf16.msra.mxu0 0
      %676 = vmatprep.mubr.bf16.mxu0 0
      %677 = vmatmul.mubr.bf16.gmra.mrb[0].mxu0 %v457
      %v678 = vpop.f32.mrb[0].mxu0
      %v679 = vadd.f32 %v471, %v678
      %v680 = vpop.f32.mrb[0].mxu0
      %v681 = vpop.f32.mrb[0].mxu0
      %v682 = vpop.f32.mrb[0].mxu0
      %683 = vdwg.mxu0
      %v684 = vmax.f32 %v638, 0.0
      %v685 = vmax.f32 %v640, 0.0
      %v686 = vmax.f32 %v679, 0.0
      %v687 = vmul.f32 %v684, 0.125
      %v688 = vlaneseq
      %v689 = vshrl.u32 %v688, 7
      %v690 = vlaneseq
      %v691 = vand.u32 %v690, 127
      %vm692 = vcmp.gt.s32.totalorder %v691, %v689
      %v693 = vsel %vm692, -4.2949673e+09, 0.0
      %v694 = vld [vmem:[%s418] sm:$0x1]
      %vm695 = vcmp.ne.s32.totalorder %v694, 0
      %vm696 = vcmask 523264
      %v698 = vsel %vm696, %v687, 0
      %v701 = vsel %vm696, %v685, 0
      %703 = vmatprep.subr.mxu0 0.0
      %704 = vmatpush1.xpose.msra.mxu0 %v701
      %705 = vmatprep.subr.mxu0 0.0
      %706 = vmatpush1.xpose.msra.mxu0 0.0
      %707 = vmatprep.subr.mxu0 0.0
      %708 = vmatpush1.xpose.msra.mxu0 0.0
      %709 = vmatprep.subr.mxu0 0.0
      %710 = vmatpush1.xpose.msra.mxu0 0.0
      %711 = vmatprep.subr.mxu0 0.0
      %712 = vmatpush1.xpose.msra.mxu0 0.0
      %713 = vmatprep.subr.mxu0 0.0
      %714 = vmatpush1.xpose.msra.mxu0 0.0
      %715 = vmatprep.subr.mxu0 0.0
      %716 = vmatpush1.xpose.msra.mxu0 0.0
      %717 = vmatprep.subr.mxu0 0.0
      %718 = vmatpush1.xpose.msra.mxu0 0.0
      %719 = vmatprep.subr.mxu0 0.0
      %720 = vmatpush1.xpose.msra.mxu0 0.0
      %721 = vmatprep.subr.mxu0 0.0
      %722 = vmatpush1.xpose.msra.mxu0 0.0
      %723 = vmatprep.subr.mxu0 0.0
      %724 = vmatpush1.xpose.msra.mxu0 0.0
      %725 = vmatprep.subr.mxu0 0.0
      %726 = vmatpush1.xpose.msra.mxu0 0.0
      %727 = vmatprep.subr.mxu0 0.0
      %728 = vmatpush1.xpose.msra.mxu0 0.0
      %729 = vmatprep.subr.mxu0 0.0
      %730 = vmatpush1.xpose.msra.mxu0 0.0
      %731 = vmatprep.subr.mxu0 0.0
      %732 = vmatpush1.xpose.msra.mxu0 0.0
      %733 = vmatprep.subr.mxu0 0.0
      %734 = vmatpush1.xpose.msra.mxu0 0.0
      %735 = vmatprep.subr.mxu0 0.0
      %736 = vmatpush1.xpose.msra.mxu0 0.0
      %737 = vmatprep.subr.mxu0 0.0
      %738 = vmatpush1.xpose.msra.mxu0 0.0
      %739 = vmatprep.subr.mxu0 0.0
      %740 = vmatpush1.xpose.msra.mxu0 0.0
      %741 = vmatprep.subr.mxu0 0.0
      %742 = vmatpush1.xpose.msra.mxu0 0.0
      %743 = vmatprep.subr.mxu0 0.0
      %744 = vmatpush1.xpose.msra.mxu0 0.0
      %745 = vmatprep.subr.mxu0 0.0
      %746 = vmatpush1.xpose.msra.mxu0 0.0
      %747 = vmatprep.subr.mxu0 0.0
      %748 = vmatpush1.xpose.msra.mxu0 0.0
      %749 = vmatprep.subr.mxu0 0.0
      %750 = vmatpush1.xpose.msra.mxu0 0.0
      %751 = vmatprep.subr.mxu0 0.0
      %752 = vmatpush1.xpose.msra.mxu0 0.0
      %753 = vmatprep.subr.mxu0 0.0
      %754 = vmatpush1.xpose.msra.mxu0 0.0
      %755 = vmatprep.subr.mxu0 0.0
      %756 = vmatpush1.xpose.msra.mxu0 0.0
      %757 = vmatprep.subr.mxu0 0.0
      %758 = vmatpush1.xpose.msra.mxu0 0.0
      %759 = vmatprep.subr.mxu0 0.0
      %760 = vmatpush1.xpose.msra.mxu0 0.0
      %761 = vmatprep.subr.mxu0 0.0
      %762 = vmatpush1.xpose.msra.mxu0 0.0
      %763 = vmatprep.subr.mxu0 0.0
      %764 = vmatpush1.xpose.msra.mxu0 0.0
      %765 = vmatprep.subr.mxu0 0.0
      %766 = vmatpush1.xpose.msra.mxu0 0.0
      %767 = vmatprep.mubr.f32.mxu0 0.0
      %768 = vmatmul.mubr.f32.gmra.mrb[0].mxu0 %v698
      %v769 = vpop.f32.mrb[0].mxu0
      %v770 = vadd.f32 %v693, %v769
      %v771 = vpop.f32.mrb[0].mxu0
      %772 = vdwg.mxu0
      %v773 = vsel %vm695, 1, 0
      %v774 = vlaneseq
      %v775 = vshrl.u32 %v774, 7
      %v776 = vsub.s32 0, %v775
      %v777 = vrot.slane %v773, %v776
      %vm778 = vcmp.eq.s32.totalorder %v777, 1
      %v779 = vsel %vm778, -1e+09, %v770
      %vm780 = vcmask 64512
      %v781 = vsel %vm780, %v779, -inf
      %782 = vmax.xlane.f32.xlu0 %v781
      %v783 = vpop.xlane.xlu0 %782
      %v784 = vsub.f32 %v779, %v783
      %v785 = vmul.f32 %v784, 1.442695
      %v786 = vpow.pop %v785
      %v787 = vsel %vm780, %v786, 0.0
      %788 = vadd.xlane.f32.xlu0 %v787
      %v789 = vpop.xlane.xlu0 %788
      %v790 = vrcp.pop %v789
      %v791 = vmul.f32 %v786, %v790
      %v793 = vsel %vm780, %v791, 0
      %795 = vmatprep.subr.mxu0 0.0
      %796 = vmatpush1.msra.mxu0 %v686
      %797 = vmatprep.subr.mxu0 0.0
      %798 = vmatpush1.msra.mxu0 0.0
      %799 = vmatprep.subr.mxu0 0.0
      %800 = vmatpush1.msra.mxu0 0.0
      %801 = vmatprep.subr.mxu0 0.0
      %802 = vmatpush1.msra.mxu0 0.0
      %803 = vmatprep.subr.mxu0 0.0
      %804 = vmatpush1.msra.mxu0 0.0
      %805 = vmatprep.subr.mxu0 0.0
      %806 = vmatpush1.msra.mxu0 0.0
      %807 = vmatprep.subr.mxu0 0.0
      %808 = vmatpush1.msra.mxu0 0.0
      %809 = vmatprep.subr.mxu0 0.0
      %810 = vmatpush1.msra.mxu0 0.0
      %811 = vmatprep.subr.mxu0 0.0
      %812 = vmatpush1.msra.mxu0 0.0
      %813 = vmatprep.subr.mxu0 0.0
      %814 = vmatpush1.msra.mxu0 0.0
      %815 = vmatprep.subr.mxu0 0.0
      %816 = vmatpush1.msra.mxu0 0.0
      %817 = vmatprep.subr.mxu0 0.0
      %818 = vmatpush1.msra.mxu0 0.0
      %819 = vmatprep.subr.mxu0 0.0
      %820 = vmatpush1.msra.mxu0 0.0
      %821 = vmatprep.subr.mxu0 0.0
      %822 = vmatpush1.msra.mxu0 0.0
      %823 = vmatprep.subr.mxu0 0.0
      %824 = vmatpush1.msra.mxu0 0.0
      %825 = vmatprep.subr.mxu0 0.0
      %826 = vmatpush1.msra.mxu0 0.0
      %827 = vmatprep.subr.mxu0 0.0
      %828 = vmatpush1.msra.mxu0 0.0
      %829 = vmatprep.subr.mxu0 0.0
      %830 = vmatpush1.msra.mxu0 0.0
      %831 = vmatprep.subr.mxu0 0.0
      %832 = vmatpush1.msra.mxu0 0.0
      %833 = vmatprep.subr.mxu0 0.0
      %834 = vmatpush1.msra.mxu0 0.0
      %835 = vmatprep.subr.mxu0 0.0
      %836 = vmatpush1.msra.mxu0 0.0
      %837 = vmatprep.subr.mxu0 0.0
      %838 = vmatpush1.msra.mxu0 0.0
      %839 = vmatprep.subr.mxu0 0.0
      %840 = vmatpush1.msra.mxu0 0.0
      %841 = vmatprep.subr.mxu0 0.0
      %842 = vmatpush1.msra.mxu0 0.0
      %843 = vmatprep.subr.mxu0 0.0
      %844 = vmatpush1.msra.mxu0 0.0
      %845 = vmatprep.subr.mxu0 0.0
      %846 = vmatpush1.msra.mxu0 0.0
      %847 = vmatprep.subr.mxu0 0.0
      %848 = vmatpush1.msra.mxu0 0.0
      %849 = vmatprep.subr.mxu0 0.0
      %850 = vmatpush1.msra.mxu0 0.0
      %851 = vmatprep.subr.mxu0 0.0
      %852 = vmatpush1.msra.mxu0 0.0
      %853 = vmatprep.subr.mxu0 0.0
      %854 = vmatpush1.msra.mxu0 0.0
      %855 = vmatprep.subr.mxu0 0.0
      %856 = vmatpush1.msra.mxu0 0.0
      %857 = vmatprep.subr.mxu0 0.0
      %858 = vmatpush1.msra.mxu0 0.0
      %859 = vmatprep.mubr.f32.mxu0 0.0
      %860 = vmatmul.mubr.f32.gmra.mrb[0].mxu0 %v793
      %v861 = vpop.f32.mrb[0].mxu0
      %v862 = vadd.f32 0.0, %v861
      %v863 = vpop.f32.mrb[0].mxu0
      %864 = vdwg.mxu0
      %865 = vrot.lane.b32.xlu0 %v687, 64
      %v866 = vpop.permute.xlu0 %865
      %867 = vrot.lane.b32.xlu0 %v685, 64
      %v868 = vpop.permute.xlu0 %867
      %v869 = vsel %vm696, %v866, 0
      %v871 = vsel %vm696, %v868, 0
      %873 = vmatprep.subr.mxu0 0.0
      %874 = vmatpush1.xpose.msra.mxu0 %v871
      %875 = vmatprep.subr.mxu0 0.0
      %876 = vmatpush1.xpose.msra.mxu0 0.0
      %877 = vmatprep.subr.mxu0 0.0
      %878 = vmatpush1.xpose.msra.mxu0 0.0
      %879 = vmatprep.subr.mxu0 0.0
      %880 = vmatpush1.xpose.msra.mxu0 0.0
      %881 = vmatprep.subr.mxu0 0.0
      %882 = vmatpush1.xpose.msra.mxu0 0.0
      %883 = vmatprep.subr.mxu0 0.0
      %884 = vmatpush1.xpose.msra.mxu0 0.0
      %885 = vmatprep.subr.mxu0 0.0
      %886 = vmatpush1.xpose.msra.mxu0 0.0
      %887 = vmatprep.subr.mxu0 0.0
      %888 = vmatpush1.xpose.msra.mxu0 0.0
      %889 = vmatprep.subr.mxu0 0.0
      %890 = vmatpush1.xpose.msra.mxu0 0.0
      %891 = vmatprep.subr.mxu0 0.0
      %892 = vmatpush1.xpose.msra.mxu0 0.0
      %893 = vmatprep.subr.mxu0 0.0
      %894 = vmatpush1.xpose.msra.mxu0 0.0
      %895 = vmatprep.subr.mxu0 0.0
      %896 = vmatpush1.xpose.msra.mxu0 0.0
      %897 = vmatprep.subr.mxu0 0.0
      %898 = vmatpush1.xpose.msra.mxu0 0.0
      %899 = vmatprep.subr.mxu0 0.0
      %900 = vmatpush1.xpose.msra.mxu0 0.0
      %901 = vmatprep.subr.mxu0 0.0
      %902 = vmatpush1.xpose.msra.mxu0 0.0
      %903 = vmatprep.subr.mxu0 0.0
      %904 = vmatpush1.xpose.msra.mxu0 0.0
      %905 = vmatprep.subr.mxu0 0.0
      %906 = vmatpush1.xpose.msra.mxu0 0.0
      %907 = vmatprep.subr.mxu0 0.0
      %908 = vmatpush1.xpose.msra.mxu0 0.0
      %909 = vmatprep.subr.mxu0 0.0
      %910 = vmatpush1.xpose.msra.mxu0 0.0
      %911 = vmatprep.subr.mxu0 0.0
      %912 = vmatpush1.xpose.msra.mxu0 0.0
      %913 = vmatprep.subr.mxu0 0.0
      %914 = vmatpush1.xpose.msra.mxu0 0.0
      %915 = vmatprep.subr.mxu0 0.0
      %916 = vmatpush1.xpose.msra.mxu0 0.0
      %917 = vmatprep.subr.mxu0 0.0
      %918 = vmatpush1.xpose.msra.mxu0 0.0
      %919 = vmatprep.subr.mxu0 0.0
      %920 = vmatpush1.xpose.msra.mxu0 0.0
      %921 = vmatprep.subr.mxu0 0.0
      %922 = vmatpush1.xpose.msra.mxu0 0.0
      %923 = vmatprep.subr.mxu0 0.0
      %924 = vmatpush1.xpose.msra.mxu0 0.0
      %925 = vmatprep.subr.mxu0 0.0
      %926 = vmatpush1.xpose.msra.mxu0 0.0
      %927 = vmatprep.subr.mxu0 0.0
      %928 = vmatpush1.xpose.msra.mxu0 0.0
      %929 = vmatprep.subr.mxu0 0.0
      %930 = vmatpush1.xpose.msra.mxu0 0.0
      %931 = vmatprep.subr.mxu0 0.0
      %932 = vmatpush1.xpose.msra.mxu0 0.0
      %933 = vmatprep.subr.mxu0 0.0
      %934 = vmatpush1.xpose.msra.mxu0 0.0
      %935 = vmatprep.subr.mxu0 0.0
      %936 = vmatpush1.xpose.msra.mxu0 0.0
      %937 = vmatprep.mubr.f32.mxu0 0.0
      %938 = vmatmul.mubr.f32.gmra.mrb[0].mxu0 %v869
      %v939 = vpop.f32.mrb[0].mxu0
      %v940 = vadd.f32 %v693, %v939
      %v941 = vpop.f32.mrb[0].mxu0
      %942 = vdwg.mxu0
      %v943 = vsel %vm778, -1e+09, %v940
      %v944 = vsel %vm780, %v943, -inf
      %945 = vmax.xlane.f32.xlu0 %v944
      %v946 = vpop.xlane.xlu0 %945
      %v947 = vsub.f32 %v943, %v946
      %v948 = vmul.f32 %v947, 1.442695
      %v949 = vpow.pop %v948
      %v950 = vsel %vm780, %v949, 0.0
      %951 = vadd.xlane.f32.xlu0 %v950
      %v952 = vpop.xlane.xlu0 %951
      %v953 = vrcp.pop %v952
      %v954 = vmul.f32 %v949, %v953
      %956 = vrot.lane.b32.xlu0 %v686, 64
      %v957 = vpop.permute.xlu0 %956
      %v960 = vsel %vm780, %v954, 0
      %962 = vmatprep.subr.mxu0 0.0
      %963 = vmatpush1.msra.mxu0 %v957
      %964 = vmatprep.subr.mxu0 0.0
      %965 = vmatpush1.msra.mxu0 0.0
      %966 = vmatprep.subr.mxu0 0.0
      %967 = vmatpush1.msra.mxu0 0.0
      %968 = vmatprep.subr.mxu0 0.0
      %969 = vmatpush1.msra.mxu0 0.0
      %970 = vmatprep.subr.mxu0 0.0
      %971 = vmatpush1.msra.mxu0 0.0
      %972 = vmatprep.subr.mxu0 0.0
      %973 = vmatpush1.msra.mxu0 0.0
      %974 = vmatprep.subr.mxu0 0.0
      %975 = vmatpush1.msra.mxu0 0.0
      %976 = vmatprep.subr.mxu0 0.0
      %977 = vmatpush1.msra.mxu0 0.0
      %978 = vmatprep.subr.mxu0 0.0
      %979 = vmatpush1.msra.mxu0 0.0
      %980 = vmatprep.subr.mxu0 0.0
      %981 = vmatpush1.msra.mxu0 0.0
      %982 = vmatprep.subr.mxu0 0.0
      %983 = vmatpush1.msra.mxu0 0.0
      %984 = vmatprep.subr.mxu0 0.0
      %985 = vmatpush1.msra.mxu0 0.0
      %986 = vmatprep.subr.mxu0 0.0
      %987 = vmatpush1.msra.mxu0 0.0
      %988 = vmatprep.subr.mxu0 0.0
      %989 = vmatpush1.msra.mxu0 0.0
      %990 = vmatprep.subr.mxu0 0.0
      %991 = vmatpush1.msra.mxu0 0.0
      %992 = vmatprep.subr.mxu0 0.0
      %993 = vmatpush1.msra.mxu0 0.0
      %994 = vmatprep.subr.mxu0 0.0
      %995 = vmatpush1.msra.mxu0 0.0
      %996 = vmatprep.subr.mxu0 0.0
      %997 = vmatpush1.msra.mxu0 0.0
      %998 = vmatprep.subr.mxu0 0.0
      %999 = vmatpush1.msra.mxu0 0.0
      %1000 = vmatprep.subr.mxu0 0.0
      %1001 = vmatpush1.msra.mxu0 0.0
      %1002 = vmatprep.subr.mxu0 0.0
      %1003 = vmatpush1.msra.mxu0 0.0
      %1004 = vmatprep.subr.mxu0 0.0
      %1005 = vmatpush1.msra.mxu0 0.0
      %1006 = vmatprep.subr.mxu0 0.0
      %1007 = vmatpush1.msra.mxu0 0.0
      %1008 = vmatprep.subr.mxu0 0.0
      %1009 = vmatpush1.msra.mxu0 0.0
      %1010 = vmatprep.subr.mxu0 0.0
      %1011 = vmatpush1.msra.mxu0 0.0
      %1012 = vmatprep.subr.mxu0 0.0
      %1013 = vmatpush1.msra.mxu0 0.0
      %1014 = vmatprep.subr.mxu0 0.0
      %1015 = vmatpush1.msra.mxu0 0.0
      %1016 = vmatprep.subr.mxu0 0.0
      %1017 = vmatpush1.msra.mxu0 0.0
      %1018 = vmatprep.subr.mxu0 0.0
      %1019 = vmatpush1.msra.mxu0 0.0
      %1020 = vmatprep.subr.mxu0 0.0
      %1021 = vmatpush1.msra.mxu0 0.0
      %1022 = vmatprep.subr.mxu0 0.0
      %1023 = vmatpush1.msra.mxu0 0.0
      %1024 = vmatprep.subr.mxu0 0.0
      %1025 = vmatpush1.msra.mxu0 0.0
      %1026 = vmatprep.mubr.f32.mxu0 0.0
      %1027 = vmatmul.mubr.f32.gmra.mrb[0].mxu0 %v960
      %v1028 = vpop.f32.mrb[0].mxu0
      %v1029 = vadd.f32 0.0, %v1028
      %v1030 = vpop.f32.mrb[0].mxu0
      %1031 = vdwg.mxu0
      %1033 = vrot.lane.b32.xlu0 %v1029, 64
      %v1034 = vpop.permute.xlu0 %1033
      %v1036 = vsel %vm696, %v862, %v1034
      %v1037 = vadd.f32 %v1036, %v424
      %v1038 = vld [vmem:[%s4] sm:$0x1]
      %v1039 = vld [vmem:[%s5] sm:$0x1]
      %1040 = vadd.xlane.f32.xlu0 %v1037
      %v1041 = vpop.xlane.xlu0 %1040
      %v1042 = vrcp.pop 128.0
      %v1043 = vmul.f32 %v1041, %v1042
      %v1044 = vsub.f32 %v1037, %v1043
      %v1045 = vmul.f32 %v1044, %v1044
      %1046 = vadd.xlane.f32.xlu0 %v1045
      %v1047 = vpop.xlane.xlu0 %1046
      %v1048 = vmul.f32 %v1047, %v1042
      %v1049 = vadd.f32 %v1048, 1e-05
      %v1050 = vrsqrt.pop %v1049
      %v1051 = vmul.f32 %v1044, %v1050
      %v1053 = vlaneseq
      %v1054 = vshrl.u32 %v1053, 7
      %v1055 = vsub.s32 0, %v1054
      %v1056 = vrot.slane %v1038, %v1055
      %v1058 = vmul.f32 %v1051, %v1056
      %v1060 = vlaneseq
      %v1061 = vshrl.u32 %v1060, 7
      %v1062 = vsub.s32 0, %v1061
      %v1063 = vrot.slane %v1039, %v1062
      %v1065 = vadd.f32 %v1058, %v1063
      %v1066 = vld [vmem:[%s6] sm:$0xff]
      %v1067 = vld [vmem:[%s6 + $0x8] sm:$0xff]
      %v1068 = vld [vmem:[%s6 + $0x10] sm:$0xff]
      %v1069 = vld [vmem:[%s6 + $0x18] sm:$0xff]
      %v1070 = vld [vmem:[%s6 + $0x20] sm:$0xff]
      %v1071 = vld [vmem:[%s6 + $0x28] sm:$0xff]
      %v1072 = vld [vmem:[%s6 + $0x30] sm:$0xff]
      %v1073 = vld [vmem:[%s6 + $0x38] sm:$0xff]
      %v1074 = vld [vmem:[%s6 + $0x40] sm:$0xff]
      %v1075 = vld [vmem:[%s6 + $0x48] sm:$0xff]
      %v1076 = vld [vmem:[%s6 + $0x50] sm:$0xff]
      %v1077 = vld [vmem:[%s6 + $0x58] sm:$0xff]
      %v1078 = vld [vmem:[%s6 + $0x60] sm:$0xff]
      %v1079 = vld [vmem:[%s6 + $0x68] sm:$0xff]
      %v1080 = vld [vmem:[%s6 + $0x70] sm:$0xff]
      %v1081 = vld [vmem:[%s6 + $0x78] sm:$0xff]
      %v1082 = vpack.c.bf16 %v1065, %v1065
      %v1083 = vld [vmem:[%s7] sm:$0x3]
      %v1085 = vlaneseq
      %v1086 = vshrl.u32 %v1085, 7
      %v1087 = vsub.s32 0, %v1086
      %v1088 = vrot.slane %v1083, %v1087
      %v1089 = vlaneseq
      %v1090 = vshrl.u32 %v1089, 7
      %v1091 = vsub.s32 1, %v1090
      %v1092 = vrot.slane %v1083, %v1091
      %v1111 = vunpack.c.l.b16 %v1066
      %v1112 = vunpack.c.h.b16 %v1066
      %v1113 = vunpack.c.l.b16 %v1067
      %v1114 = vunpack.c.h.b16 %v1067
      %v1115 = vunpack.c.l.b16 %v1068
      %v1116 = vunpack.c.h.b16 %v1068
      %v1117 = vunpack.c.l.b16 %v1069
      %v1118 = vunpack.c.h.b16 %v1069
      %v1119 = vunpack.c.l.b16 %v1070
      %v1120 = vunpack.c.h.b16 %v1070
      %v1121 = vunpack.c.l.b16 %v1071
      %v1122 = vunpack.c.h.b16 %v1071
      %v1123 = vunpack.c.l.b16 %v1072
      %v1124 = vunpack.c.h.b16 %v1072
      %v1125 = vunpack.c.l.b16 %v1073
      %v1126 = vunpack.c.h.b16 %v1073
      %v1127 = vunpack.c.l.b16 %v1074
      %v1128 = vunpack.c.h.b16 %v1074
      %v1129 = vunpack.c.l.b16 %v1075
      %v1130 = vunpack.c.h.b16 %v1075
      %v1131 = vunpack.c.l.b16 %v1076
      %v1132 = vunpack.c.h.b16 %v1076
      %v1133 = vunpack.c.l.b16 %v1077
      %v1134 = vunpack.c.h.b16 %v1077
      %v1135 = vunpack.c.l.b16 %v1078
      %v1136 = vunpack.c.h.b16 %v1078
      %v1137 = vunpack.c.l.b16 %v1079
      %v1138 = vunpack.c.h.b16 %v1079
      %v1139 = vunpack.c.l.b16 %v1080
      %v1140 = vunpack.c.h.b16 %v1080
      %v1141 = vunpack.c.l.b16 %v1081
      %v1142 = vunpack.c.h.b16 %v1081
      %v1143 = vpack.c.b16 %v1113, %v1111
      %v1144 = vpack.c.b16 %v1114, %v1112
      %v1145 = vpack.c.b16 %v1117, %v1115
      %v1146 = vpack.c.b16 %v1118, %v1116
      %v1147 = vpack.c.b16 %v1121, %v1119
      %v1148 = vpack.c.b16 %v1122, %v1120
      %v1149 = vpack.c.b16 %v1125, %v1123
      %v1150 = vpack.c.b16 %v1126, %v1124
      %v1151 = vpack.c.b16 %v1129, %v1127
      %v1152 = vpack.c.b16 %v1130, %v1128
      %v1153 = vpack.c.b16 %v1133, %v1131
      %v1154 = vpack.c.b16 %v1134, %v1132
      %v1155 = vpack.c.b16 %v1137, %v1135
      %v1156 = vpack.c.b16 %v1138, %v1136
      %v1157 = vpack.c.b16 %v1141, %v1139
      %v1158 = vpack.c.b16 %v1142, %v1140
      %1175 = vmatprep.subr.bf16.mxu0 %v1144
      %1176 = vmatpush1.bf16.msra.mxu0 %v1143
      %1177 = vmatprep.subr.bf16.mxu0 %v1146
      %1178 = vmatpush1.bf16.msra.mxu0 %v1145
      %1179 = vmatprep.subr.bf16.mxu0 %v1148
      %1180 = vmatpush1.bf16.msra.mxu0 %v1147
      %1181 = vmatprep.subr.bf16.mxu0 %v1150
      %1182 = vmatpush1.bf16.msra.mxu0 %v1149
      %1183 = vmatprep.subr.bf16.mxu0 %v1152
      %1184 = vmatpush1.bf16.msra.mxu0 %v1151
      %1185 = vmatprep.subr.bf16.mxu0 %v1154
      %1186 = vmatpush1.bf16.msra.mxu0 %v1153
      %1187 = vmatprep.subr.bf16.mxu0 %v1156
      %1188 = vmatpush1.bf16.msra.mxu0 %v1155
      %1189 = vmatprep.subr.bf16.mxu0 %v1158
      %1190 = vmatpush1.bf16.msra.mxu0 %v1157
      %1191 = vmatprep.subr.bf16.mxu0 0
      %1192 = vmatpush1.bf16.msra.mxu0 0
      %1193 = vmatprep.subr.bf16.mxu0 0
      %1194 = vmatpush1.bf16.msra.mxu0 0
      %1195 = vmatprep.subr.bf16.mxu0 0
      %1196 = vmatpush1.bf16.msra.mxu0 0
      %1197 = vmatprep.subr.bf16.mxu0 0
      %1198 = vmatpush1.bf16.msra.mxu0 0
      %1199 = vmatprep.subr.bf16.mxu0 0
      %1200 = vmatpush1.bf16.msra.mxu0 0
      %1201 = vmatprep.subr.bf16.mxu0 0
      %1202 = vmatpush1.bf16.msra.mxu0 0
      %1203 = vmatprep.subr.bf16.mxu0 0
      %1204 = vmatpush1.bf16.msra.mxu0 0
      %1205 = vmatprep.subr.bf16.mxu0 0
      %1206 = vmatpush1.bf16.msra.mxu0 0
      %1207 = vmatprep.mubr.bf16.mxu0 0
      %1208 = vmatmul.mubr.bf16.gmra.mrb[0].mxu0 %v1082
      %v1209 = vpop.f32.mrb[0].mxu0
      %v1210 = vadd.f32 %v1088, %v1209
      %v1211 = vpop.f32.mrb[0].mxu0
      %v1212 = vadd.f32 %v1092, %v1211
      %v1213 = vpop.f32.mrb[0].mxu0
      %v1214 = vpop.f32.mrb[0].mxu0
      %1215 = vdwg.mxu0
      %v1216 = vmax.f32 %v1210, 0.0
      %v1217 = vmax.f32 %v1212, 0.0
      %v1218 = vld [vmem:[%s8] sm:$0xf]
      %v1219 = vld [vmem:[%s8 + $0x4] sm:$0xf]
      %v1220 = vld [vmem:[%s8 + $0x8] sm:$0xf]
      %v1221 = vld [vmem:[%s8 + $0xc] sm:$0xf]
      %v1222 = vld [vmem:[%s8 + $0x10] sm:$0xf]
      %v1223 = vld [vmem:[%s8 + $0x14] sm:$0xf]
      %v1224 = vld [vmem:[%s8 + $0x18] sm:$0xf]
      %v1225 = vld [vmem:[%s8 + $0x1c] sm:$0xf]
      %v1226 = vld [vmem:[%s8 + $0x20] sm:$0xf]
      %v1227 = vld [vmem:[%s8 + $0x24] sm:$0xf]
      %v1228 = vld [vmem:[%s8 + $0x28] sm:$0xf]
      %v1229 = vld [vmem:[%s8 + $0x2c] sm:$0xf]
      %v1230 = vld [vmem:[%s8 + $0x30] sm:$0xf]
      %v1231 = vld [vmem:[%s8 + $0x34] sm:$0xf]
      %v1232 = vld [vmem:[%s8 + $0x38] sm:$0xf]
      %v1233 = vld [vmem:[%s8 + $0x3c] sm:$0xf]
      %v1234 = vld [vmem:[%s8 + $0x40] sm:$0xf]
      %v1235 = vld [vmem:[%s8 + $0x44] sm:$0xf]
      %v1236 = vld [vmem:[%s8 + $0x48] sm:$0xf]
      %v1237 = vld [vmem:[%s8 + $0x4c] sm:$0xf]
      %v1238 = vld [vmem:[%s8 + $0x50] sm:$0xf]
      %v1239 = vld [vmem:[%s8 + $0x54] sm:$0xf]
      %v1240 = vld [vmem:[%s8 + $0x58] sm:$0xf]
      %v1241 = vld [vmem:[%s8 + $0x5c] sm:$0xf]
      %v1242 = vld [vmem:[%s8 + $0x60] sm:$0xf]
      %v1243 = vld [vmem:[%s8 + $0x64] sm:$0xf]
      %v1244 = vld [vmem:[%s8 + $0x68] sm:$0xf]
      %v1245 = vld [vmem:[%s8 + $0x6c] sm:$0xf]
      %v1246 = vld [vmem:[%s8 + $0x70] sm:$0xf]
      %v1247 = vld [vmem:[%s8 + $0x74] sm:$0xf]
      %v1248 = vld [vmem:[%s8 + $0x78] sm:$0xf]
      %v1249 = vld [vmem:[%s8 + $0x7c] sm:$0xf]
      %v1250 = vpack.c.bf16 %v1216, %v1216
      %v1251 = vpack.c.bf16 %v1217, %v1217
      %v1252 = vld [vmem:[%s9] sm:$0x1]
      %v1254 = vlaneseq
      %v1255 = vshrl.u32 %v1254, 7
      %v1256 = vsub.s32 0, %v1255
      %v1257 = vrot.slane %v1252, %v1256
      %v1291 = vunpack.c.l.b16 %v1218
      %v1292 = vunpack.c.l.b16 %v1219
      %v1293 = vunpack.c.l.b16 %v1220
      %v1294 = vunpack.c.l.b16 %v1221
      %v1295 = vunpack.c.l.b16 %v1222
      %v1296 = vunpack.c.l.b16 %v1223
      %v1297 = vunpack.c.l.b16 %v1224
      %v1298 = vunpack.c.l.b16 %v1225
      %v1299 = vunpack.c.l.b16 %v1226
      %v1300 = vunpack.c.l.b16 %v1227
      %v1301 = vunpack.c.l.b16 %v1228
      %v1302 = vunpack.c.l.b16 %v1229
      %v1303 = vunpack.c.l.b16 %v1230
      %v1304 = vunpack.c.l.b16 %v1231
      %v1305 = vunpack.c.l.b16 %v1232
      %v1306 = vunpack.c.l.b16 %v1233
      %v1307 = vunpack.c.l.b16 %v1234
      %v1308 = vunpack.c.l.b16 %v1235
      %v1309 = vunpack.c.l.b16 %v1236
      %v1310 = vunpack.c.l.b16 %v1237
      %v1311 = vunpack.c.l.b16 %v1238
      %v1312 = vunpack.c.l.b16 %v1239
      %v1313 = vunpack.c.l.b16 %v1240
      %v1314 = vunpack.c.l.b16 %v1241
      %v1315 = vunpack.c.l.b16 %v1242
      %v1316 = vunpack.c.l.b16 %v1243
      %v1317 = vunpack.c.l.b16 %v1244
      %v1318 = vunpack.c.l.b16 %v1245
      %v1319 = vunpack.c.l.b16 %v1246
      %v1320 = vunpack.c.l.b16 %v1247
      %v1321 = vunpack.c.l.b16 %v1248
      %v1322 = vunpack.c.l.b16 %v1249
      %v1323 = vpack.c.b16 %v1292, %v1291
      %v1324 = vpack.c.b16 %v1294, %v1293
      %v1325 = vpack.c.b16 %v1296, %v1295
      %v1326 = vpack.c.b16 %v1298, %v1297
      %v1327 = vpack.c.b16 %v1300, %v1299
      %v1328 = vpack.c.b16 %v1302, %v1301
      %v1329 = vpack.c.b16 %v1304, %v1303
      %v1330 = vpack.c.b16 %v1306, %v1305
      %v1331 = vpack.c.b16 %v1308, %v1307
      %v1332 = vpack.c.b16 %v1310, %v1309
      %v1333 = vpack.c.b16 %v1312, %v1311
      %v1334 = vpack.c.b16 %v1314, %v1313
      %v1335 = vpack.c.b16 %v1316, %v1315
      %v1336 = vpack.c.b16 %v1318, %v1317
      %v1337 = vpack.c.b16 %v1320, %v1319
      %v1338 = vpack.c.b16 %v1322, %v1321
      %1355 = vmatprep.subr.bf16.mxu0 0
      %1356 = vmatpush1.bf16.msra.mxu0 %v1323
      %1357 = vmatprep.subr.bf16.mxu0 0
      %1358 = vmatpush1.bf16.msra.mxu0 %v1324
      %1359 = vmatprep.subr.bf16.mxu0 0
      %1360 = vmatpush1.bf16.msra.mxu0 %v1325
      %1361 = vmatprep.subr.bf16.mxu0 0
      %1362 = vmatpush1.bf16.msra.mxu0 %v1326
      %1363 = vmatprep.subr.bf16.mxu0 0
      %1364 = vmatpush1.bf16.msra.mxu0 %v1327
      %1365 = vmatprep.subr.bf16.mxu0 0
      %1366 = vmatpush1.bf16.msra.mxu0 %v1328
      %1367 = vmatprep.subr.bf16.mxu0 0
      %1368 = vmatpush1.bf16.msra.mxu0 %v1329
      %1369 = vmatprep.subr.bf16.mxu0 0
      %1370 = vmatpush1.bf16.msra.mxu0 %v1330
      %1371 = vmatprep.subr.bf16.mxu0 0
      %1372 = vmatpush1.bf16.msra.mxu0 %v1331
      %1373 = vmatprep.subr.bf16.mxu0 0
      %1374 = vmatpush1.bf16.msra.mxu0 %v1332
      %1375 = vmatprep.subr.bf16.mxu0 0
      %1376 = vmatpush1.bf16.msra.mxu0 %v1333
      %1377 = vmatprep.subr.bf16.mxu0 0
      %1378 = vmatpush1.bf16.msra.mxu0 %v1334
      %1379 = vmatprep.subr.bf16.mxu0 0
      %1380 = vmatpush1.bf16.msra.mxu0 %v1335
      %1381 = vmatprep.subr.bf16.mxu0 0
      %1382 = vmatpush1.bf16.msra.mxu0 %v1336
      %1383 = vmatprep.subr.bf16.mxu0 0
      %1384 = vmatpush1.bf16.msra.mxu0 %v1337
      %1385 = vmatprep.subr.bf16.mxu0 0
      %1386 = vmatpush1.bf16.msra.mxu0 %v1338
      %1387 = vmatprep.mubr.bf16.mxu0 %v1251
      %1388 = vmatmul.mubr.bf16.gmra.mrb[0].mxu0 %v1250
      %v1389 = vpop.f32.mrb[0].mxu0
      %v1390 = vadd.f32 %v1257, %v1389
      %v1391 = vpop.f32.mrb[0].mxu0
      %v1392 = vpop.f32.mrb[0].mxu0
      %v1393 = vpop.f32.mrb[0].mxu0
      %1394 = vdwg.mxu0
      %v1395 = vadd.f32 %v1390, %v1065
      %v1396 = vld [vmem:[%s10] sm:$0x1]
      %v1397 = vld [vmem:[%s11] sm:$0x1]
      %1398 = vadd.xlane.f32.xlu0 %v1395
      %v1399 = vpop.xlane.xlu0 %1398
      %v1400 = vmul.f32 %v1399, %v1042
      %v1401 = vsub.f32 %v1395, %v1400
      %v1402 = vmul.f32 %v1401, %v1401
      %1403 = vadd.xlane.f32.xlu0 %v1402
      %v1404 = vpop.xlane.xlu0 %1403
      %v1405 = vmul.f32 %v1404, %v1042
      %v1406 = vadd.f32 %v1405, 1e-05
      %v1407 = vrsqrt.pop %v1406
      %v1408 = vmul.f32 %v1401, %v1407
      %v1410 = vlaneseq
      %v1411 = vshrl.u32 %v1410, 7
      %v1412 = vsub.s32 0, %v1411
      %v1413 = vrot.slane %v1396, %v1412
      %v1415 = vmul.f32 %v1408, %v1413
      %v1417 = vlaneseq
      %v1418 = vshrl.u32 %v1417, 7
      %v1419 = vsub.s32 0, %v1418
      %v1420 = vrot.slane %v1397, %v1419
      %v1422 = vadd.f32 %v1415, %v1420
      %1423 = vst [vmem:[%s422] sm:$0xff] %v1422
      %p1424 = scmp.lt.s32.totalorder %s23, 1
      %s1425 = scalar_select %p1424, %s23, 1
      %s1426 = smul.addr %s1425, 8
      %s1427 = scalar_lea.vmem %s12, %s1426
      // Predicated region
      $region69: #{ctg_forward.5} parent=67 // pred_check
        %p1428 = pneg %p303
      $region70: #{ctg_forward.5} parent=67 // pred_check_branch
        %1430 = sbr.rel (%p1428) target = $region72
      $region71: #{ctg_forward.5} parent=67 // pred_region
        _
      $region72: #{ctg_forward.5} parent=67 // pred_fallthru
        _
    $region68: #{ctg_forward.5} parent=5 // pred_fallthru
      _
    %p1431 = scmp.le.s32.totalorder 2, %s18
    // Predicated region
    $region73: #{ctg_forward.5} parent=5 // pred_check
      %p1432 = pneg %p1431
    $region74: #{ctg_forward.5} parent=5 // pred_check_branch
      %1434 = sbr.rel (%p1432) target = $region76
    $region75: #{ctg_forward.5} parent=5 // pred_region
      %s1435 = ssub.s32 %s18, 2
      // Predicated region
      $region77: #{ctg_forward.5} parent=75 // pred_check
        %p1436 = pneg %p309
      $region78: #{ctg_forward.5} parent=75 // pred_check_branch
        %1438 = sbr.rel (%p1436) target = $region80
      $region79: #{ctg_forward.5} parent=75 // pred_region
        %p1439 = scmp.lt.s32.totalorder %s24, 1
        %s1440 = scalar_select %p1439, %s24, 1
        %s1441 = smul.addr %s1440, 8
        %s1442 = scalar_lea.vmem %s12, %s1441
      $region80: #{ctg_forward.5} parent=75 // pred_fallthru
        _
    $region76: #{ctg_forward.5} parent=5 // pred_fallthru
      _
  $region6: #{ctg_forward.5} parent=0 // loop_footer
    %s22 = sadd.s32 1, %s18
  $region7: #{ctg_forward.5} parent=0 // loop_footer_branch
    %17 = sbr.rel target = $region3
  $region8: #{ctg_forward.5} parent=0 // loop_exit
    _

// kernel: ctg_forward.9
$region0: #{ctg_forward.9}
  #allocation0 [shape = 'u32[]', space=smem, size = 0x4, offset = 0x4, fixed_abs, tag = 'smem constant byte address 0x4 - core index']
  #allocation1 [shape = 'u32[144,128]{1,0:T(1,128)}', space=vmem, size = 0x12000, scoped, tag = 'internal scratch']
  #allocation2 [shape = 'f32[1,1]{1,0:T(1,128)S(1)}', space=vmem, size = 0x200, scoped, tag = 'scoped memory for ctg_forward.9']
  %s0 = inlined_call_operand.vmem [shape: f32[32,130], index: 0, kind: input, shape index: {}]
  %s1 = inlined_call_operand.vmem [shape: f32[130,256], index: 1, kind: input, shape index: {}]
  %s2 = inlined_call_operand.vmem [shape: f32[1,256], index: 2, kind: input, shape index: {}]
  %s3 = inlined_call_operand.vmem [shape: bf16[256,512], index: 3, kind: input, shape index: {}]
  %s4 = inlined_call_operand.vmem [shape: f32[1,512], index: 4, kind: input, shape index: {}]
  %s5 = inlined_call_operand.vmem [shape: bf16[512,256], index: 5, kind: input, shape index: {}]
  %s6 = inlined_call_operand.vmem [shape: f32[1,256], index: 6, kind: input, shape index: {}]
  %s7 = inlined_call_operand.vmem [shape: bf16[256,128], index: 7, kind: input, shape index: {}]
  %s8 = inlined_call_operand.vmem [shape: f32[1,128], index: 8, kind: input, shape index: {}]
  %s9 = inlined_call_operand.vmem [shape: bf16[128,1], index: 9, kind: input, shape index: {}]
  %s10 = inlined_call_operand.<no memory space> [shape: f32[1,1], index: 10, kind: input, shape index: {}]
  %s11 = inlined_call_operand.vmem [shape: f32[32,1], index: 11, kind: output, shape index: {}]
  %s12 = sld [smem:[#allocation0]]
  $region77: #{ctg_forward.9} parent=0
    _
  %s14 = ssub.s32 1, %s12
  %s15 = scalar_select 0, %s14, %s12
  %v16 = vstv %s10
  %17 = vst [vmem:[#allocation2] sm:$0x1] %v16
  loop: start=0, step=1, limit=6
  $region2: #{ctg_forward.9} parent=0 // loop_pre_header
    _
  $region3: #{ctg_forward.9} parent=0 // loop_header
    %s19 = sphi 0, %s23
    %p20 = scmp.ge.s32.totalorder %s19, 6
    %s29 = sphi 0, %s31
    %s32 = sphi 0, %s29
    %s33 = sphi 0, %s32
    %s49 = sphi 0, %s33
    %s53 = sphi 0, %s53
    %s55 = sphi 0, %s53
    %s56 = sphi 0, %s55
    %s70 = sphi 0, %s56
    %s74 = sphi 0, %s74
    %s76 = sphi 0, %s74
    %s77 = sphi 0, %s76
    %s91 = sphi 0, %s77
    %s95 = sphi 0, %s95
    %s97 = sphi 0, %s95
    %s98 = sphi 0, %s97
    %s112 = sphi 0, %s98
    %s116 = sphi 0, %s116
    %s118 = sphi 0, %s116
    %s119 = sphi 0, %s118
    %s133 = sphi 0, %s119
    %s137 = sphi 0, %s137
    %s139 = sphi 0, %s137
    %s140 = sphi 0, %s139
    %s154 = sphi 0, %s140
    %s158 = sphi 0, %s158
    %s160 = sphi 0, %s158
    %s161 = sphi 0, %s160
    %s175 = sphi 0, %s161
    %s179 = sphi 0, %s179
    %s181 = sphi 0, %s179
    %s182 = sphi 0, %s181
    %s196 = sphi 0, %s182
    %s200 = sphi 0, %s200
    %s202 = sphi 0, %s200
    %s203 = sphi 0, %s202
    %s217 = sphi 0, %s203
    %s221 = sphi 0, %s221
    %s223 = sphi 0, %s221
    %s224 = sphi 0, %s223
    %s238 = sphi 0, %s224
    %s242 = sphi 0, %s242
    %s244 = sphi 0, %s242
    %s245 = sphi 0, %s244
    %s259 = sphi 0, %s245
    %s265 = sphi 0, %s267
    %s268 = sphi 0, %s265
    %s269 = sphi 0, %s268
    %s285 = sphi 0, %s269
  $region4: #{ctg_forward.9} parent=0 // loop_header_branch
    %22 = sbr.rel (%p20) target = $region8
  $region5: #{ctg_forward.9} parent=0 // loop_body
    %s24 = ssub.s32 %s19, 1
    %s25 = ssub.s32 %s19, 2
    %s26 = sadd.s32 %s19, 1
    %s27 = ssub.s32 %s19, %s26
    %p28 = scmp.eq.s32.totalorder %s27, 0
    %s30 = sadd.s32 %s29, 1
    %s31 = scalar_select %p28, %s29, %s30
    %p34 = pneg %p28
    %p35 = scmp.eq.s32.totalorder %s19, 3
    %p36 = por %p34, %p35
    %p37 = scmp.ne.s32.totalorder %s29, %s32
    %p38 = scmp.eq.s32.totalorder %s19, 0
    %p39 = por %p37, %p38
    %p40 = scmp.ne.s32.totalorder %s29, %s32
    %p41 = scmp.eq.s32.totalorder %s24, 3
    %p42 = por %p40, %p41
    %p43 = scmp.ne.s32.totalorder %s32, %s33
    %p44 = scmp.eq.s32.totalorder %s24, 0
    %p45 = por %p43, %p44
    %p46 = scmp.ne.s32.totalorder %s32, %s33
    %p47 = scmp.eq.s32.totalorder %s25, 3
    %p48 = por %p46, %p47
    %p50 = scmp.ne.s32.totalorder %s33, %s49
    %p51 = scmp.eq.s32.totalorder %s25, 0
    %p52 = por %p50, %p51
    %s54 = sadd.s32 %s53, 1
    %p57 = scmp.eq.s32.totalorder %s19, 3
    %p58 = scmp.ne.s32.totalorder %s53, %s55
    %p59 = scmp.eq.s32.totalorder %s19, 0
    %p60 = por %p58, %p59
    %p61 = scmp.ne.s32.totalorder %s53, %s55
    %p62 = scmp.eq.s32.totalorder %s24, 3
    %p63 = por %p61, %p62
    %p64 = scmp.ne.s32.totalorder %s55, %s56
    %p65 = scmp.eq.s32.totalorder %s24, 0
    %p66 = por %p64, %p65
    %p67 = scmp.ne.s32.totalorder %s55, %s56
    %p68 = scmp.eq.s32.totalorder %s25, 3
    %p69 = por %p67, %p68
    %p71 = scmp.ne.s32.totalorder %s56, %s70
    %p72 = scmp.eq.s32.totalorder %s25, 0
    %p73 = por %p71, %p72
    %s75 = sadd.s32 %s74, 1
    %p78 = scmp.eq.s32.totalorder %s19, 3
    %p79 = scmp.ne.s32.totalorder %s74, %s76
    %p80 = scmp.eq.s32.totalorder %s19, 0
    %p81 = por %p79, %p80
    %p82 = scmp.ne.s32.totalorder %s74, %s76
    %p83 = scmp.eq.s32.totalorder %s24, 3
    %p84 = por %p82, %p83
    %p85 = scmp.ne.s32.totalorder %s76, %s77
    %p86 = scmp.eq.s32.totalorder %s24, 0
    %p87 = por %p85, %p86
    %p88 = scmp.ne.s32.totalorder %s76, %s77
    %p89 = scmp.eq.s32.totalorder %s25, 3
    %p90 = por %p88, %p89
    %p92 = scmp.ne.s32.totalorder %s77, %s91
    %p93 = scmp.eq.s32.totalorder %s25, 0
    %p94 = por %p92, %p93
    %s96 = sadd.s32 %s95, 1
    %p99 = scmp.eq.s32.totalorder %s19, 3
    %p100 = scmp.ne.s32.totalorder %s95, %s97
    %p101 = scmp.eq.s32.totalorder %s19, 0
    %p102 = por %p100, %p101
    %p103 = scmp.ne.s32.totalorder %s95, %s97
    %p104 = scmp.eq.s32.totalorder %s24, 3
    %p105 = por %p103, %p104
    %p106 = scmp.ne.s32.totalorder %s97, %s98
    %p107 = scmp.eq.s32.totalorder %s24, 0
    %p108 = por %p106, %p107
    %p109 = scmp.ne.s32.totalorder %s97, %s98
    %p110 = scmp.eq.s32.totalorder %s25, 3
    %p111 = por %p109, %p110
    %p113 = scmp.ne.s32.totalorder %s98, %s112
    %p114 = scmp.eq.s32.totalorder %s25, 0
    %p115 = por %p113, %p114
    %s117 = sadd.s32 %s116, 1
    %p120 = scmp.eq.s32.totalorder %s19, 3
    %p121 = scmp.ne.s32.totalorder %s116, %s118
    %p122 = scmp.eq.s32.totalorder %s19, 0
    %p123 = por %p121, %p122
    %p124 = scmp.ne.s32.totalorder %s116, %s118
    %p125 = scmp.eq.s32.totalorder %s24, 3
    %p126 = por %p124, %p125
    %p127 = scmp.ne.s32.totalorder %s118, %s119
    %p128 = scmp.eq.s32.totalorder %s24, 0
    %p129 = por %p127, %p128
    %p130 = scmp.ne.s32.totalorder %s118, %s119
    %p131 = scmp.eq.s32.totalorder %s25, 3
    %p132 = por %p130, %p131
    %p134 = scmp.ne.s32.totalorder %s119, %s133
    %p135 = scmp.eq.s32.totalorder %s25, 0
    %p136 = por %p134, %p135
    %s138 = sadd.s32 %s137, 1
    %p141 = scmp.eq.s32.totalorder %s19, 3
    %p142 = scmp.ne.s32.totalorder %s137, %s139
    %p143 = scmp.eq.s32.totalorder %s19, 0
    %p144 = por %p142, %p143
    %p145 = scmp.ne.s32.totalorder %s137, %s139
    %p146 = scmp.eq.s32.totalorder %s24, 3
    %p147 = por %p145, %p146
    %p148 = scmp.ne.s32.totalorder %s139, %s140
    %p149 = scmp.eq.s32.totalorder %s24, 0
    %p150 = por %p148, %p149
    %p151 = scmp.ne.s32.totalorder %s139, %s140
    %p152 = scmp.eq.s32.totalorder %s25, 3
    %p153 = por %p151, %p152
    %p155 = scmp.ne.s32.totalorder %s140, %s154
    %p156 = scmp.eq.s32.totalorder %s25, 0
    %p157 = por %p155, %p156
    %s159 = sadd.s32 %s158, 1
    %p162 = scmp.eq.s32.totalorder %s19, 3
    %p163 = scmp.ne.s32.totalorder %s158, %s160
    %p164 = scmp.eq.s32.totalorder %s19, 0
    %p165 = por %p163, %p164
    %p166 = scmp.ne.s32.totalorder %s158, %s160
    %p167 = scmp.eq.s32.totalorder %s24, 3
    %p168 = por %p166, %p167
    %p169 = scmp.ne.s32.totalorder %s160, %s161
    %p170 = scmp.eq.s32.totalorder %s24, 0
    %p171 = por %p169, %p170
    %p172 = scmp.ne.s32.totalorder %s160, %s161
    %p173 = scmp.eq.s32.totalorder %s25, 3
    %p174 = por %p172, %p173
    %p176 = scmp.ne.s32.totalorder %s161, %s175
    %p177 = scmp.eq.s32.totalorder %s25, 0
    %p178 = por %p176, %p177
    %s180 = sadd.s32 %s179, 1
    %p183 = scmp.eq.s32.totalorder %s19, 3
    %p184 = scmp.ne.s32.totalorder %s179, %s181
    %p185 = scmp.eq.s32.totalorder %s19, 0
    %p186 = por %p184, %p185
    %p187 = scmp.ne.s32.totalorder %s179, %s181
    %p188 = scmp.eq.s32.totalorder %s24, 3
    %p189 = por %p187, %p188
    %p190 = scmp.ne.s32.totalorder %s181, %s182
    %p191 = scmp.eq.s32.totalorder %s24, 0
    %p192 = por %p190, %p191
    %p193 = scmp.ne.s32.totalorder %s181, %s182
    %p194 = scmp.eq.s32.totalorder %s25, 3
    %p195 = por %p193, %p194
    %p197 = scmp.ne.s32.totalorder %s182, %s196
    %p198 = scmp.eq.s32.totalorder %s25, 0
    %p199 = por %p197, %p198
    %s201 = sadd.s32 %s200, 1
    %p204 = scmp.eq.s32.totalorder %s19, 3
    %p205 = scmp.ne.s32.totalorder %s200, %s202
    %p206 = scmp.eq.s32.totalorder %s19, 0
    %p207 = por %p205, %p206
    %p208 = scmp.ne.s32.totalorder %s200, %s202
    %p209 = scmp.eq.s32.totalorder %s24, 3
    %p210 = por %p208, %p209
    %p211 = scmp.ne.s32.totalorder %s202, %s203
    %p212 = scmp.eq.s32.totalorder %s24, 0
    %p213 = por %p211, %p212
    %p214 = scmp.ne.s32.totalorder %s202, %s203
    %p215 = scmp.eq.s32.totalorder %s25, 3
    %p216 = por %p214, %p215
    %p218 = scmp.ne.s32.totalorder %s203, %s217
    %p219 = scmp.eq.s32.totalorder %s25, 0
    %p220 = por %p218, %p219
    %s222 = sadd.s32 %s221, 1
    %p225 = scmp.eq.s32.totalorder %s19, 3
    %p226 = scmp.ne.s32.totalorder %s221, %s223
    %p227 = scmp.eq.s32.totalorder %s19, 0
    %p228 = por %p226, %p227
    %p229 = scmp.ne.s32.totalorder %s221, %s223
    %p230 = scmp.eq.s32.totalorder %s24, 3
    %p231 = por %p229, %p230
    %p232 = scmp.ne.s32.totalorder %s223, %s224
    %p233 = scmp.eq.s32.totalorder %s24, 0
    %p234 = por %p232, %p233
    %p235 = scmp.ne.s32.totalorder %s223, %s224
    %p236 = scmp.eq.s32.totalorder %s25, 3
    %p237 = por %p235, %p236
    %p239 = scmp.ne.s32.totalorder %s224, %s238
    %p240 = scmp.eq.s32.totalorder %s25, 0
    %p241 = por %p239, %p240
    %s243 = sadd.s32 %s242, 1
    %p246 = scmp.eq.s32.totalorder %s19, 3
    %p247 = scmp.ne.s32.totalorder %s242, %s244
    %p248 = scmp.eq.s32.totalorder %s19, 0
    %p249 = por %p247, %p248
    %p250 = scmp.ne.s32.totalorder %s242, %s244
    %p251 = scmp.eq.s32.totalorder %s24, 3
    %p252 = por %p250, %p251
    %p253 = scmp.ne.s32.totalorder %s244, %s245
    %p254 = scmp.eq.s32.totalorder %s24, 0
    %p255 = por %p253, %p254
    %p256 = scmp.ne.s32.totalorder %s244, %s245
    %p257 = scmp.eq.s32.totalorder %s25, 3
    %p258 = por %p256, %p257
    %p260 = scmp.ne.s32.totalorder %s245, %s259
    %p261 = scmp.eq.s32.totalorder %s25, 0
    %p262 = por %p260, %p261
    %s263 = ssub.s32 %s19, %s26
    %p264 = scmp.eq.s32.totalorder %s263, 0
    %s266 = sadd.s32 %s265, 1
    %s267 = scalar_select %p264, %s265, %s266
    %p270 = pneg %p264
    %p271 = scmp.eq.s32.totalorder %s19, 3
    %p272 = por %p270, %p271
    %p273 = scmp.ne.s32.totalorder %s265, %s268
    %p274 = scmp.eq.s32.totalorder %s19, 0
    %p275 = por %p273, %p274
    %p276 = scmp.ne.s32.totalorder %s265, %s268
    %p277 = scmp.eq.s32.totalorder %s24, 3
    %p278 = por %p276, %p277
    %p279 = scmp.ne.s32.totalorder %s268, %s269
    %p280 = scmp.eq.s32.totalorder %s24, 0
    %p281 = por %p279, %p280
    %p282 = scmp.ne.s32.totalorder %s268, %s269
    %p283 = scmp.eq.s32.totalorder %s25, 3
    %p284 = por %p282, %p283
    %p286 = scmp.ne.s32.totalorder %s269, %s285
    %p287 = scmp.eq.s32.totalorder %s25, 0
    %p288 = por %p286, %p287
    %p289 = scmp.le.s32.totalorder 1, %s19
    %p290 = scmp.lt.s32.totalorder %s19, 5
    %p291 = pnand %p289, %p290
    %p292 = pneg %p291
    // Predicated region
    $region9: #{ctg_forward.9} parent=5 // pred_check
      _
    $region10: #{ctg_forward.9} parent=5 // pred_check_branch
      %294 = sbr.rel (%p291) target = $region12
    $region11: #{ctg_forward.9} parent=5 // pred_region
      %s295 = ssub.s32 %s19, 1
      // Predicated region
      $region13: #{ctg_forward.9} parent=11 // pred_check
        %p296 = pneg %p66
      $region14: #{ctg_forward.9} parent=11 // pred_check_branch
        %298 = sbr.rel (%p296) target = $region16
      $region15: #{ctg_forward.9} parent=11 // pred_region
        _
      $region16: #{ctg_forward.9} parent=11 // pred_fallthru
        _
      // Predicated region
      $region17: #{ctg_forward.9} parent=11 // pred_check
        %p299 = pneg %p87
      $region18: #{ctg_forward.9} parent=11 // pred_check_branch
        %301 = sbr.rel (%p299) target = $region20
      $region19: #{ctg_forward.9} parent=11 // pred_region
        _
      $region20: #{ctg_forward.9} parent=11 // pred_fallthru
        _
      // Predicated region
      $region21: #{ctg_forward.9} parent=11 // pred_check
        %p302 = pneg %p108
      $region22: #{ctg_forward.9} parent=11 // pred_check_branch
        %304 = sbr.rel (%p302) target = $region24
      $region23: #{ctg_forward.9} parent=11 // pred_region
        _
      $region24: #{ctg_forward.9} parent=11 // pred_fallthru
        _
      // Predicated region
      $region25: #{ctg_forward.9} parent=11 // pred_check
        %p305 = pneg %p129
      $region26: #{ctg_forward.9} parent=11 // pred_check_branch
        %307 = sbr.rel (%p305) target = $region28
      $region27: #{ctg_forward.9} parent=11 // pred_region
        _
      $region28: #{ctg_forward.9} parent=11 // pred_fallthru
        _
      // Predicated region
      $region29: #{ctg_forward.9} parent=11 // pred_check
        %p308 = pneg %p150
      $region30: #{ctg_forward.9} parent=11 // pred_check_branch
        %310 = sbr.rel (%p308) target = $region32
      $region31: #{ctg_forward.9} parent=11 // pred_region
        _
      $region32: #{ctg_forward.9} parent=11 // pred_fallthru
        _
      // Predicated region
      $region33: #{ctg_forward.9} parent=11 // pred_check
        %p311 = pneg %p171
      $region34: #{ctg_forward.9} parent=11 // pred_check_branch
        %313 = sbr.rel (%p311) target = $region36
      $region35: #{ctg_forward.9} parent=11 // pred_region
        _
      $region36: #{ctg_forward.9} parent=11 // pred_fallthru
        _
      // Predicated region
      $region37: #{ctg_forward.9} parent=11 // pred_check
        %p314 = pneg %p192
      $region38: #{ctg_forward.9} parent=11 // pred_check_branch
        %316 = sbr.rel (%p314) target = $region40
      $region39: #{ctg_forward.9} parent=11 // pred_region
        _
      $region40: #{ctg_forward.9} parent=11 // pred_fallthru
        _
      // Predicated region
      $region41: #{ctg_forward.9} parent=11 // pred_check
        %p317 = pneg %p213
      $region42: #{ctg_forward.9} parent=11 // pred_check_branch
        %319 = sbr.rel (%p317) target = $region44
      $region43: #{ctg_forward.9} parent=11 // pred_region
        _
      $region44: #{ctg_forward.9} parent=11 // pred_fallthru
        _
      // Predicated region
      $region45: #{ctg_forward.9} parent=11 // pred_check
        %p320 = pneg %p234
      $region46: #{ctg_forward.9} parent=11 // pred_check_branch
        %322 = sbr.rel (%p320) target = $region48
      $region47: #{ctg_forward.9} parent=11 // pred_region
        _
      $region48: #{ctg_forward.9} parent=11 // pred_fallthru
        _
      // Predicated region
      $region49: #{ctg_forward.9} parent=11 // pred_check
        %p323 = pneg %p255
      $region50: #{ctg_forward.9} parent=11 // pred_check_branch
        %325 = sbr.rel (%p323) target = $region52
      $region51: #{ctg_forward.9} parent=11 // pred_region
        _
      $region52: #{ctg_forward.9} parent=11 // pred_fallthru
        _
    $region12: #{ctg_forward.9} parent=5 // pred_fallthru
      _
    %p326 = scmp.lt.s32.totalorder %s19, 4
    // Predicated region
    $region53: #{ctg_forward.9} parent=5 // pred_check
      %p327 = pneg %p326
    $region54: #{ctg_forward.9} parent=5 // pred_check_branch
      %329 = sbr.rel (%p327) target = $region56
    $region55: #{ctg_forward.9} parent=5 // pred_region
      // Predicated region
      $region57: #{ctg_forward.9} parent=55 // pred_check
        %p330 = pneg %p39
      $region58: #{ctg_forward.9} parent=55 // pred_check_branch
        %332 = sbr.rel (%p330) target = $region60
      $region59: #{ctg_forward.9} parent=55 // pred_region
        %p333 = scmp.lt.s32.totalorder %s19, 3
        %s334 = scalar_select %p333, %s19, 3
        %s335 = smul.addr %s334, 2
        %s336 = smul.addr %s335, 8
        %s337 = scalar_lea.vmem %s0, %s336
      $region60: #{ctg_forward.9} parent=55 // pred_fallthru
        _
    $region56: #{ctg_forward.9} parent=5 // pred_fallthru
      _
    %p338 = scmp.le.s32.totalorder 1, %s19
    %p339 = scmp.lt.s32.totalorder %s19, 5
    %p340 = pnand %p338, %p339
    %p341 = pneg %p340
    // Predicated region
    $region61: #{ctg_forward.9} parent=5 // pred_check
      _
    $region62: #{ctg_forward.9} parent=5 // pred_check_branch
      %343 = sbr.rel (%p340) target = $region64
    $region63: #{ctg_forward.9} parent=5 // pred_region
      %s344 = ssub.s32 %s19, 1
      %p345 = scmp.lt.s32.totalorder %s24, 3
      %s346 = scalar_select %p345, %s24, 3
      %s347 = smul.addr %s346, 2
      %s348 = smul.addr %s347, 8
      %s349 = scalar_lea.vmem %s0, %s348
      %p350 = pneg %p45
      %p351 = pneg %p42
      %p352 = pneg %p66
      %p353 = pneg %p63
      %p354 = pneg %p87
      %p355 = pneg %p84
      %p356 = pneg %p108
      %p357 = pneg %p105
      %p358 = pneg %p129
      %p359 = pneg %p126
      %p360 = pneg %p150
      %p361 = pneg %p147
      %p362 = pneg %p171
      %p363 = pneg %p168
      %p364 = pneg %p192
      %p365 = pneg %p189
      %p366 = pneg %p213
      %p367 = pneg %p210
      %p368 = pneg %p234
      %p369 = pneg %p231
      %p370 = pneg %p255
      %p371 = pneg %p252
      %p372 = pneg %p281
      %p373 = pneg %p278
      %p374 = scmp.lt.s32.totalorder %s24, 3
      %s375 = scalar_select %p374, %s24, 3
      %s376 = smul.addr %s375, 8
      %s377 = scalar_lea.vmem %s11, %s376
      %p378 = scmp.lt.s32.totalorder %s24, 3
      %s379 = scalar_select %p378, %s24, 3
      %s380 = smul.addr %s379, 2
      %s381 = smul.addr %s380, 8
      %s382 = scalar_lea.vmem %s0, %s381
      %p383 = scmp.lt.s32.totalorder %s24, 3
      %s384 = scalar_select %p383, %s24, 3
      %s385 = smul.addr %s384, 8
      %s386 = scalar_lea.vmem %s11, %s385
      %v388 = vld [vmem:[%s382] sm:$0xff]
      %v389 = vld [vmem:[%s382 + $0x8] sm:$0xff]
      %v390 = vld [vmem:[%s1] sm:$0xff]
      %v391 = vld [vmem:[%s1 + $0x8] sm:$0xff]
      %v392 = vld [vmem:[%s1 + $0x10] sm:$0xff]
      %v393 = vld [vmem:[%s1 + $0x18] sm:$0xff]
      %v394 = vld [vmem:[%s1 + $0x20] sm:$0xff]
      %v395 = vld [vmem:[%s1 + $0x28] sm:$0xff]
      %v396 = vld [vmem:[%s1 + $0x30] sm:$0xff]
      %v397 = vld [vmem:[%s1 + $0x38] sm:$0xff]
      %v398 = vld [vmem:[%s1 + $0x40] sm:$0xff]
      %v399 = vld [vmem:[%s1 + $0x48] sm:$0xff]
      %v400 = vld [vmem:[%s1 + $0x50] sm:$0xff]
      %v401 = vld [vmem:[%s1 + $0x58] sm:$0xff]
      %v402 = vld [vmem:[%s1 + $0x60] sm:$0xff]
      %v403 = vld [vmem:[%s1 + $0x68] sm:$0xff]
      %v404 = vld [vmem:[%s1 + $0x70] sm:$0xff]
      %v405 = vld [vmem:[%s1 + $0x78] sm:$0xff]
      %v406 = vld [vmem:[%s1 + $0x80] sm:$0xff]
      %v407 = vld [vmem:[%s1 + $0x88] sm:$0xff]
      %v408 = vld [vmem:[%s1 + $0x90] sm:$0xff]
      %v409 = vld [vmem:[%s1 + $0x98] sm:$0xff]
      %v410 = vld [vmem:[%s1 + $0xa0] sm:$0xff]
      %v411 = vld [vmem:[%s1 + $0xa8] sm:$0xff]
      %v412 = vld [vmem:[%s1 + $0xb0] sm:$0xff]
      %v413 = vld [vmem:[%s1 + $0xb8] sm:$0xff]
      %v414 = vld [vmem:[%s1 + $0xc0] sm:$0xff]
      %v415 = vld [vmem:[%s1 + $0xc8] sm:$0xff]
      %v416 = vld [vmem:[%s1 + $0xd0] sm:$0xff]
      %v417 = vld [vmem:[%s1 + $0xd8] sm:$0xff]
      %v418 = vld [vmem:[%s1 + $0xe0] sm:$0xff]
      %v419 = vld [vmem:[%s1 + $0xe8] sm:$0xff]
      %v420 = vld [vmem:[%s1 + $0xf0] sm:$0xff]
      %v421 = vld [vmem:[%s1 + $0xf8] sm:$0xff]
      %v422 = vld [vmem:[%s1 + $0x100] sm:$0x3]
      %v423 = vld [vmem:[%s1 + $0x108] sm:$0x3]
      %v424 = vld [vmem:[%s2] sm:$0x3]
      %v426 = vlaneseq
      %v427 = vshrl.u32 %v426, 7
      %v428 = vsub.s32 0, %v427
      %v429 = vrot.slane %v424, %v428
      %v430 = vlaneseq
      %v431 = vshrl.u32 %v430, 7
      %v432 = vsub.s32 1, %v431
      %v433 = vrot.slane %v424, %v432
      %vm436 = vcmask 15360
      %v438 = vsel %vm436, %v389, 0
      %vm440 = vcmask 1041408
      %v442 = vsel %vm440, %v422, 0
      %v445 = vsel %vm440, %v423, 0
      %447 = vmatprep.subr.mxu0 %v391
      %448 = vmatpush1.msra.mxu0 %v390
      %449 = vmatprep.subr.mxu0 %v393
      %450 = vmatpush1.msra.mxu0 %v392
      %451 = vmatprep.subr.mxu0 %v395
      %452 = vmatpush1.msra.mxu0 %v394
      %453 = vmatprep.subr.mxu0 %v397
      %454 = vmatpush1.msra.mxu0 %v396
      %455 = vmatprep.subr.mxu0 %v399
      %456 = vmatpush1.msra.mxu0 %v398
      %457 = vmatprep.subr.mxu0 %v401
      %458 = vmatpush1.msra.mxu0 %v400
      %459 = vmatprep.subr.mxu0 %v403
      %460 = vmatpush1.msra.mxu0 %v402
      %461 = vmatprep.subr.mxu0 %v405
      %462 = vmatpush1.msra.mxu0 %v404
      %463 = vmatprep.subr.mxu0 %v407
      %464 = vmatpush1.msra.mxu0 %v406
      %465 = vmatprep.subr.mxu0 %v409
      %466 = vmatpush1.msra.mxu0 %v408
      %467 = vmatprep.subr.mxu0 %v411
      %468 = vmatpush1.msra.mxu0 %v410
      %469 = vmatprep.subr.mxu0 %v413
      %470 = vmatpush1.msra.mxu0 %v412
      %471 = vmatprep.subr.mxu0 %v415
      %472 = vmatpush1.msra.mxu0 %v414
      %473 = vmatprep.subr.mxu0 %v417
      %474 = vmatpush1.msra.mxu0 %v416
      %475 = vmatprep.subr.mxu0 %v419
      %476 = vmatpush1.msra.mxu0 %v418
      %477 = vmatprep.subr.mxu0 %v421
      %478 = vmatpush1.msra.mxu0 %v420
      %479 = vmatprep.subr.mxu0 %v445
      %480 = vmatpush1.msra.mxu0 %v442
      %481 = vmatprep.subr.mxu0 0.0
      %482 = vmatpush1.msra.mxu0 0.0
      %483 = vmatprep.subr.mxu0 0.0
      %484 = vmatpush1.msra.mxu0 0.0
      %485 = vmatprep.subr.mxu0 0.0
      %486 = vmatpush1.msra.mxu0 0.0
      %487 = vmatprep.subr.mxu0 0.0
      %488 = vmatpush1.msra.mxu0 0.0
      %489 = vmatprep.subr.mxu0 0.0
      %490 = vmatpush1.msra.mxu0 0.0
      %491 = vmatprep.subr.mxu0 0.0
      %492 = vmatpush1.msra.mxu0 0.0
      %493 = vmatprep.subr.mxu0 0.0
      %494 = vmatpush1.msra.mxu0 0.0
      %495 = vmatprep.subr.mxu0 0.0
      %496 = vmatpush1.msra.mxu0 0.0
      %497 = vmatprep.subr.mxu0 0.0
      %498 = vmatpush1.msra.mxu0 0.0
      %499 = vmatprep.subr.mxu0 0.0
      %500 = vmatpush1.msra.mxu0 0.0
      %501 = vmatprep.subr.mxu0 0.0
      %502 = vmatpush1.msra.mxu0 0.0
      %503 = vmatprep.subr.mxu0 0.0
      %504 = vmatpush1.msra.mxu0 0.0
      %505 = vmatprep.subr.mxu0 0.0
      %506 = vmatpush1.msra.mxu0 0.0
      %507 = vmatprep.subr.mxu0 0.0
      %508 = vmatpush1.msra.mxu0 0.0
      %509 = vmatprep.subr.mxu0 0.0
      %510 = vmatpush1.msra.mxu0 0.0
      %511 = vmatprep.mubr.f32.mxu0 %v438
      %512 = vmatmul.mubr.f32.gmra.mrb[0].mxu0 %v388
      %v513 = vpop.f32.mrb[0].mxu0
      %v514 = vadd.f32 %v429, %v513
      %v515 = vpop.f32.mrb[0].mxu0
      %v516 = vadd.f32 %v433, %v515
      %517 = vdwg.mxu0
      %v518 = vmax.f32 %v514, 0.0
      %v519 = vmax.f32 %v516, 0.0
      %v520 = vld [vmem:[%s3] sm:$0xff]
      %v521 = vld [vmem:[%s3 + $0x8] sm:$0xff]
      %v522 = vld [vmem:[%s3 + $0x10] sm:$0xff]
      %v523 = vld [vmem:[%s3 + $0x18] sm:$0xff]
      %v524 = vld [vmem:[%s3 + $0x20] sm:$0xff]
      %v525 = vld [vmem:[%s3 + $0x28] sm:$0xff]
      %v526 = vld [vmem:[%s3 + $0x30] sm:$0xff]
      %v527 = vld [vmem:[%s3 + $0x38] sm:$0xff]
      %v528 = vld [vmem:[%s3 + $0x40] sm:$0xff]
      %v529 = vld [vmem:[%s3 + $0x48] sm:$0xff]
      %v530 = vld [vmem:[%s3 + $0x50] sm:$0xff]
      %v531 = vld [vmem:[%s3 + $0x58] sm:$0xff]
      %v532 = vld [vmem:[%s3 + $0x60] sm:$0xff]
      %v533 = vld [vmem:[%s3 + $0x68] sm:$0xff]
      %v534 = vld [vmem:[%s3 + $0x70] sm:$0xff]
      %v535 = vld [vmem:[%s3 + $0x78] sm:$0xff]
      %v536 = vld [vmem:[%s3 + $0x80] sm:$0xff]
      %v537 = vld [vmem:[%s3 + $0x88] sm:$0xff]
      %v538 = vld [vmem:[%s3 + $0x90] sm:$0xff]
      %v539 = vld [vmem:[%s3 + $0x98] sm:$0xff]
      %v540 = vld [vmem:[%s3 + $0xa0] sm:$0xff]
      %v541 = vld [vmem:[%s3 + $0xa8] sm:$0xff]
      %v542 = vld [vmem:[%s3 + $0xb0] sm:$0xff]
      %v543 = vld [vmem:[%s3 + $0xb8] sm:$0xff]
      %v544 = vld [vmem:[%s3 + $0xc0] sm:$0xff]
      %v545 = vld [vmem:[%s3 + $0xc8] sm:$0xff]
      %v546 = vld [vmem:[%s3 + $0xd0] sm:$0xff]
      %v547 = vld [vmem:[%s3 + $0xd8] sm:$0xff]
      %v548 = vld [vmem:[%s3 + $0xe0] sm:$0xff]
      %v549 = vld [vmem:[%s3 + $0xe8] sm:$0xff]
      %v550 = vld [vmem:[%s3 + $0xf0] sm:$0xff]
      %v551 = vld [vmem:[%s3 + $0xf8] sm:$0xff]
      %v552 = vld [vmem:[%s3 + $0x100] sm:$0xff]
      %v553 = vld [vmem:[%s3 + $0x108] sm:$0xff]
      %v554 = vld [vmem:[%s3 + $0x110] sm:$0xff]
      %v555 = vld [vmem:[%s3 + $0x118] sm:$0xff]
      %v556 = vld [vmem:[%s3 + $0x120] sm:$0xff]
      %v557 = vld [vmem:[%s3 + $0x128] sm:$0xff]
      %v558 = vld [vmem:[%s3 + $0x130] sm:$0xff]
      %v559 = vld [vmem:[%s3 + $0x138] sm:$0xff]
      %v560 = vld [vmem:[%s3 + $0x140] sm:$0xff]
      %v561 = vld [vmem:[%s3 + $0x148] sm:$0xff]
      %v562 = vld [vmem:[%s3 + $0x150] sm:$0xff]
      %v563 = vld [vmem:[%s3 + $0x158] sm:$0xff]
      %v564 = vld [vmem:[%s3 + $0x160] sm:$0xff]
      %v565 = vld [vmem:[%s3 + $0x168] sm:$0xff]
      %v566 = vld [vmem:[%s3 + $0x170] sm:$0xff]
      %v567 = vld [vmem:[%s3 + $0x178] sm:$0xff]
      %v568 = vld [vmem:[%s3 + $0x180] sm:$0xff]
      %v569 = vld [vmem:[%s3 + $0x188] sm:$0xff]
      %v570 = vld [vmem:[%s3 + $0x190] sm:$0xff]
      %v571 = vld [vmem:[%s3 + $0x198] sm:$0xff]
      %v572 = vld [vmem:[%s3 + $0x1a0] sm:$0xff]
      %v573 = vld [vmem:[%s3 + $0x1a8] sm:$0xff]
      %v574 = vld [vmem:[%s3 + $0x1b0] sm:$0xff]
      %v575 = vld [vmem:[%s3 + $0x1b8] sm:$0xff]
      %v576 = vld [vmem:[%s3 + $0x1c0] sm:$0xff]
      %v577 = vld [vmem:[%s3 + $0x1c8] sm:$0xff]
      %v578 = vld [vmem:[%s3 + $0x1d0] sm:$0xff]
      %v579 = vld [vmem:[%s3 + $0x1d8] sm:$0xff]
      %v580 = vld [vmem:[%s3 + $0x1e0] sm:$0xff]
      %v581 = vld [vmem:[%s3 + $0x1e8] sm:$0xff]
      %v582 = vld [vmem:[%s3 + $0x1f0] sm:$0xff]
      %v583 = vld [vmem:[%s3 + $0x1f8] sm:$0xff]
      %v584 = vpack.c.bf16 %v518, %v518
      %v585 = vpack.c.bf16 %v519, %v519
      %v586 = vld [vmem:[%s4] sm:$0xf]
      %v588 = vlaneseq
      %v589 = vshrl.u32 %v588, 7
      %v590 = vsub.s32 0, %v589
      %v591 = vrot.slane %v586, %v590
      %v592 = vlaneseq
      %v593 = vshrl.u32 %v592, 7
      %v594 = vsub.s32 1, %v593
      %v595 = vrot.slane %v586, %v594
      %v596 = vlaneseq
      %v597 = vshrl.u32 %v596, 7
      %v598 = vsub.s32 2, %v597
      %v599 = vrot.slane %v586, %v598
      %v600 = vlaneseq
      %v601 = vshrl.u32 %v600, 7
      %v602 = vsub.s32 3, %v601
      %v603 = vrot.slane %v586, %v602
      %v672 = vunpack.c.l.b16 %v520
      %v673 = vunpack.c.h.b16 %v520
      %v674 = vunpack.c.l.b16 %v521
      %v675 = vunpack.c.h.b16 %v521
      %v676 = vunpack.c.l.b16 %v522
      %v677 = vunpack.c.h.b16 %v522
      %v678 = vunpack.c.l.b16 %v523
      %v679 = vunpack.c.h.b16 %v523
      %v680 = vunpack.c.l.b16 %v524
      %v681 = vunpack.c.h.b16 %v524
      %v682 = vunpack.c.l.b16 %v525
      %v683 = vunpack.c.h.b16 %v525
      %v684 = vunpack.c.l.b16 %v526
      %v685 = vunpack.c.h.b16 %v526
      %v686 = vunpack.c.l.b16 %v527
      %v687 = vunpack.c.h.b16 %v527
      %v688 = vunpack.c.l.b16 %v528
      %v689 = vunpack.c.h.b16 %v528
      %v690 = vunpack.c.l.b16 %v529
      %v691 = vunpack.c.h.b16 %v529
      %v692 = vunpack.c.l.b16 %v530
      %v693 = vunpack.c.h.b16 %v530
      %v694 = vunpack.c.l.b16 %v531
      %v695 = vunpack.c.h.b16 %v531
      %v696 = vunpack.c.l.b16 %v532
      %v697 = vunpack.c.h.b16 %v532
      %v698 = vunpack.c.l.b16 %v533
      %v699 = vunpack.c.h.b16 %v533
      %v700 = vunpack.c.l.b16 %v534
      %v701 = vunpack.c.h.b16 %v534
      %v702 = vunpack.c.l.b16 %v535
      %v703 = vunpack.c.h.b16 %v535
      %v704 = vunpack.c.l.b16 %v536
      %v705 = vunpack.c.h.b16 %v536
      %v706 = vunpack.c.l.b16 %v537
      %v707 = vunpack.c.h.b16 %v537
      %v708 = vunpack.c.l.b16 %v538
      %v709 = vunpack.c.h.b16 %v538
      %v710 = vunpack.c.l.b16 %v539
      %v711 = vunpack.c.h.b16 %v539
      %v712 = vunpack.c.l.b16 %v540
      %v713 = vunpack.c.h.b16 %v540
      %v714 = vunpack.c.l.b16 %v541
      %v715 = vunpack.c.h.b16 %v541
      %v716 = vunpack.c.l.b16 %v542
      %v717 = vunpack.c.h.b16 %v542
      %v718 = vunpack.c.l.b16 %v543
      %v719 = vunpack.c.h.b16 %v543
      %v720 = vunpack.c.l.b16 %v544
      %v721 = vunpack.c.h.b16 %v544
      %v722 = vunpack.c.l.b16 %v545
      %v723 = vunpack.c.h.b16 %v545
      %v724 = vunpack.c.l.b16 %v546
      %v725 = vunpack.c.h.b16 %v546
      %v726 = vunpack.c.l.b16 %v547
      %v727 = vunpack.c.h.b16 %v547
      %v728 = vunpack.c.l.b16 %v548
      %v729 = vunpack.c.h.b16 %v548
      %v730 = vunpack.c.l.b16 %v549
      %v731 = vunpack.c.h.b16 %v549
      %v732 = vunpack.c.l.b16 %v550
      %v733 = vunpack.c.h.b16 %v550
      %v734 = vunpack.c.l.b16 %v551
      %v735 = vunpack.c.h.b16 %v551
      %v736 = vunpack.c.l.b16 %v552
      %v737 = vunpack.c.h.b16 %v552
      %v738 = vunpack.c.l.b16 %v553
      %v739 = vunpack.c.h.b16 %v553
      %v740 = vunpack.c.l.b16 %v554
      %v741 = vunpack.c.h.b16 %v554
      %v742 = vunpack.c.l.b16 %v555
      %v743 = vunpack.c.h.b16 %v555
      %v744 = vunpack.c.l.b16 %v556
      %v745 = vunpack.c.h.b16 %v556
      %v746 = vunpack.c.l.b16 %v557
      %v747 = vunpack.c.h.b16 %v557
      %v748 = vunpack.c.l.b16 %v558
      %v749 = vunpack.c.h.b16 %v558
      %v750 = vunpack.c.l.b16 %v559
      %v751 = vunpack.c.h.b16 %v559
      %v752 = vunpack.c.l.b16 %v560
      %v753 = vunpack.c.h.b16 %v560
      %v754 = vunpack.c.l.b16 %v561
      %v755 = vunpack.c.h.b16 %v561
      %v756 = vunpack.c.l.b16 %v562
      %v757 = vunpack.c.h.b16 %v562
      %v758 = vunpack.c.l.b16 %v563
      %v759 = vunpack.c.h.b16 %v563
      %v760 = vunpack.c.l.b16 %v564
      %v761 = vunpack.c.h.b16 %v564
      %v762 = vunpack.c.l.b16 %v565
      %v763 = vunpack.c.h.b16 %v565
      %v764 = vunpack.c.l.b16 %v566
      %v765 = vunpack.c.h.b16 %v566
      %v766 = vunpack.c.l.b16 %v567
      %v767 = vunpack.c.h.b16 %v567
      %v768 = vunpack.c.l.b16 %v568
      %v769 = vunpack.c.h.b16 %v568
      %v770 = vunpack.c.l.b16 %v569
      %v771 = vunpack.c.h.b16 %v569
      %v772 = vunpack.c.l.b16 %v570
      %v773 = vunpack.c.h.b16 %v570
      %v774 = vunpack.c.l.b16 %v571
      %v775 = vunpack.c.h.b16 %v571
      %v776 = vunpack.c.l.b16 %v572
      %v777 = vunpack.c.h.b16 %v572
      %v778 = vunpack.c.l.b16 %v573
      %v779 = vunpack.c.h.b16 %v573
      %v780 = vunpack.c.l.b16 %v574
      %v781 = vunpack.c.h.b16 %v574
      %v782 = vunpack.c.l.b16 %v575
      %v783 = vunpack.c.h.b16 %v575
      %v784 = vunpack.c.l.b16 %v576
      %v785 = vunpack.c.h.b16 %v576
      %v786 = vunpack.c.l.b16 %v577
      %v787 = vunpack.c.h.b16 %v577
      %v788 = vunpack.c.l.b16 %v578
      %v789 = vunpack.c.h.b16 %v578
      %v790 = vunpack.c.l.b16 %v579
      %v791 = vunpack.c.h.b16 %v579
      %v792 = vunpack.c.l.b16 %v580
      %v793 = vunpack.c.h.b16 %v580
      %v794 = vunpack.c.l.b16 %v581
      %v795 = vunpack.c.h.b16 %v581
      %v796 = vunpack.c.l.b16 %v582
      %v797 = vunpack.c.h.b16 %v582
      %v798 = vunpack.c.l.b16 %v583
      %v799 = vunpack.c.h.b16 %v583
      %v800 = vpack.c.b16 %v676, %v672
      %v801 = vpack.c.b16 %v677, %v673
      %v802 = vpack.c.b16 %v678, %v674
      %v803 = vpack.c.b16 %v679, %v675
      %v804 = vpack.c.b16 %v684, %v680
      %v805 = vpack.c.b16 %v685, %v681
      %v806 = vpack.c.b16 %v686, %v682
      %v807 = vpack.c.b16 %v687, %v683
      %v808 = vpack.c.b16 %v692, %v688
      %v809 = vpack.c.b16 %v693, %v689
      %v810 = vpack.c.b16 %v694, %v690
      %v811 = vpack.c.b16 %v695, %v691
      %v812 = vpack.c.b16 %v700, %v696
      %v813 = vpack.c.b16 %v701, %v697
      %v814 = vpack.c.b16 %v702, %v698
      %v815 = vpack.c.b16 %v703, %v699
      %v816 = vpack.c.b16 %v708, %v704
      %v817 = vpack.c.b16 %v709, %v705
      %v818 = vpack.c.b16 %v710, %v706
      %v819 = vpack.c.b16 %v711, %v707
      %v820 = vpack.c.b16 %v716, %v712
      %v821 = vpack.c.b16 %v717, %v713
      %v822 = vpack.c.b16 %v718, %v714
      %v823 = vpack.c.b16 %v719, %v715
      %v824 = vpack.c.b16 %v724, %v720
      %v825 = vpack.c.b16 %v725, %v721
      %v826 = vpack.c.b16 %v726, %v722
      %v827 = vpack.c.b16 %v727, %v723
      %v828 = vpack.c.b16 %v732, %v728
      %v829 = vpack.c.b16 %v733, %v729
      %v830 = vpack.c.b16 %v734, %v730
      %v831 = vpack.c.b16 %v735, %v731
      %v832 = vpack.c.b16 %v740, %v736
      %v833 = vpack.c.b16 %v741, %v737
      %v834 = vpack.c.b16 %v742, %v738
      %v835 = vpack.c.b16 %v743, %v739
      %v836 = vpack.c.b16 %v748, %v744
      %v837 = vpack.c.b16 %v749, %v745
      %v838 = vpack.c.b16 %v750, %v746
      %v839 = vpack.c.b16 %v751, %v747
      %v840 = vpack.c.b16 %v756, %v752
      %v841 = vpack.c.b16 %v757, %v753
      %v842 = vpack.c.b16 %v758, %v754
      %v843 = vpack.c.b16 %v759, %v755
      %v844 = vpack.c.b16 %v764, %v760
      %v845 = vpack.c.b16 %v765, %v761
      %v846 = vpack.c.b16 %v766, %v762
      %v847 = vpack.c.b16 %v767, %v763
      %v848 = vpack.c.b16 %v772, %v768
      %v849 = vpack.c.b16 %v773, %v769
      %v850 = vpack.c.b16 %v774, %v770
      %v851 = vpack.c.b16 %v775, %v771
      %v852 = vpack.c.b16 %v780, %v776
      %v853 = vpack.c.b16 %v781, %v777
      %v854 = vpack.c.b16 %v782, %v778
      %v855 = vpack.c.b16 %v783, %v779
      %v856 = vpack.c.b16 %v788, %v784
      %v857 = vpack.c.b16 %v789, %v785
      %v858 = vpack.c.b16 %v790, %v786
      %v859 = vpack.c.b16 %v791, %v787
      %v860 = vpack.c.b16 %v796, %v792
      %v861 = vpack.c.b16 %v797, %v793
      %v862 = vpack.c.b16 %v798, %v794
      %v863 = vpack.c.b16 %v799, %v795
      %928 = vmatprep.subr.bf16.mxu0 %v801
      %929 = vmatpush1.bf16.msra.mxu0 %v800
      %930 = vmatprep.subr.bf16.mxu0 %v805
      %931 = vmatpush1.bf16.msra.mxu0 %v804
      %932 = vmatprep.subr.bf16.mxu0 %v809
      %933 = vmatpush1.bf16.msra.mxu0 %v808
      %934 = vmatprep.subr.bf16.mxu0 %v813
      %935 = vmatpush1.bf16.msra.mxu0 %v812
      %936 = vmatprep.subr.bf16.mxu0 %v817
      %937 = vmatpush1.bf16.msra.mxu0 %v816
      %938 = vmatprep.subr.bf16.mxu0 %v821
      %939 = vmatpush1.bf16.msra.mxu0 %v820
      %940 = vmatprep.subr.bf16.mxu0 %v825
      %941 = vmatpush1.bf16.msra.mxu0 %v824
      %942 = vmatprep.subr.bf16.mxu0 %v829
      %943 = vmatpush1.bf16.msra.mxu0 %v828
      %944 = vmatprep.subr.bf16.mxu0 %v833
      %945 = vmatpush1.bf16.msra.mxu0 %v832
      %946 = vmatprep.subr.bf16.mxu0 %v837
      %947 = vmatpush1.bf16.msra.mxu0 %v836
      %948 = vmatprep.subr.bf16.mxu0 %v841
      %949 = vmatpush1.bf16.msra.mxu0 %v840
      %950 = vmatprep.subr.bf16.mxu0 %v845
      %951 = vmatpush1.bf16.msra.mxu0 %v844
      %952 = vmatprep.subr.bf16.mxu0 %v849
      %953 = vmatpush1.bf16.msra.mxu0 %v848
      %954 = vmatprep.subr.bf16.mxu0 %v853
      %955 = vmatpush1.bf16.msra.mxu0 %v852
      %956 = vmatprep.subr.bf16.mxu0 %v857
      %957 = vmatpush1.bf16.msra.mxu0 %v856
      %958 = vmatprep.subr.bf16.mxu0 %v861
      %959 = vmatpush1.bf16.msra.mxu0 %v860
      %960 = vmatprep.mubr.bf16.mxu0 %v585
      %961 = vmatmul.mubr.bf16.gmra.mrb[0].mxu0 %v584
      %v962 = vpop.f32.mrb[0].mxu0
      %v963 = vadd.f32 %v591, %v962
      %v964 = vpop.f32.mrb[0].mxu0
      %v965 = vadd.f32 %v595, %v964
      %v966 = vpop.f32.mrb[0].mxu0
      %v967 = vpop.f32.mrb[0].mxu0
      %968 = vdwg.mxu0
      %969 = vmatprep.subr.bf16.mxu0 %v803
      %970 = vmatpush1.bf16.msra.mxu0 %v802
      %971 = vmatprep.subr.bf16.mxu0 %v807
      %972 = vmatpush1.bf16.msra.mxu0 %v806
      %973 = vmatprep.subr.bf16.mxu0 %v811
      %974 = vmatpush1.bf16.msra.mxu0 %v810
      %975 = vmatprep.subr.bf16.mxu0 %v815
      %976 = vmatpush1.bf16.msra.mxu0 %v814
      %977 = vmatprep.subr.bf16.mxu0 %v819
      %978 = vmatpush1.bf16.msra.mxu0 %v818
      %979 = vmatprep.subr.bf16.mxu0 %v823
      %980 = vmatpush1.bf16.msra.mxu0 %v822
      %981 = vmatprep.subr.bf16.mxu0 %v827
      %982 = vmatpush1.bf16.msra.mxu0 %v826
      %983 = vmatprep.subr.bf16.mxu0 %v831
      %984 = vmatpush1.bf16.msra.mxu0 %v830
      %985 = vmatprep.subr.bf16.mxu0 %v835
      %986 = vmatpush1.bf16.msra.mxu0 %v834
      %987 = vmatprep.subr.bf16.mxu0 %v839
      %988 = vmatpush1.bf16.msra.mxu0 %v838
      %989 = vmatprep.subr.bf16.mxu0 %v843
      %990 = vmatpush1.bf16.msra.mxu0 %v842
      %991 = vmatprep.subr.bf16.mxu0 %v847
      %992 = vmatpush1.bf16.msra.mxu0 %v846
      %993 = vmatprep.subr.bf16.mxu0 %v851
      %994 = vmatpush1.bf16.msra.mxu0 %v850
      %995 = vmatprep.subr.bf16.mxu0 %v855
      %996 = vmatpush1.bf16.msra.mxu0 %v854
      %997 = vmatprep.subr.bf16.mxu0 %v859
      %998 = vmatpush1.bf16.msra.mxu0 %v858
      %999 = vmatprep.subr.bf16.mxu0 %v863
      %1000 = vmatpush1.bf16.msra.mxu0 %v862
      %1001 = vmatprep.mubr.bf16.mxu0 %v585
      %1002 = vmatmul.mubr.bf16.gmra.mrb[0].mxu0 %v584
      %v1003 = vpop.f32.mrb[0].mxu0
      %v1004 = vadd.f32 %v599, %v1003
      %v1005 = vpop.f32.mrb[0].mxu0
      %v1006 = vadd.f32 %v603, %v1005
      %v1007 = vpop.f32.mrb[0].mxu0
      %v1008 = vpop.f32.mrb[0].mxu0
      %1009 = vdwg.mxu0
      %v1010 = vmax.f32 %v963, 0.0
      %v1011 = vmax.f32 %v965, 0.0
      %v1012 = vmax.f32 %v1004, 0.0
      %v1013 = vmax.f32 %v1006, 0.0
      %v1014 = vld [vmem:[%s5] sm:$0xff]
      %v1015 = vld [vmem:[%s5 + $0x8] sm:$0xff]
      %v1016 = vld [vmem:[%s5 + $0x10] sm:$0xff]
      %v1017 = vld [vmem:[%s5 + $0x18] sm:$0xff]
      %v1018 = vld [vmem:[%s5 + $0x20] sm:$0xff]
      %v1019 = vld [vmem:[%s5 + $0x28] sm:$0xff]
      %v1020 = vld [vmem:[%s5 + $0x30] sm:$0xff]
      %v1021 = vld [vmem:[%s5 + $0x38] sm:$0xff]
      %v1022 = vld [vmem:[%s5 + $0x40] sm:$0xff]
      %v1023 = vld [vmem:[%s5 + $0x48] sm:$0xff]
      %v1024 = vld [vmem:[%s5 + $0x50] sm:$0xff]
      %v1025 = vld [vmem:[%s5 + $0x58] sm:$0xff]
      %v1026 = vld [vmem:[%s5 + $0x60] sm:$0xff]
      %v1027 = vld [vmem:[%s5 + $0x68] sm:$0xff]
      %v1028 = vld [vmem:[%s5 + $0x70] sm:$0xff]
      %v1029 = vld [vmem:[%s5 + $0x78] sm:$0xff]
      %v1030 = vld [vmem:[%s5 + $0x80] sm:$0xff]
      %v1031 = vld [vmem:[%s5 + $0x88] sm:$0xff]
      %v1032 = vld [vmem:[%s5 + $0x90] sm:$0xff]
      %v1033 = vld [vmem:[%s5 + $0x98] sm:$0xff]
      %v1034 = vld [vmem:[%s5 + $0xa0] sm:$0xff]
      %v1035 = vld [vmem:[%s5 + $0xa8] sm:$0xff]
      %v1036 = vld [vmem:[%s5 + $0xb0] sm:$0xff]
      %v1037 = vld [vmem:[%s5 + $0xb8] sm:$0xff]
      %v1038 = vld [vmem:[%s5 + $0xc0] sm:$0xff]
      %v1039 = vld [vmem:[%s5 + $0xc8] sm:$0xff]
      %v1040 = vld [vmem:[%s5 + $0xd0] sm:$0xff]
      %v1041 = vld [vmem:[%s5 + $0xd8] sm:$0xff]
      %v1042 = vld [vmem:[%s5 + $0xe0] sm:$0xff]
      %v1043 = vld [vmem:[%s5 + $0xe8] sm:$0xff]
      %v1044 = vld [vmem:[%s5 + $0xf0] sm:$0xff]
      %v1045 = vld [vmem:[%s5 + $0xf8] sm:$0xff]
      %v1046 = vld [vmem:[%s5 + $0x100] sm:$0xff]
      %v1047 = vld [vmem:[%s5 + $0x108] sm:$0xff]
      %v1048 = vld [vmem:[%s5 + $0x110] sm:$0xff]
      %v1049 = vld [vmem:[%s5 + $0x118] sm:$0xff]
      %v1050 = vld [vmem:[%s5 + $0x120] sm:$0xff]
      %v1051 = vld [vmem:[%s5 + $0x128] sm:$0xff]
      %v1052 = vld [vmem:[%s5 + $0x130] sm:$0xff]
      %v1053 = vld [vmem:[%s5 + $0x138] sm:$0xff]
      %v1054 = vld [vmem:[%s5 + $0x140] sm:$0xff]
      %v1055 = vld [vmem:[%s5 + $0x148] sm:$0xff]
      %v1056 = vld [vmem:[%s5 + $0x150] sm:$0xff]
      %v1057 = vld [vmem:[%s5 + $0x158] sm:$0xff]
      %v1058 = vld [vmem:[%s5 + $0x160] sm:$0xff]
      %v1059 = vld [vmem:[%s5 + $0x168] sm:$0xff]
      %v1060 = vld [vmem:[%s5 + $0x170] sm:$0xff]
      %v1061 = vld [vmem:[%s5 + $0x178] sm:$0xff]
      %v1062 = vld [vmem:[%s5 + $0x180] sm:$0xff]
      %v1063 = vld [vmem:[%s5 + $0x188] sm:$0xff]
      %v1064 = vld [vmem:[%s5 + $0x190] sm:$0xff]
      %v1065 = vld [vmem:[%s5 + $0x198] sm:$0xff]
      %v1066 = vld [vmem:[%s5 + $0x1a0] sm:$0xff]
      %v1067 = vld [vmem:[%s5 + $0x1a8] sm:$0xff]
      %v1068 = vld [vmem:[%s5 + $0x1b0] sm:$0xff]
      %v1069 = vld [vmem:[%s5 + $0x1b8] sm:$0xff]
      %v1070 = vld [vmem:[%s5 + $0x1c0] sm:$0xff]
      %v1071 = vld [vmem:[%s5 + $0x1c8] sm:$0xff]
      %v1072 = vld [vmem:[%s5 + $0x1d0] sm:$0xff]
      %v1073 = vld [vmem:[%s5 + $0x1d8] sm:$0xff]
      %v1074 = vld [vmem:[%s5 + $0x1e0] sm:$0xff]
      %v1075 = vld [vmem:[%s5 + $0x1e8] sm:$0xff]
      %v1076 = vld [vmem:[%s5 + $0x1f0] sm:$0xff]
      %v1077 = vld [vmem:[%s5 + $0x1f8] sm:$0xff]
      %v1078 = vpack.c.bf16 %v1010, %v1010
      %v1079 = vpack.c.bf16 %v1011, %v1011
      %v1080 = vpack.c.bf16 %v1012, %v1012
      %v1081 = vpack.c.bf16 %v1013, %v1013
      %v1082 = vld [vmem:[%s6] sm:$0x3]
      %v1084 = vlaneseq
      %v1085 = vshrl.u32 %v1084, 7
      %v1086 = vsub.s32 0, %v1085
      %v1087 = vrot.slane %v1082, %v1086
      %v1088 = vlaneseq
      %v1089 = vshrl.u32 %v1088, 7
      %v1090 = vsub.s32 1, %v1089
      %v1091 = vrot.slane %v1082, %v1090
      %v1158 = vunpack.c.l.b16 %v1014
      %v1159 = vunpack.c.h.b16 %v1014
      %v1160 = vunpack.c.l.b16 %v1015
      %v1161 = vunpack.c.h.b16 %v1015
      %v1162 = vunpack.c.l.b16 %v1016
      %v1163 = vunpack.c.h.b16 %v1016
      %v1164 = vunpack.c.l.b16 %v1017
      %v1165 = vunpack.c.h.b16 %v1017
      %v1166 = vunpack.c.l.b16 %v1018
      %v1167 = vunpack.c.h.b16 %v1018
      %v1168 = vunpack.c.l.b16 %v1019
      %v1169 = vunpack.c.h.b16 %v1019
      %v1170 = vunpack.c.l.b16 %v1020
      %v1171 = vunpack.c.h.b16 %v1020
      %v1172 = vunpack.c.l.b16 %v1021
      %v1173 = vunpack.c.h.b16 %v1021
      %v1174 = vunpack.c.l.b16 %v1022
      %v1175 = vunpack.c.h.b16 %v1022
      %v1176 = vunpack.c.l.b16 %v1023
      %v1177 = vunpack.c.h.b16 %v1023
      %v1178 = vunpack.c.l.b16 %v1024
      %v1179 = vunpack.c.h.b16 %v1024
      %v1180 = vunpack.c.l.b16 %v1025
      %v1181 = vunpack.c.h.b16 %v1025
      %v1182 = vunpack.c.l.b16 %v1026
      %v1183 = vunpack.c.h.b16 %v1026
      %v1184 = vunpack.c.l.b16 %v1027
      %v1185 = vunpack.c.h.b16 %v1027
      %v1186 = vunpack.c.l.b16 %v1028
      %v1187 = vunpack.c.h.b16 %v1028
      %v1188 = vunpack.c.l.b16 %v1029
      %v1189 = vunpack.c.h.b16 %v1029
      %v1190 = vunpack.c.l.b16 %v1030
      %v1191 = vunpack.c.h.b16 %v1030
      %v1192 = vunpack.c.l.b16 %v1031
      %v1193 = vunpack.c.h.b16 %v1031
      %v1194 = vunpack.c.l.b16 %v1032
      %v1195 = vunpack.c.h.b16 %v1032
      %v1196 = vunpack.c.l.b16 %v1033
      %v1197 = vunpack.c.h.b16 %v1033
      %v1198 = vunpack.c.l.b16 %v1034
      %v1199 = vunpack.c.h.b16 %v1034
      %v1200 = vunpack.c.l.b16 %v1035
      %v1201 = vunpack.c.h.b16 %v1035
      %v1202 = vunpack.c.l.b16 %v1036
      %v1203 = vunpack.c.h.b16 %v1036
      %v1204 = vunpack.c.l.b16 %v1037
      %v1205 = vunpack.c.h.b16 %v1037
      %v1206 = vunpack.c.l.b16 %v1038
      %v1207 = vunpack.c.h.b16 %v1038
      %v1208 = vunpack.c.l.b16 %v1039
      %v1209 = vunpack.c.h.b16 %v1039
      %v1210 = vunpack.c.l.b16 %v1040
      %v1211 = vunpack.c.h.b16 %v1040
      %v1212 = vunpack.c.l.b16 %v1041
      %v1213 = vunpack.c.h.b16 %v1041
      %v1214 = vunpack.c.l.b16 %v1042
      %v1215 = vunpack.c.h.b16 %v1042
      %v1216 = vunpack.c.l.b16 %v1043
      %v1217 = vunpack.c.h.b16 %v1043
      %v1218 = vunpack.c.l.b16 %v1044
      %v1219 = vunpack.c.h.b16 %v1044
      %v1220 = vunpack.c.l.b16 %v1045
      %v1221 = vunpack.c.h.b16 %v1045
      %v1222 = vunpack.c.l.b16 %v1046
      %v1223 = vunpack.c.h.b16 %v1046
      %v1224 = vunpack.c.l.b16 %v1047
      %v1225 = vunpack.c.h.b16 %v1047
      %v1226 = vunpack.c.l.b16 %v1048
      %v1227 = vunpack.c.h.b16 %v1048
      %v1228 = vunpack.c.l.b16 %v1049
      %v1229 = vunpack.c.h.b16 %v1049
      %v1230 = vunpack.c.l.b16 %v1050
      %v1231 = vunpack.c.h.b16 %v1050
      %v1232 = vunpack.c.l.b16 %v1051
      %v1233 = vunpack.c.h.b16 %v1051
      %v1234 = vunpack.c.l.b16 %v1052
      %v1235 = vunpack.c.h.b16 %v1052
      %v1236 = vunpack.c.l.b16 %v1053
      %v1237 = vunpack.c.h.b16 %v1053
      %v1238 = vunpack.c.l.b16 %v1054
      %v1239 = vunpack.c.h.b16 %v1054
      %v1240 = vunpack.c.l.b16 %v1055
      %v1241 = vunpack.c.h.b16 %v1055
      %v1242 = vunpack.c.l.b16 %v1056
      %v1243 = vunpack.c.h.b16 %v1056
      %v1244 = vunpack.c.l.b16 %v1057
      %v1245 = vunpack.c.h.b16 %v1057
      %v1246 = vunpack.c.l.b16 %v1058
      %v1247 = vunpack.c.h.b16 %v1058
      %v1248 = vunpack.c.l.b16 %v1059
      %v1249 = vunpack.c.h.b16 %v1059
      %v1250 = vunpack.c.l.b16 %v1060
      %v1251 = vunpack.c.h.b16 %v1060
      %v1252 = vunpack.c.l.b16 %v1061
      %v1253 = vunpack.c.h.b16 %v1061
      %v1254 = vunpack.c.l.b16 %v1062
      %v1255 = vunpack.c.h.b16 %v1062
      %v1256 = vunpack.c.l.b16 %v1063
      %v1257 = vunpack.c.h.b16 %v1063
      %v1258 = vunpack.c.l.b16 %v1064
      %v1259 = vunpack.c.h.b16 %v1064
      %v1260 = vunpack.c.l.b16 %v1065
      %v1261 = vunpack.c.h.b16 %v1065
      %v1262 = vunpack.c.l.b16 %v1066
      %v1263 = vunpack.c.h.b16 %v1066
      %v1264 = vunpack.c.l.b16 %v1067
      %v1265 = vunpack.c.h.b16 %v1067
      %v1266 = vunpack.c.l.b16 %v1068
      %v1267 = vunpack.c.h.b16 %v1068
      %v1268 = vunpack.c.l.b16 %v1069
      %v1269 = vunpack.c.h.b16 %v1069
      %v1270 = vunpack.c.l.b16 %v1070
      %v1271 = vunpack.c.h.b16 %v1070
      %v1272 = vunpack.c.l.b16 %v1071
      %v1273 = vunpack.c.h.b16 %v1071
      %v1274 = vunpack.c.l.b16 %v1072
      %v1275 = vunpack.c.h.b16 %v1072
      %v1276 = vunpack.c.l.b16 %v1073
      %v1277 = vunpack.c.h.b16 %v1073
      %v1278 = vunpack.c.l.b16 %v1074
      %v1279 = vunpack.c.h.b16 %v1074
      %v1280 = vunpack.c.l.b16 %v1075
      %v1281 = vunpack.c.h.b16 %v1075
      %v1282 = vunpack.c.l.b16 %v1076
      %v1283 = vunpack.c.h.b16 %v1076
      %v1284 = vunpack.c.l.b16 %v1077
      %v1285 = vunpack.c.h.b16 %v1077
      %v1286 = vpack.c.b16 %v1160, %v1158
      %v1287 = vpack.c.b16 %v1161, %v1159
      %v1288 = vpack.c.b16 %v1164, %v1162
      %v1289 = vpack.c.b16 %v1165, %v1163
      %v1290 = vpack.c.b16 %v1168, %v1166
      %v1291 = vpack.c.b16 %v1169, %v1167
      %v1292 = vpack.c.b16 %v1172, %v1170
      %v1293 = vpack.c.b16 %v1173, %v1171
      %v1294 = vpack.c.b16 %v1176, %v1174
      %v1295 = vpack.c.b16 %v1177, %v1175
      %v1296 = vpack.c.b16 %v1180, %v1178
      %v1297 = vpack.c.b16 %v1181, %v1179
      %v1298 = vpack.c.b16 %v1184, %v1182
      %v1299 = vpack.c.b16 %v1185, %v1183
      %v1300 = vpack.c.b16 %v1188, %v1186
      %v1301 = vpack.c.b16 %v1189, %v1187
      %v1302 = vpack.c.b16 %v1192, %v1190
      %v1303 = vpack.c.b16 %v1193, %v1191
      %v1304 = vpack.c.b16 %v1196, %v1194
      %v1305 = vpack.c.b16 %v1197, %v1195
      %v1306 = vpack.c.b16 %v1200, %v1198
      %v1307 = vpack.c.b16 %v1201, %v1199
      %v1308 = vpack.c.b16 %v1204, %v1202
      %v1309 = vpack.c.b16 %v1205, %v1203
      %v1310 = vpack.c.b16 %v1208, %v1206
      %v1311 = vpack.c.b16 %v1209, %v1207
      %v1312 = vpack.c.b16 %v1212, %v1210
      %v1313 = vpack.c.b16 %v1213, %v1211
      %v1314 = vpack.c.b16 %v1216, %v1214
      %v1315 = vpack.c.b16 %v1217, %v1215
      %v1316 = vpack.c.b16 %v1220, %v1218
      %v1317 = vpack.c.b16 %v1221, %v1219
      %v1318 = vpack.c.b16 %v1224, %v1222
      %v1319 = vpack.c.b16 %v1225, %v1223
      %v1320 = vpack.c.b16 %v1228, %v1226
      %v1321 = vpack.c.b16 %v1229, %v1227
      %v1322 = vpack.c.b16 %v1232, %v1230
      %v1323 = vpack.c.b16 %v1233, %v1231
      %v1324 = vpack.c.b16 %v1236, %v1234
      %v1325 = vpack.c.b16 %v1237, %v1235
      %v1326 = vpack.c.b16 %v1240, %v1238
      %v1327 = vpack.c.b16 %v1241, %v1239
      %v1328 = vpack.c.b16 %v1244, %v1242
      %v1329 = vpack.c.b16 %v1245, %v1243
      %v1330 = vpack.c.b16 %v1248, %v1246
      %v1331 = vpack.c.b16 %v1249, %v1247
      %v1332 = vpack.c.b16 %v1252, %v1250
      %v1333 = vpack.c.b16 %v1253, %v1251
      %v1334 = vpack.c.b16 %v1256, %v1254
      %v1335 = vpack.c.b16 %v1257, %v1255
      %v1336 = vpack.c.b16 %v1260, %v1258
      %v1337 = vpack.c.b16 %v1261, %v1259
      %v1338 = vpack.c.b16 %v1264, %v1262
      %v1339 = vpack.c.b16 %v1265, %v1263
      %v1340 = vpack.c.b16 %v1268, %v1266
      %v1341 = vpack.c.b16 %v1269, %v1267
      %v1342 = vpack.c.b16 %v1272, %v1270
      %v1343 = vpack.c.b16 %v1273, %v1271
      %v1344 = vpack.c.b16 %v1276, %v1274
      %v1345 = vpack.c.b16 %v1277, %v1275
      %v1346 = vpack.c.b16 %v1280, %v1278
      %v1347 = vpack.c.b16 %v1281, %v1279
      %v1348 = vpack.c.b16 %v1284, %v1282
      %v1349 = vpack.c.b16 %v1285, %v1283
      %1414 = vmatprep.subr.bf16.mxu0 %v1287
      %1415 = vmatpush1.bf16.msra.mxu0 %v1286
      %1416 = vmatprep.subr.bf16.mxu0 %v1289
      %1417 = vmatpush1.bf16.msra.mxu0 %v1288
      %1418 = vmatprep.subr.bf16.mxu0 %v1291
      %1419 = vmatpush1.bf16.msra.mxu0 %v1290
      %1420 = vmatprep.subr.bf16.mxu0 %v1293
      %1421 = vmatpush1.bf16.msra.mxu0 %v1292
      %1422 = vmatprep.subr.bf16.mxu0 %v1295
      %1423 = vmatpush1.bf16.msra.mxu0 %v1294
      %1424 = vmatprep.subr.bf16.mxu0 %v1297
      %1425 = vmatpush1.bf16.msra.mxu0 %v1296
      %1426 = vmatprep.subr.bf16.mxu0 %v1299
      %1427 = vmatpush1.bf16.msra.mxu0 %v1298
      %1428 = vmatprep.subr.bf16.mxu0 %v1301
      %1429 = vmatpush1.bf16.msra.mxu0 %v1300
      %1430 = vmatprep.subr.bf16.mxu0 %v1303
      %1431 = vmatpush1.bf16.msra.mxu0 %v1302
      %1432 = vmatprep.subr.bf16.mxu0 %v1305
      %1433 = vmatpush1.bf16.msra.mxu0 %v1304
      %1434 = vmatprep.subr.bf16.mxu0 %v1307
      %1435 = vmatpush1.bf16.msra.mxu0 %v1306
      %1436 = vmatprep.subr.bf16.mxu0 %v1309
      %1437 = vmatpush1.bf16.msra.mxu0 %v1308
      %1438 = vmatprep.subr.bf16.mxu0 %v1311
      %1439 = vmatpush1.bf16.msra.mxu0 %v1310
      %1440 = vmatprep.subr.bf16.mxu0 %v1313
      %1441 = vmatpush1.bf16.msra.mxu0 %v1312
      %1442 = vmatprep.subr.bf16.mxu0 %v1315
      %1443 = vmatpush1.bf16.msra.mxu0 %v1314
      %1444 = vmatprep.subr.bf16.mxu0 %v1317
      %1445 = vmatpush1.bf16.msra.mxu0 %v1316
      %1446 = vmatprep.mubr.bf16.mxu0 %v1079
      %1447 = vmatmul.mubr.bf16.gmra.mrb[0].mxu0 %v1078
      %v1448 = vpop.f32.mrb[0].mxu0
      %v1449 = vadd.f32 %v1087, %v1448
      %v1450 = vpop.f32.mrb[0].mxu0
      %v1451 = vadd.f32 %v1091, %v1450
      %v1452 = vpop.f32.mrb[0].mxu0
      %v1453 = vpop.f32.mrb[0].mxu0
      %1454 = vdwg.mxu0
      %1455 = vmatprep.subr.bf16.mxu0 %v1319
      %1456 = vmatpush1.bf16.msra.mxu0 %v1318
      %1457 = vmatprep.subr.bf16.mxu0 %v1321
      %1458 = vmatpush1.bf16.msra.mxu0 %v1320
      %1459 = vmatprep.subr.bf16.mxu0 %v1323
      %1460 = vmatpush1.bf16.msra.mxu0 %v1322
      %1461 = vmatprep.subr.bf16.mxu0 %v1325
      %1462 = vmatpush1.bf16.msra.mxu0 %v1324
      %1463 = vmatprep.subr.bf16.mxu0 %v1327
      %1464 = vmatpush1.bf16.msra.mxu0 %v1326
      %1465 = vmatprep.subr.bf16.mxu0 %v1329
      %1466 = vmatpush1.bf16.msra.mxu0 %v1328
      %1467 = vmatprep.subr.bf16.mxu0 %v1331
      %1468 = vmatpush1.bf16.msra.mxu0 %v1330
      %1469 = vmatprep.subr.bf16.mxu0 %v1333
      %1470 = vmatpush1.bf16.msra.mxu0 %v1332
      %1471 = vmatprep.subr.bf16.mxu0 %v1335
      %1472 = vmatpush1.bf16.msra.mxu0 %v1334
      %1473 = vmatprep.subr.bf16.mxu0 %v1337
      %1474 = vmatpush1.bf16.msra.mxu0 %v1336
      %1475 = vmatprep.subr.bf16.mxu0 %v1339
      %1476 = vmatpush1.bf16.msra.mxu0 %v1338
      %1477 = vmatprep.subr.bf16.mxu0 %v1341
      %1478 = vmatpush1.bf16.msra.mxu0 %v1340
      %1479 = vmatprep.subr.bf16.mxu0 %v1343
      %1480 = vmatpush1.bf16.msra.mxu0 %v1342
      %1481 = vmatprep.subr.bf16.mxu0 %v1345
      %1482 = vmatpush1.bf16.msra.mxu0 %v1344
      %1483 = vmatprep.subr.bf16.mxu0 %v1347
      %1484 = vmatpush1.bf16.msra.mxu0 %v1346
      %1485 = vmatprep.subr.bf16.mxu0 %v1349
      %1486 = vmatpush1.bf16.msra.mxu0 %v1348
      %1487 = vmatprep.mubr.bf16.mxu0 %v1081
      %1488 = vmatmul.mubr.bf16.gmra.mrb[0].mxu0 %v1080
      %v1489 = vpop.f32.mrb[0].mxu0
      %v1490 = vadd.f32 %v1449, %v1489
      %v1491 = vpop.f32.mrb[0].mxu0
      %v1492 = vadd.f32 %v1451, %v1491
      %v1493 = vpop.f32.mrb[0].mxu0
      %v1494 = vpop.f32.mrb[0].mxu0
      %1495 = vdwg.mxu0
      %v1496 = vmax.f32 %v1490, 0.0
      %v1497 = vmax.f32 %v1492, 0.0
      %v1498 = vld [vmem:[%s7] sm:$0xf]
      %v1499 = vld [vmem:[%s7 + $0x4] sm:$0xf]
      %v1500 = vld [vmem:[%s7 + $0x8] sm:$0xf]
      %v1501 = vld [vmem:[%s7 + $0xc] sm:$0xf]
      %v1502 = vld [vmem:[%s7 + $0x10] sm:$0xf]
      %v1503 = vld [vmem:[%s7 + $0x14] sm:$0xf]
      %v1504 = vld [vmem:[%s7 + $0x18] sm:$0xf]
      %v1505 = vld [vmem:[%s7 + $0x1c] sm:$0xf]
      %v1506 = vld [vmem:[%s7 + $0x20] sm:$0xf]
      %v1507 = vld [vmem:[%s7 + $0x24] sm:$0xf]
      %v1508 = vld [vmem:[%s7 + $0x28] sm:$0xf]
      %v1509 = vld [vmem:[%s7 + $0x2c] sm:$0xf]
      %v1510 = vld [vmem:[%s7 + $0x30] sm:$0xf]
      %v1511 = vld [vmem:[%s7 + $0x34] sm:$0xf]
      %v1512 = vld [vmem:[%s7 + $0x38] sm:$0xf]
      %v1513 = vld [vmem:[%s7 + $0x3c] sm:$0xf]
      %v1514 = vld [vmem:[%s7 + $0x40] sm:$0xf]
      %v1515 = vld [vmem:[%s7 + $0x44] sm:$0xf]
      %v1516 = vld [vmem:[%s7 + $0x48] sm:$0xf]
      %v1517 = vld [vmem:[%s7 + $0x4c] sm:$0xf]
      %v1518 = vld [vmem:[%s7 + $0x50] sm:$0xf]
      %v1519 = vld [vmem:[%s7 + $0x54] sm:$0xf]
      %v1520 = vld [vmem:[%s7 + $0x58] sm:$0xf]
      %v1521 = vld [vmem:[%s7 + $0x5c] sm:$0xf]
      %v1522 = vld [vmem:[%s7 + $0x60] sm:$0xf]
      %v1523 = vld [vmem:[%s7 + $0x64] sm:$0xf]
      %v1524 = vld [vmem:[%s7 + $0x68] sm:$0xf]
      %v1525 = vld [vmem:[%s7 + $0x6c] sm:$0xf]
      %v1526 = vld [vmem:[%s7 + $0x70] sm:$0xf]
      %v1527 = vld [vmem:[%s7 + $0x74] sm:$0xf]
      %v1528 = vld [vmem:[%s7 + $0x78] sm:$0xf]
      %v1529 = vld [vmem:[%s7 + $0x7c] sm:$0xf]
      %v1530 = vpack.c.bf16 %v1496, %v1496
      %v1531 = vpack.c.bf16 %v1497, %v1497
      %v1532 = vld [vmem:[%s8] sm:$0x1]
      %v1534 = vlaneseq
      %v1535 = vshrl.u32 %v1534, 7
      %v1536 = vsub.s32 0, %v1535
      %v1537 = vrot.slane %v1532, %v1536
      %v1571 = vunpack.c.l.b16 %v1498
      %v1572 = vunpack.c.l.b16 %v1499
      %v1573 = vunpack.c.l.b16 %v1500
      %v1574 = vunpack.c.l.b16 %v1501
      %v1575 = vunpack.c.l.b16 %v1502
      %v1576 = vunpack.c.l.b16 %v1503
      %v1577 = vunpack.c.l.b16 %v1504
      %v1578 = vunpack.c.l.b16 %v1505
      %v1579 = vunpack.c.l.b16 %v1506
      %v1580 = vunpack.c.l.b16 %v1507
      %v1581 = vunpack.c.l.b16 %v1508
      %v1582 = vunpack.c.l.b16 %v1509
      %v1583 = vunpack.c.l.b16 %v1510
      %v1584 = vunpack.c.l.b16 %v1511
      %v1585 = vunpack.c.l.b16 %v1512
      %v1586 = vunpack.c.l.b16 %v1513
      %v1587 = vunpack.c.l.b16 %v1514
      %v1588 = vunpack.c.l.b16 %v1515
      %v1589 = vunpack.c.l.b16 %v1516
      %v1590 = vunpack.c.l.b16 %v1517
      %v1591 = vunpack.c.l.b16 %v1518
      %v1592 = vunpack.c.l.b16 %v1519
      %v1593 = vunpack.c.l.b16 %v1520
      %v1594 = vunpack.c.l.b16 %v1521
      %v1595 = vunpack.c.l.b16 %v1522
      %v1596 = vunpack.c.l.b16 %v1523
      %v1597 = vunpack.c.l.b16 %v1524
      %v1598 = vunpack.c.l.b16 %v1525
      %v1599 = vunpack.c.l.b16 %v1526
      %v1600 = vunpack.c.l.b16 %v1527
      %v1601 = vunpack.c.l.b16 %v1528
      %v1602 = vunpack.c.l.b16 %v1529
      %v1603 = vpack.c.b16 %v1572, %v1571
      %v1604 = vpack.c.b16 %v1574, %v1573
      %v1605 = vpack.c.b16 %v1576, %v1575
      %v1606 = vpack.c.b16 %v1578, %v1577
      %v1607 = vpack.c.b16 %v1580, %v1579
      %v1608 = vpack.c.b16 %v1582, %v1581
      %v1609 = vpack.c.b16 %v1584, %v1583
      %v1610 = vpack.c.b16 %v1586, %v1585
      %v1611 = vpack.c.b16 %v1588, %v1587
      %v1612 = vpack.c.b16 %v1590, %v1589
      %v1613 = vpack.c.b16 %v1592, %v1591
      %v1614 = vpack.c.b16 %v1594, %v1593
      %v1615 = vpack.c.b16 %v1596, %v1595
      %v1616 = vpack.c.b16 %v1598, %v1597
      %v1617 = vpack.c.b16 %v1600, %v1599
      %v1618 = vpack.c.b16 %v1602, %v1601
      %1635 = vmatprep.subr.bf16.mxu0 0
      %1636 = vmatpush1.bf16.msra.mxu0 %v1603
      %1637 = vmatprep.subr.bf16.mxu0 0
      %1638 = vmatpush1.bf16.msra.mxu0 %v1604
      %1639 = vmatprep.subr.bf16.mxu0 0
      %1640 = vmatpush1.bf16.msra.mxu0 %v1605
      %1641 = vmatprep.subr.bf16.mxu0 0
      %1642 = vmatpush1.bf16.msra.mxu0 %v1606
      %1643 = vmatprep.subr.bf16.mxu0 0
      %1644 = vmatpush1.bf16.msra.mxu0 %v1607
      %1645 = vmatprep.subr.bf16.mxu0 0
      %1646 = vmatpush1.bf16.msra.mxu0 %v1608
      %1647 = vmatprep.subr.bf16.mxu0 0
      %1648 = vmatpush1.bf16.msra.mxu0 %v1609
      %1649 = vmatprep.subr.bf16.mxu0 0
      %1650 = vmatpush1.bf16.msra.mxu0 %v1610
      %1651 = vmatprep.subr.bf16.mxu0 0
      %1652 = vmatpush1.bf16.msra.mxu0 %v1611
      %1653 = vmatprep.subr.bf16.mxu0 0
      %1654 = vmatpush1.bf16.msra.mxu0 %v1612
      %1655 = vmatprep.subr.bf16.mxu0 0
      %1656 = vmatpush1.bf16.msra.mxu0 %v1613
      %1657 = vmatprep.subr.bf16.mxu0 0
      %1658 = vmatpush1.bf16.msra.mxu0 %v1614
      %1659 = vmatprep.subr.bf16.mxu0 0
      %1660 = vmatpush1.bf16.msra.mxu0 %v1615
      %1661 = vmatprep.subr.bf16.mxu0 0
      %1662 = vmatpush1.bf16.msra.mxu0 %v1616
      %1663 = vmatprep.subr.bf16.mxu0 0
      %1664 = vmatpush1.bf16.msra.mxu0 %v1617
      %1665 = vmatprep.subr.bf16.mxu0 0
      %1666 = vmatpush1.bf16.msra.mxu0 %v1618
      %1667 = vmatprep.mubr.bf16.mxu0 %v1531
      %1668 = vmatmul.mubr.bf16.gmra.mrb[0].mxu0 %v1530
      %v1669 = vpop.f32.mrb[0].mxu0
      %v1670 = vadd.f32 %v1537, %v1669
      %v1671 = vpop.f32.mrb[0].mxu0
      %v1672 = vpop.f32.mrb[0].mxu0
      %v1673 = vpop.f32.mrb[0].mxu0
      %1674 = vdwg.mxu0
      %v1675 = vmax.f32 %v1670, 0.0
      %v1676 = vld [vmem:[%s9] sm:$0xf]
      %v1677 = vld [vmem:[%s9 + $0x4] sm:$0xf]
      %v1678 = vld [vmem:[%s9 + $0x8] sm:$0xf]
      %v1679 = vld [vmem:[%s9 + $0xc] sm:$0xf]
      %v1680 = vld [vmem:[%s9 + $0x10] sm:$0xf]
      %v1681 = vld [vmem:[%s9 + $0x14] sm:$0xf]
      %v1682 = vld [vmem:[%s9 + $0x18] sm:$0xf]
      %v1683 = vld [vmem:[%s9 + $0x1c] sm:$0xf]
      %v1684 = vld [vmem:[%s9 + $0x20] sm:$0xf]
      %v1685 = vld [vmem:[%s9 + $0x24] sm:$0xf]
      %v1686 = vld [vmem:[%s9 + $0x28] sm:$0xf]
      %v1687 = vld [vmem:[%s9 + $0x2c] sm:$0xf]
      %v1688 = vld [vmem:[%s9 + $0x30] sm:$0xf]
      %v1689 = vld [vmem:[%s9 + $0x34] sm:$0xf]
      %v1690 = vld [vmem:[%s9 + $0x38] sm:$0xf]
      %v1691 = vld [vmem:[%s9 + $0x3c] sm:$0xf]
      %v1692 = vpack.c.bf16 %v1675, %v1675
      %v1693 = vld [vmem:[#allocation2] sm:$0x1]
      %v1695 = vlaneseq
      %v1696 = vshrl.u32 %v1695, 7
      %v1697 = vsub.s32 0, %v1696
      %v1698 = vrot.slane %v1693, %v1697
      %v1716 = vunpack.c.l.b16 %v1676
      %v1717 = vunpack.c.l.b16 %v1677
      %v1718 = vunpack.c.l.b16 %v1678
      %v1719 = vunpack.c.l.b16 %v1679
      %v1720 = vunpack.c.l.b16 %v1680
      %v1721 = vunpack.c.l.b16 %v1681
      %v1722 = vunpack.c.l.b16 %v1682
      %v1723 = vunpack.c.l.b16 %v1683
      %v1724 = vunpack.c.l.b16 %v1684
      %v1725 = vunpack.c.l.b16 %v1685
      %v1726 = vunpack.c.l.b16 %v1686
      %v1727 = vunpack.c.l.b16 %v1687
      %v1728 = vunpack.c.l.b16 %v1688
      %v1729 = vunpack.c.l.b16 %v1689
      %v1730 = vunpack.c.l.b16 %v1690
      %v1731 = vunpack.c.l.b16 %v1691
      %v1732 = vpack.c.b16 %v1717, %v1716
      %v1733 = vpack.c.b16 %v1719, %v1718
      %v1734 = vpack.c.b16 %v1721, %v1720
      %v1735 = vpack.c.b16 %v1723, %v1722
      %v1736 = vpack.c.b16 %v1725, %v1724
      %v1737 = vpack.c.b16 %v1727, %v1726
      %v1738 = vpack.c.b16 %v1729, %v1728
      %v1739 = vpack.c.b16 %v1731, %v1730
      %1748 = vmatprep.subr.bf16.mxu0 0
      %1749 = vmatpush1.bf16.msra.mxu0 %v1732
      %1750 = vmatprep.subr.bf16.mxu0 0
      %1751 = vmatpush1.bf16.msra.mxu0 %v1733
      %1752 = vmatprep.subr.bf16.mxu0 0
      %1753 = vmatpush1.bf16.msra.mxu0 %v1734
      %1754 = vmatprep.subr.bf16.mxu0 0
      %1755 = vmatpush1.bf16.msra.mxu0 %v1735
      %1756 = vmatprep.subr.bf16.mxu0 0
      %1757 = vmatpush1.bf16.msra.mxu0 %v1736
      %1758 = vmatprep.subr.bf16.mxu0 0
      %1759 = vmatpush1.bf16.msra.mxu0 %v1737
      %1760 = vmatprep.subr.bf16.mxu0 0
      %1761 = vmatpush1.bf16.msra.mxu0 %v1738
      %1762 = vmatprep.subr.bf16.mxu0 0
      %1763 = vmatpush1.bf16.msra.mxu0 %v1739
      %1764 = vmatprep.subr.bf16.mxu0 0
      %1765 = vmatpush1.bf16.msra.mxu0 0
      %1766 = vmatprep.subr.bf16.mxu0 0
      %1767 = vmatpush1.bf16.msra.mxu0 0
      %1768 = vmatprep.subr.bf16.mxu0 0
      %1769 = vmatpush1.bf16.msra.mxu0 0
      %1770 = vmatprep.subr.bf16.mxu0 0
      %1771 = vmatpush1.bf16.msra.mxu0 0
      %1772 = vmatprep.subr.bf16.mxu0 0
      %1773 = vmatpush1.bf16.msra.mxu0 0
      %1774 = vmatprep.subr.bf16.mxu0 0
      %1775 = vmatpush1.bf16.msra.mxu0 0
      %1776 = vmatprep.subr.bf16.mxu0 0
      %1777 = vmatpush1.bf16.msra.mxu0 0
      %1778 = vmatprep.subr.bf16.mxu0 0
      %1779 = vmatpush1.bf16.msra.mxu0 0
      %1780 = vmatprep.mubr.bf16.mxu0 0
      %1781 = vmatmul.mubr.bf16.gmra.mrb[0].mxu0 %v1692
      %v1782 = vpop.f32.mrb[0].mxu0
      %v1783 = vadd.f32 %v1698, %v1782
      %v1784 = vpop.f32.mrb[0].mxu0
      %v1785 = vpop.f32.mrb[0].mxu0
      %v1786 = vpop.f32.mrb[0].mxu0
      %1787 = vdwg.mxu0
      %vm1788 = vcmask 7168
      %1789 = vst.msk [vmem:[%s386] sm:$0xff] %vm1788, %v1783
      %p1790 = scmp.lt.s32.totalorder %s24, 3
      %s1791 = scalar_select %p1790, %s24, 3
      %s1792 = smul.addr %s1791, 8
      %s1793 = scalar_lea.vmem %s11, %s1792
      // Predicated region
      $region65: #{ctg_forward.9} parent=63 // pred_check
        %p1794 = pneg %p278
      $region66: #{ctg_forward.9} parent=63 // pred_check_branch
        %1796 = sbr.rel (%p1794) target = $region68
      $region67: #{ctg_forward.9} parent=63 // pred_region
        _
      $region68: #{ctg_forward.9} parent=63 // pred_fallthru
        _
    $region64: #{ctg_forward.9} parent=5 // pred_fallthru
      _
    %p1797 = scmp.le.s32.totalorder 2, %s19
    // Predicated region
    $region69: #{ctg_forward.9} parent=5 // pred_check
      %p1798 = pneg %p1797
    $region70: #{ctg_forward.9} parent=5 // pred_check_branch
      %1800 = sbr.rel (%p1798) target = $region72
    $region71: #{ctg_forward.9} parent=5 // pred_region
      %s1801 = ssub.s32 %s19, 2
      // Predicated region
      $region73: #{ctg_forward.9} parent=71 // pred_check
        %p1802 = pneg %p284
      $region74: #{ctg_forward.9} parent=71 // pred_check_branch
        %1804 = sbr.rel (%p1802) target = $region76
      $region75: #{ctg_forward.9} parent=71 // pred_region
        %p1805 = scmp.lt.s32.totalorder %s25, 3
        %s1806 = scalar_select %p1805, %s25, 3
        %s1807 = smul.addr %s1806, 8
        %s1808 = scalar_lea.vmem %s11, %s1807
      $region76: #{ctg_forward.9} parent=71 // pred_fallthru
        _
    $region72: #{ctg_forward.9} parent=5 // pred_fallthru
      _
  $region6: #{ctg_forward.9} parent=0 // loop_footer
    %s23 = sadd.s32 1, %s19
  $region7: #{ctg_forward.9} parent=0 // loop_footer_branch
    %18 = sbr.rel target = $region3
  $region8: #{ctg_forward.9} parent=0 // loop_exit
    _

</llo_original>
